<compile_context>
chip_gen: v5e
topology: v5e:2x2
jax: 0.10.0
libtpu: 0.0.40
codegen_flags: <defaults>
</compile_context>

<pallas_src>
import functools
import math

import jax
import jax.numpy as jnp
from jax.experimental import pallas as pl
from jax.experimental.pallas import tpu as pltpu

BN_EPS = 1e-5
F32 = jnp.float32
VMEM_SPEC = pl.BlockSpec(memory_space=pltpu.MemorySpace.VMEM)


def _dot(a, b):
    """f32 matmul with explicit f32 accumulation."""
    return jnp.dot(a, b, preferred_element_type=F32)


def _bn_train(x, gamma, beta, eps=BN_EPS):
    """PyTorch train-mode BatchNorm1d (batch stats, biased variance), in f32."""
    mean = jnp.mean(x, axis=0, keepdims=True)
    var = jnp.mean(jnp.square(x - mean), axis=0, keepdims=True)
    return (x - mean) * jax.lax.rsqrt(var + eps) * gamma + beta


# ---------------------------------------------------------------------------
# The single fused mega-kernel: embeddings + all GPSConv layers + add-pool.
# ---------------------------------------------------------------------------
def _gps_fused_kernel(
    # data
    x_ref, pe_ref, ea_ref,
    # graph-structure index vectors (tiny int32 arrays)
    src_ref, dst_ref, drow_r_ref, drow_c_ref, gid_r_ref, gid_c_ref, batch_ref,
    # embedding params
    peg_ref, peb_ref, nw_ref, pw_ref, hb_ref, ew_ref, eb_ref,
    # per-layer params, stacked on a leading [L, ...] axis
    gw1_ref, gb1_ref, gw2_ref, gb2_ref, n1g_ref, n1b_ref,
    wqkv_ref, bqkv_ref, wo_ref, bo_ref, n2g_ref, n2b_ref,
    mw1_ref, mb1_ref, mw2_ref, mb2_ref, n3g_ref, n3b_ref,
    # outputs
    pool_ref, h_out_ref,
    *, heads, gs_pad, gine_eps):
    N = x_ref.shape[0]
    E = ea_ref.shape[0]
    C = nw_ref.shape[1]
    L = gw1_ref.shape[0]
    G = pool_ref.shape[0]
    dh = C // heads

    # ---- structural matrices built in VMEM from index vectors (iota+compare) ----
    src_oh = (src_ref[...] ==
              jax.lax.broadcasted_iota(jnp.int32, (E, N), 1)).astype(F32)       # [E, N]
    dst_oh = (jax.lax.broadcasted_iota(jnp.int32, (N, E), 0) ==
              dst_ref[...]).astype(F32)                                          # [N, E]
    scat_oh = (jax.lax.broadcasted_iota(jnp.int32, (gs_pad, N), 0) ==
               drow_r_ref[...]).astype(F32)                                      # [GSp, N]
    gath_oh = (drow_c_ref[...] ==
               jax.lax.broadcasted_iota(jnp.int32, (N, gs_pad), 1)).astype(F32)  # [N, GSp]
    pool_oh = (jax.lax.broadcasted_iota(jnp.int32, (G, N), 0) ==
               batch_ref[...]).astype(F32)                                       # [G, N]

    # fuse edge-gather + dense-batch scatter into ONE left operand of h
    lhs_gather = jnp.concatenate([src_oh, scat_oh], axis=0)                      # [E+GSp, N]

    # block-diagonal (per-graph) + key-padding additive mask, strictly f32
    valid = jnp.max(gath_oh, axis=0, keepdims=True)                              # [1, GSp]
    same_graph = gid_c_ref[...] == gid_r_ref[...]                                # [GSp, GSp]
    attn_bias = jnp.where(jnp.logical_and(same_graph, valid > 0.5),
                          0.0, -1e30).astype(F32)

    # ---- input embeddings: pe BN + (node_emb | pe_lin) + edge_emb ----
    x_pe = _bn_train(pe_ref[...], peg_ref[...], peb_ref[...])
    h = _dot(x_ref[...], nw_ref[...]) + _dot(x_pe, pw_ref[...]) + hb_ref[...]    # [N, C]
    e = _dot(ea_ref[...], ew_ref[...]) + eb_ref[...]                             # [E, C]

    # ---- GPSConv layers (unrolled; everything stays in VMEM/vregs) ----
    for l in range(L):
        both = _dot(lhs_gather, h)                 # [E+GSp, C]: x_j rows + dense-batch rows
        x_src = both[:E]                           # gather x_j per edge
        dense = both[E:]                           # to_dense_batch(x) flattened

        # -- local branch: GINEConv + residual + BN1
        msg = jnp.maximum(x_src + e, 0.0)          # relu(x_j + e_ij)
        agg = _dot(dst_oh, msg)                    # scatter-add to target nodes
        gine = (1.0 + gine_eps) * h + agg
        mid = jnp.maximum(_dot(gine, gw1_ref[l]) + gb1_ref[l], 0.0)
        local = _dot(mid, gw2_ref[l]) + gb2_ref[l] + h        # dropout p=0 -> no-op
        local = _bn_train(local, n1g_ref[l], n1b_ref[l])

        # -- global branch: multi-head attention (per-graph via block-diag bias)
        qkv = _dot(dense, wqkv_ref[l]) + bqkv_ref[l]          # [GSp, 3C], Q pre-scaled
        head_outs = []
        for hh in range(heads):                    # heads on the lane axis; static unroll
            lo = hh * dh
            qh = qkv[:, lo:lo + dh]
            kh = qkv[:, C + lo:C + lo + dh]
            vh = qkv[:, 2 * C + lo:2 * C + lo + dh]
            s = jax.lax.dot_general(qh, kh, (((1,), (1,)), ((), ())),
                                    preferred_element_type=F32) + attn_bias
            s = s - jnp.max(s, axis=-1, keepdims=True)
            p = jnp.exp(s)
            p = p / jnp.sum(p, axis=-1, keepdims=True)        # exact divide
            head_outs.append(_dot(p, vh))                     # [GSp, dh]
        attn = jnp.concatenate(head_outs, axis=1)             # [GSp, C]
        attn = _dot(attn, wo_ref[l]) + bo_ref[l]              # one K=C out-projection
        h_attn = _dot(gath_oh, attn) + h                      # gather back + residual
        h_attn = _bn_train(h_attn, n2g_ref[l], n2b_ref[l])

        # -- combine + MLP + residual + BN3
        out = local + h_attn
        m1 = jnp.maximum(_dot(out, mw1_ref[l]) + mb1_ref[l], 0.0)
        m2 = _dot(m1, mw2_ref[l]) + mb2_ref[l]
        h = _bn_train(out + m2, n3g_ref[l], n3b_ref[l])

    # ---- outputs: node features + global_add_pool ----
    h_out_ref[...] = h
    pool_ref[...] = _dot(pool_oh, h)


# ---------------------------------------------------------------------------
# Parameters (deterministic, shapes match the PyTorch module __init__; MHA
# in_proj stored fused as wqkv/bqkv like nn.MultiheadAttention).
# ---------------------------------------------------------------------------
def init_params(key, node_dim, edge_dim, channels, pe_dim, num_layers):
    keys = iter(jax.random.split(key, 256))

    def w(shape):
        return jax.random.normal(next(keys), shape, jnp.float32) * 0.1

    p = {
        "node_emb_w": w((node_dim, channels - pe_dim)),
        "node_emb_b": w((channels - pe_dim,)),
        "pe_lin_w": w((20, pe_dim)),
        "pe_lin_b": w((pe_dim,)),
        "pe_norm_g": jnp.ones((20,), jnp.float32),
        "pe_norm_b": jnp.zeros((20,), jnp.float32),
        "edge_emb_w": w((edge_dim, channels)),
        "edge_emb_b": w((channels,)),
    }
    layers = []
    for _ in range(num_layers):
        lp = {
            "gine_w1": w((channels, channels)), "gine_b1": w((channels,)),
            "gine_w2": w((channels, channels)), "gine_b2": w((channels,)),
            "wqkv": w((channels, 3 * channels)), "bqkv": w((3 * channels,)),
            "wo": w((channels, channels)), "bo": w((channels,)),
            "mlp_w1": w((channels, 2 * channels)), "mlp_b1": w((2 * channels,)),
            "mlp_w2": w((2 * channels, channels)), "mlp_b2": w((channels,)),
        }
        for n in ("norm1", "norm2", "norm3"):
            lp[n + "_g"] = jnp.ones((channels,), jnp.float32)
            lp[n + "_b"] = jnp.zeros((channels,), jnp.float32)
        layers.append(lp)
    p["layers"] = layers
    return p


def prepare_params(params, heads):
    """One-time preprocessing: weight padding, bias concat, per-layer stacking,
    and folding the 1/sqrt(dh) attention scale into the Q columns of wqkv."""
    node_out = params["node_emb_w"].shape[1]
    pe_dim = params["pe_lin_w"].shape[1]
    C = node_out + pe_dim
    dh = C // heads
    scale = 1.0 / math.sqrt(dh)

    pp = {
        "pe_g": params["pe_norm_g"][None, :],
        "pe_b": params["pe_norm_b"][None, :],
        # cat(node_emb, pe_lin) realized as two full-C matmuls against padded weights
        "nw": jnp.pad(params["node_emb_w"], ((0, 0), (0, pe_dim))),
        "pw": jnp.pad(params["pe_lin_w"], ((0, 0), (node_out, 0))),
        "hb": jnp.concatenate([params["node_emb_b"], params["pe_lin_b"]])[None, :],
        "ew": params["edge_emb_w"],
        "eb": params["edge_emb_b"][None, :],
    }

    def stack_w(name):
        return jnp.stack([lp[name] for lp in params["layers"]])

    def stack_b(name):
        return jnp.stack([lp[name][None, :] for lp in params["layers"]])

    pp["gw1"], pp["gb1"] = stack_w("gine_w1"), stack_b("gine_b1")
    pp["gw2"], pp["gb2"] = stack_w("gine_w2"), stack_b("gine_b2")
    pp["wo"], pp["bo"] = stack_w("wo"), stack_b("bo")
    pp["mw1"], pp["mb1"] = stack_w("mlp_w1"), stack_b("mlp_b1")
    pp["mw2"], pp["mb2"] = stack_w("mlp_w2"), stack_b("mlp_b2")
    for n, short in (("norm1", "n1"), ("norm2", "n2"), ("norm3", "n3")):
        pp[short + "g"] = stack_b(n + "_g")
        pp[short + "b"] = stack_b(n + "_b")

    wqkv, bqkv = [], []
    for lp in params["layers"]:
        wqkv.append(lp["wqkv"].at[:, :C].multiply(scale))
        bqkv.append(lp["bqkv"].at[:C].multiply(scale)[None, :])
    pp["wqkv"], pp["bqkv"] = jnp.stack(wqkv), jnp.stack(bqkv)
    return pp


# ---------------------------------------------------------------------------
# Forward pass: one pallas_call for the whole network.
# ---------------------------------------------------------------------------
@functools.partial(jax.jit, static_argnames=("G", "S", "heads"))
def gps_forward(prepped, x, pe, edge_index, edge_attr, batch, pos, *, G, S, heads):
    x = x.astype(F32)
    pe = pe.astype(F32)
    edge_attr = edge_attr.astype(F32)
    N = x.shape[0]
    E = edge_attr.shape[0]
    C = prepped["nw"].shape[1]
    L = prepped["gw1"].shape[0]
    dh = C // heads
    gs = G * S
    gs_pad = -(-gs // 8) * 8          # pad dense-batch rows to a sublane multiple of 8

    src = edge_index[0].astype(jnp.int32)
    dst = edge_index[1].astype(jnp.int32)
    batch = batch.astype(jnp.int32)
    pos = pos.astype(jnp.int32)
    drow = batch * S + pos                         # dense-batch row per node (pos < S assumed)
    gid = jnp.arange(gs_pad, dtype=jnp.int32) // S  # graph id per dense row

    args = (
        x, pe, edge_attr,
        src[:, None], dst[None, :], drow[None, :], drow[:, None],
        gid[None, :], gid[:, None], batch[None, :],
        prepped["pe_g"], prepped["pe_b"], prepped["nw"], prepped["pw"], prepped["hb"],
        prepped["ew"], prepped["eb"],
        prepped["gw1"], prepped["gb1"], prepped["gw2"], prepped["gb2"],
        prepped["n1g"], prepped["n1b"],
        prepped["wqkv"], prepped["bqkv"], prepped["wo"], prepped["bo"],
        prepped["n2g"], prepped["n2b"],
        prepped["mw1"], prepped["mb1"], prepped["mw2"], prepped["mb2"],
        prepped["n3g"], prepped["n3b"],
    )

    flops_layer = 2 * ((E + gs_pad) * N * C + N * E * C + 2 * N * C * C
                       + gs_pad * C * 3 * C + heads * 2 * gs_pad * gs_pad * dh
                       + gs_pad * C * C + N * gs_pad * C + 4 * N * C * C)
    flops = (L * flops_layer
             + 2 * (N * x.shape[1] * C + N * pe.shape[1] * C + E * edge_attr.shape[1] * C)
             + 2 * G * N * C)
    bytes_accessed = sum(int(a.size) * 4 for a in args) + (G + N) * C * 4
    cost = pl.CostEstimate(flops=int(flops),
                           transcendentals=int(L * heads * gs_pad * gs_pad),
                           bytes_accessed=int(bytes_accessed))

    kern = functools.partial(_gps_fused_kernel, heads=heads, gs_pad=gs_pad, gine_eps=0.0)
    out, h = pl.pallas_call(
        kern,
        out_shape=(jax.ShapeDtypeStruct((G, C), F32),
                   jax.ShapeDtypeStruct((N, C), F32)),
        in_specs=[VMEM_SPEC] * len(args),
        out_specs=(VMEM_SPEC, VMEM_SPEC),
        compiler_params=pltpu.CompilerParams(vmem_limit_bytes=32 * 1024 * 1024),
        cost_estimate=cost,
    )(*args)
    return out, h


# ---------------------------------------------------------------------------
if __name__ == "__main__":
    # module config: GPS(channels=32, pe_dim=8, node_dim=16, edge_dim=8,
    #                   heads=4, num_layers=2, attn_type='multihead',
    #                   dropout=0.0, attn_dropout=0.0)
    node_dim, edge_dim = 16, 8
    channels, pe_dim, heads, num_layers = 32, 8, 4, 2

    counts = [7, 9, 8]                 # nodes per graph
    G, S, N = len(counts), max(counts), sum(counts)
    E = 48                             # number of edges

    batch = jnp.array(sum(([g] * c for g, c in enumerate(counts)), []), jnp.int32)
    pos = jnp.array(sum((list(range(c)) for c in counts), []), jnp.int32)

    key = jax.random.PRNGKey(0)
    kx, kpe, kea, ksrc, kdst, kparam = jax.random.split(key, 6)
    x = jax.random.normal(kx, (N, node_dim), jnp.float32)
    pe = jax.random.normal(kpe, (N, 20), jnp.float32)
    edge_attr = jax.random.normal(kea, (E, edge_dim), jnp.float32)
    src = jax.random.randint(ksrc, (E,), 0, N)
    dst = jax.random.randint(kdst, (E,), 0, N)
    edge_index = jnp.stack([src, dst])

    params = init_params(kparam, node_dim, edge_dim, channels, pe_dim, num_layers)
    prepped = prepare_params(params, heads)   # one-time weight preprocessing

    out, h_nodes = gps_forward(prepped, x, pe, edge_index, edge_attr, batch, pos,
                               G=G, S=S, heads=heads)
    jax.block_until_ready((out, h_nodes))
    assert out.shape == (G, channels)
    assert h_nodes.shape == (N, channels)
    print("KERNEL_OK")
</pallas_src>

<mosaic_0001>
module attributes {stable_mosaic.version = 11 : i64} {
  func.func @_gps_fused_kernel(%arg0: memref<24x16xf32, #tpu.memory_space<vmem>>, %arg1: memref<24x20xf32, #tpu.memory_space<vmem>>, %arg2: memref<48x8xf32, #tpu.memory_space<vmem>>, %arg3: memref<48x1xi32, #tpu.memory_space<vmem>>, %arg4: memref<1x48xi32, #tpu.memory_space<vmem>>, %arg5: memref<1x24xi32, #tpu.memory_space<vmem>>, %arg6: memref<24x1xi32, #tpu.memory_space<vmem>>, %arg7: memref<1x32xi32, #tpu.memory_space<vmem>>, %arg8: memref<32x1xi32, #tpu.memory_space<vmem>>, %arg9: memref<1x24xi32, #tpu.memory_space<vmem>>, %arg10: memref<1x20xf32, #tpu.memory_space<vmem>>, %arg11: memref<1x20xf32, #tpu.memory_space<vmem>>, %arg12: memref<16x32xf32, #tpu.memory_space<vmem>>, %arg13: memref<20x32xf32, #tpu.memory_space<vmem>>, %arg14: memref<1x32xf32, #tpu.memory_space<vmem>>, %arg15: memref<8x32xf32, #tpu.memory_space<vmem>>, %arg16: memref<1x32xf32, #tpu.memory_space<vmem>>, %arg17: memref<2x32x32xf32, #tpu.memory_space<vmem>>, %arg18: memref<2x1x32xf32, #tpu.memory_space<vmem>>, %arg19: memref<2x32x32xf32, #tpu.memory_space<vmem>>, %arg20: memref<2x1x32xf32, #tpu.memory_space<vmem>>, %arg21: memref<2x1x32xf32, #tpu.memory_space<vmem>>, %arg22: memref<2x1x32xf32, #tpu.memory_space<vmem>>, %arg23: memref<2x32x96xf32, #tpu.memory_space<vmem>>, %arg24: memref<2x1x96xf32, #tpu.memory_space<vmem>>, %arg25: memref<2x32x32xf32, #tpu.memory_space<vmem>>, %arg26: memref<2x1x32xf32, #tpu.memory_space<vmem>>, %arg27: memref<2x1x32xf32, #tpu.memory_space<vmem>>, %arg28: memref<2x1x32xf32, #tpu.memory_space<vmem>>, %arg29: memref<2x32x64xf32, #tpu.memory_space<vmem>>, %arg30: memref<2x1x64xf32, #tpu.memory_space<vmem>>, %arg31: memref<2x64x32xf32, #tpu.memory_space<vmem>>, %arg32: memref<2x1x32xf32, #tpu.memory_space<vmem>>, %arg33: memref<2x1x32xf32, #tpu.memory_space<vmem>>, %arg34: memref<2x1x32xf32, #tpu.memory_space<vmem>>, %arg35: memref<3x32xf32, #tpu.memory_space<vmem>>, %arg36: memref<24x32xf32, #tpu.memory_space<vmem>>) attributes {dimension_semantics = [], scalar_prefetch = 0 : i64, scratch_operands = 0 : i64, tpu.core_type = #tpu.core_type<tc>} {
    %c0 = arith.constant 0 : index
    %c0_0 = arith.constant 0 : index
    %0 = vector.load %arg3[%c0, %c0_0] : memref<48x1xi32, #tpu.memory_space<vmem>>, vector<48x1xi32>
    %1 = tpu.iota {dimensions = array<i32: 1>} : vector<48x24xi32>
    %2 = vector.broadcast %0 : vector<48x1xi32> to vector<48x24xi32>
    %3 = arith.cmpi eq, %2, %1 : vector<48x24xi32>
    %4 = arith.extui %3 : vector<48x24xi1> to vector<48x24xi32>
    %5 = arith.sitofp %4 : vector<48x24xi32> to vector<48x24xf32>
    %6 = tpu.iota {dimensions = array<i32: 0>} : vector<24x48xi32>
    %c0_1 = arith.constant 0 : index
    %c0_2 = arith.constant 0 : index
    %7 = vector.load %arg4[%c0_1, %c0_2] : memref<1x48xi32, #tpu.memory_space<vmem>>, vector<1x48xi32>
    %8 = vector.broadcast %7 : vector<1x48xi32> to vector<24x48xi32>
    %9 = arith.cmpi eq, %6, %8 : vector<24x48xi32>
    %10 = arith.extui %9 : vector<24x48xi1> to vector<24x48xi32>
    %11 = arith.sitofp %10 : vector<24x48xi32> to vector<24x48xf32>
    %12 = tpu.iota {dimensions = array<i32: 0>} : vector<32x24xi32>
    %c0_3 = arith.constant 0 : index
    %c0_4 = arith.constant 0 : index
    %13 = vector.load %arg5[%c0_3, %c0_4] : memref<1x24xi32, #tpu.memory_space<vmem>>, vector<1x24xi32>
    %14 = vector.broadcast %13 : vector<1x24xi32> to vector<32x24xi32>
    %15 = arith.cmpi eq, %12, %14 : vector<32x24xi32>
    %16 = arith.extui %15 : vector<32x24xi1> to vector<32x24xi32>
    %17 = arith.sitofp %16 : vector<32x24xi32> to vector<32x24xf32>
    %c0_5 = arith.constant 0 : index
    %c0_6 = arith.constant 0 : index
    %18 = vector.load %arg6[%c0_5, %c0_6] : memref<24x1xi32, #tpu.memory_space<vmem>>, vector<24x1xi32>
    %19 = tpu.iota {dimensions = array<i32: 1>} : vector<24x32xi32>
    %20 = vector.broadcast %18 : vector<24x1xi32> to vector<24x32xi32>
    %21 = arith.cmpi eq, %20, %19 : vector<24x32xi32>
    %22 = arith.extui %21 : vector<24x32xi1> to vector<24x32xi32>
    %23 = arith.sitofp %22 : vector<24x32xi32> to vector<24x32xf32>
    %24 = tpu.iota {dimensions = array<i32: 0>} : vector<3x24xi32>
    %c0_7 = arith.constant 0 : index
    %c0_8 = arith.constant 0 : index
    %25 = vector.load %arg9[%c0_7, %c0_8] : memref<1x24xi32, #tpu.memory_space<vmem>>, vector<1x24xi32>
    %26 = vector.broadcast %25 : vector<1x24xi32> to vector<3x24xi32>
    %27 = arith.cmpi eq, %24, %26 : vector<3x24xi32>
    %28 = arith.extui %27 : vector<3x24xi1> to vector<3x24xi32>
    %29 = arith.sitofp %28 : vector<3x24xi32> to vector<3x24xf32>
    %30 = tpu.concatenate %5, %17 in 0 : vector<48x24xf32>, vector<32x24xf32> -> vector<80x24xf32>
    %cst = arith.constant dense<0xFF800000> : vector<32xf32>
    %31 = vector.multi_reduction <maximumf>, %23, %cst [0] : vector<24x32xf32> to vector<32xf32>
    %32 = vector.shape_cast %31 : vector<32xf32> to vector<1x32xf32>
    %c0_9 = arith.constant 0 : index
    %c0_10 = arith.constant 0 : index
    %33 = vector.load %arg8[%c0_9, %c0_10] : memref<32x1xi32, #tpu.memory_space<vmem>>, vector<32x1xi32>
    %c0_11 = arith.constant 0 : index
    %c0_12 = arith.constant 0 : index
    %34 = vector.load %arg7[%c0_11, %c0_12] : memref<1x32xi32, #tpu.memory_space<vmem>>, vector<1x32xi32>
    %35 = vector.broadcast %33 : vector<32x1xi32> to vector<32x32xi32>
    %36 = vector.broadcast %34 : vector<1x32xi32> to vector<32x32xi32>
    %37 = arith.cmpi eq, %35, %36 : vector<32x32xi32>
    %cst_13 = arith.constant 5.000000e-01 : f32
    %38 = vector.broadcast %cst_13 : f32 to vector<1x32xf32>
    %39 = arith.cmpf ogt, %32, %38 : vector<1x32xf32>
    %40 = vector.broadcast %39 : vector<1x32xi1> to vector<32x32xi1>
    %41 = arith.andi %37, %40 : vector<32x32xi1>
    %cst_14 = arith.constant 0.000000e+00 : f32
    %cst_15 = arith.constant -1.000000e+30 : f32
    %42 = vector.broadcast %cst_14 : f32 to vector<32x32xf32>
    %43 = vector.broadcast %cst_15 : f32 to vector<32x32xf32>
    %44 = arith.select %41, %42, %43 : vector<32x32xi1>, vector<32x32xf32>
    %c0_16 = arith.constant 0 : index
    %c0_17 = arith.constant 0 : index
    %45 = vector.load %arg1[%c0_16, %c0_17] : memref<24x20xf32, #tpu.memory_space<vmem>>, vector<24x20xf32>
    %c0_18 = arith.constant 0 : index
    %c0_19 = arith.constant 0 : index
    %46 = vector.load %arg10[%c0_18, %c0_19] : memref<1x20xf32, #tpu.memory_space<vmem>>, vector<1x20xf32>
    %c0_20 = arith.constant 0 : index
    %c0_21 = arith.constant 0 : index
    %47 = vector.load %arg11[%c0_20, %c0_21] : memref<1x20xf32, #tpu.memory_space<vmem>>, vector<1x20xf32>
    %cst_22 = arith.constant dense<0.000000e+00> : vector<20xf32>
    %48 = vector.multi_reduction <add>, %45, %cst_22 [0] : vector<24x20xf32> to vector<20xf32>
    %49 = vector.shape_cast %48 : vector<20xf32> to vector<1x20xf32>
    %cst_23 = arith.constant 2.400000e+01 : f32
    %50 = vector.broadcast %cst_23 : f32 to vector<1x20xf32>
    %51 = arith.divf %49, %50 : vector<1x20xf32>
    %52 = vector.broadcast %51 : vector<1x20xf32> to vector<24x20xf32>
    %53 = arith.subf %45, %52 : vector<24x20xf32>
    %54 = arith.mulf %53, %53 : vector<24x20xf32>
    %cst_24 = arith.constant dense<0.000000e+00> : vector<20xf32>
    %55 = vector.multi_reduction <add>, %54, %cst_24 [0] : vector<24x20xf32> to vector<20xf32>
    %56 = vector.shape_cast %55 : vector<20xf32> to vector<1x20xf32>
    %cst_25 = arith.constant 2.400000e+01 : f32
    %57 = vector.broadcast %cst_25 : f32 to vector<1x20xf32>
    %58 = arith.divf %56, %57 : vector<1x20xf32>
    %59 = vector.broadcast %51 : vector<1x20xf32> to vector<24x20xf32>
    %60 = arith.subf %45, %59 : vector<24x20xf32>
    %cst_26 = arith.constant 9.99999974E-6 : f32
    %61 = vector.broadcast %cst_26 : f32 to vector<1x20xf32>
    %62 = arith.addf %58, %61 : vector<1x20xf32>
    %63 = math.rsqrt %62 : vector<1x20xf32>
    %64 = vector.broadcast %63 : vector<1x20xf32> to vector<24x20xf32>
    %65 = arith.mulf %60, %64 : vector<24x20xf32>
    %66 = vector.broadcast %46 : vector<1x20xf32> to vector<24x20xf32>
    %67 = arith.mulf %65, %66 : vector<24x20xf32>
    %68 = vector.broadcast %47 : vector<1x20xf32> to vector<24x20xf32>
    %69 = arith.addf %67, %68 : vector<24x20xf32>
    %c0_27 = arith.constant 0 : index
    %c0_28 = arith.constant 0 : index
    %70 = vector.load %arg0[%c0_27, %c0_28] : memref<24x16xf32, #tpu.memory_space<vmem>>, vector<24x16xf32>
    %c0_29 = arith.constant 0 : index
    %c0_30 = arith.constant 0 : index
    %71 = vector.load %arg12[%c0_29, %c0_30] : memref<16x32xf32, #tpu.memory_space<vmem>>, vector<16x32xf32>
    %cst_31 = arith.constant dense<0.000000e+00> : vector<24x32xf32>
    %72 = tpu.matmul %70, %71, %cst_31 {dimension_numbers = #tpu.dot_dimension_numbers<[1], [0], [0], [1], [0, 0, 1, 1], [], []>} : vector<24x16xf32>, vector<16x32xf32>, vector<24x32xf32> -> vector<24x32xf32>
    %c0_32 = arith.constant 0 : index
    %c0_33 = arith.constant 0 : index
    %73 = vector.load %arg13[%c0_32, %c0_33] : memref<20x32xf32, #tpu.memory_space<vmem>>, vector<20x32xf32>
    %cst_34 = arith.constant dense<0.000000e+00> : vector<24x32xf32>
    %74 = tpu.matmul %69, %73, %cst_34 {dimension_numbers = #tpu.dot_dimension_numbers<[1], [0], [0], [1], [0, 0, 1, 1], [], []>} : vector<24x20xf32>, vector<20x32xf32>, vector<24x32xf32> -> vector<24x32xf32>
    %75 = arith.addf %72, %74 : vector<24x32xf32>
    %c0_35 = arith.constant 0 : index
    %c0_36 = arith.constant 0 : index
    %76 = vector.load %arg14[%c0_35, %c0_36] : memref<1x32xf32, #tpu.memory_space<vmem>>, vector<1x32xf32>
    %77 = vector.broadcast %76 : vector<1x32xf32> to vector<24x32xf32>
    %78 = arith.addf %75, %77 : vector<24x32xf32>
    %c0_37 = arith.constant 0 : index
    %c0_38 = arith.constant 0 : index
    %79 = vector.load %arg2[%c0_37, %c0_38] : memref<48x8xf32, #tpu.memory_space<vmem>>, vector<48x8xf32>
    %c0_39 = arith.constant 0 : index
    %c0_40 = arith.constant 0 : index
    %80 = vector.load %arg15[%c0_39, %c0_40] : memref<8x32xf32, #tpu.memory_space<vmem>>, vector<8x32xf32>
    %cst_41 = arith.constant dense<0.000000e+00> : vector<48x32xf32>
    %81 = tpu.matmul %79, %80, %cst_41 {dimension_numbers = #tpu.dot_dimension_numbers<[1], [0], [0], [1], [0, 0, 1, 1], [], []>} : vector<48x8xf32>, vector<8x32xf32>, vector<48x32xf32> -> vector<48x32xf32>
    %c0_42 = arith.constant 0 : index
    %c0_43 = arith.constant 0 : index
    %82 = vector.load %arg16[%c0_42, %c0_43] : memref<1x32xf32, #tpu.memory_space<vmem>>, vector<1x32xf32>
    %83 = vector.broadcast %82 : vector<1x32xf32> to vector<48x32xf32>
    %84 = arith.addf %81, %83 : vector<48x32xf32>
    %cst_44 = arith.constant dense<0.000000e+00> : vector<80x32xf32>
    %85 = tpu.matmul %30, %78, %cst_44 {dimension_numbers = #tpu.dot_dimension_numbers<[1], [0], [0], [1], [0, 0, 1, 1], [], []>} : vector<80x24xf32>, vector<24x32xf32>, vector<80x32xf32> -> vector<80x32xf32>
    %86 = vector.extract_strided_slice %85 {offsets = [0, 0], sizes = [48, 32], strides = [1, 1]} : vector<80x32xf32> to vector<48x32xf32>
    %87 = vector.extract_strided_slice %85 {offsets = [48, 0], sizes = [32, 32], strides = [1, 1]} : vector<80x32xf32> to vector<32x32xf32>
    %88 = arith.addf %86, %84 : vector<48x32xf32>
    %cst_45 = arith.constant 0.000000e+00 : f32
    %89 = vector.broadcast %cst_45 : f32 to vector<48x32xf32>
    %90 = arith.maximumf %88, %89 : vector<48x32xf32>
    %cst_46 = arith.constant dense<0.000000e+00> : vector<24x32xf32>
    %91 = tpu.matmul %11, %90, %cst_46 {dimension_numbers = #tpu.dot_dimension_numbers<[1], [0], [0], [1], [0, 0, 1, 1], [], []>} : vector<24x48xf32>, vector<48x32xf32>, vector<24x32xf32> -> vector<24x32xf32>
    %cst_47 = arith.constant 1.000000e+00 : f32
    %92 = vector.broadcast %cst_47 : f32 to vector<24x32xf32>
    %93 = arith.mulf %92, %78 : vector<24x32xf32>
    %94 = arith.addf %93, %91 : vector<24x32xf32>
    %c0_48 = arith.constant 0 : index
    %c0_49 = arith.constant 0 : index
    %c0_50 = arith.constant 0 : index
    %95 = vector.load %arg17[%c0_48, %c0_49, %c0_50] : memref<2x32x32xf32, #tpu.memory_space<vmem>>, vector<1x32x32xf32>
    %96 = vector.shape_cast %95 : vector<1x32x32xf32> to vector<32x32xf32>
    %cst_51 = arith.constant dense<0.000000e+00> : vector<24x32xf32>
    %97 = tpu.matmul %94, %96, %cst_51 {dimension_numbers = #tpu.dot_dimension_numbers<[1], [0], [0], [1], [0, 0, 1, 1], [], []>} : vector<24x32xf32>, vector<32x32xf32>, vector<24x32xf32> -> vector<24x32xf32>
    %c0_52 = arith.constant 0 : index
    %c0_53 = arith.constant 0 : index
    %c0_54 = arith.constant 0 : index
    %98 = vector.load %arg18[%c0_52, %c0_53, %c0_54] : memref<2x1x32xf32, #tpu.memory_space<vmem>>, vector<1x1x32xf32>
    %99 = vector.shape_cast %98 : vector<1x1x32xf32> to vector<1x32xf32>
    %100 = vector.broadcast %99 : vector<1x32xf32> to vector<24x32xf32>
    %101 = arith.addf %97, %100 : vector<24x32xf32>
    %cst_55 = arith.constant 0.000000e+00 : f32
    %102 = vector.broadcast %cst_55 : f32 to vector<24x32xf32>
    %103 = arith.maximumf %101, %102 : vector<24x32xf32>
    %c0_56 = arith.constant 0 : index
    %c0_57 = arith.constant 0 : index
    %c0_58 = arith.constant 0 : index
    %104 = vector.load %arg19[%c0_56, %c0_57, %c0_58] : memref<2x32x32xf32, #tpu.memory_space<vmem>>, vector<1x32x32xf32>
    %105 = vector.shape_cast %104 : vector<1x32x32xf32> to vector<32x32xf32>
    %cst_59 = arith.constant dense<0.000000e+00> : vector<24x32xf32>
    %106 = tpu.matmul %103, %105, %cst_59 {dimension_numbers = #tpu.dot_dimension_numbers<[1], [0], [0], [1], [0, 0, 1, 1], [], []>} : vector<24x32xf32>, vector<32x32xf32>, vector<24x32xf32> -> vector<24x32xf32>
    %c0_60 = arith.constant 0 : index
    %c0_61 = arith.constant 0 : index
    %c0_62 = arith.constant 0 : index
    %107 = vector.load %arg20[%c0_60, %c0_61, %c0_62] : memref<2x1x32xf32, #tpu.memory_space<vmem>>, vector<1x1x32xf32>
    %108 = vector.shape_cast %107 : vector<1x1x32xf32> to vector<1x32xf32>
    %109 = vector.broadcast %108 : vector<1x32xf32> to vector<24x32xf32>
    %110 = arith.addf %106, %109 : vector<24x32xf32>
    %111 = arith.addf %110, %78 : vector<24x32xf32>
    %c0_63 = arith.constant 0 : index
    %c0_64 = arith.constant 0 : index
    %c0_65 = arith.constant 0 : index
    %112 = vector.load %arg21[%c0_63, %c0_64, %c0_65] : memref<2x1x32xf32, #tpu.memory_space<vmem>>, vector<1x1x32xf32>
    %113 = vector.shape_cast %112 : vector<1x1x32xf32> to vector<1x32xf32>
    %c0_66 = arith.constant 0 : index
    %c0_67 = arith.constant 0 : index
    %c0_68 = arith.constant 0 : index
    %114 = vector.load %arg22[%c0_66, %c0_67, %c0_68] : memref<2x1x32xf32, #tpu.memory_space<vmem>>, vector<1x1x32xf32>
    %115 = vector.shape_cast %114 : vector<1x1x32xf32> to vector<1x32xf32>
    %cst_69 = arith.constant dense<0.000000e+00> : vector<32xf32>
    %116 = vector.multi_reduction <add>, %111, %cst_69 [0] : vector<24x32xf32> to vector<32xf32>
    %117 = vector.shape_cast %116 : vector<32xf32> to vector<1x32xf32>
    %cst_70 = arith.constant 2.400000e+01 : f32
    %118 = vector.broadcast %cst_70 : f32 to vector<1x32xf32>
    %119 = arith.divf %117, %118 : vector<1x32xf32>
    %120 = vector.broadcast %119 : vector<1x32xf32> to vector<24x32xf32>
    %121 = arith.subf %111, %120 : vector<24x32xf32>
    %122 = arith.mulf %121, %121 : vector<24x32xf32>
    %cst_71 = arith.constant dense<0.000000e+00> : vector<32xf32>
    %123 = vector.multi_reduction <add>, %122, %cst_71 [0] : vector<24x32xf32> to vector<32xf32>
    %124 = vector.shape_cast %123 : vector<32xf32> to vector<1x32xf32>
    %cst_72 = arith.constant 2.400000e+01 : f32
    %125 = vector.broadcast %cst_72 : f32 to vector<1x32xf32>
    %126 = arith.divf %124, %125 : vector<1x32xf32>
    %127 = vector.broadcast %119 : vector<1x32xf32> to vector<24x32xf32>
    %128 = arith.subf %111, %127 : vector<24x32xf32>
    %cst_73 = arith.constant 9.99999974E-6 : f32
    %129 = vector.broadcast %cst_73 : f32 to vector<1x32xf32>
    %130 = arith.addf %126, %129 : vector<1x32xf32>
    %131 = math.rsqrt %130 : vector<1x32xf32>
    %132 = vector.broadcast %131 : vector<1x32xf32> to vector<24x32xf32>
    %133 = arith.mulf %128, %132 : vector<24x32xf32>
    %134 = vector.broadcast %113 : vector<1x32xf32> to vector<24x32xf32>
    %135 = arith.mulf %133, %134 : vector<24x32xf32>
    %136 = vector.broadcast %115 : vector<1x32xf32> to vector<24x32xf32>
    %137 = arith.addf %135, %136 : vector<24x32xf32>
    %c0_74 = arith.constant 0 : index
    %c0_75 = arith.constant 0 : index
    %c0_76 = arith.constant 0 : index
    %138 = vector.load %arg23[%c0_74, %c0_75, %c0_76] : memref<2x32x96xf32, #tpu.memory_space<vmem>>, vector<1x32x96xf32>
    %139 = vector.shape_cast %138 : vector<1x32x96xf32> to vector<32x96xf32>
    %cst_77 = arith.constant dense<0.000000e+00> : vector<32x96xf32>
    %140 = tpu.matmul %87, %139, %cst_77 {dimension_numbers = #tpu.dot_dimension_numbers<[1], [0], [0], [1], [0, 0, 1, 1], [], []>} : vector<32x32xf32>, vector<32x96xf32>, vector<32x96xf32> -> vector<32x96xf32>
    %c0_78 = arith.constant 0 : index
    %c0_79 = arith.constant 0 : index
    %c0_80 = arith.constant 0 : index
    %141 = vector.load %arg24[%c0_78, %c0_79, %c0_80] : memref<2x1x96xf32, #tpu.memory_space<vmem>>, vector<1x1x96xf32>
    %142 = vector.shape_cast %141 : vector<1x1x96xf32> to vector<1x96xf32>
    %143 = vector.broadcast %142 : vector<1x96xf32> to vector<32x96xf32>
    %144 = arith.addf %140, %143 : vector<32x96xf32>
    %145 = vector.extract_strided_slice %144 {offsets = [0, 0], sizes = [32, 8], strides = [1, 1]} : vector<32x96xf32> to vector<32x8xf32>
    %146 = vector.extract_strided_slice %144 {offsets = [0, 32], sizes = [32, 8], strides = [1, 1]} : vector<32x96xf32> to vector<32x8xf32>
    %147 = vector.extract_strided_slice %144 {offsets = [0, 64], sizes = [32, 8], strides = [1, 1]} : vector<32x96xf32> to vector<32x8xf32>
    %cst_81 = arith.constant dense<0.000000e+00> : vector<32x32xf32>
    %148 = tpu.matmul %145, %146, %cst_81 {dimension_numbers = #tpu.dot_dimension_numbers<[1], [1], [0], [0], [0, 0, 1, 0], [], []>} : vector<32x8xf32>, vector<32x8xf32>, vector<32x32xf32> -> vector<32x32xf32>
    %149 = arith.addf %148, %44 : vector<32x32xf32>
    %cst_82 = arith.constant dense<0xFF800000> : vector<32xf32>
    %150 = vector.multi_reduction <maximumf>, %149, %cst_82 [1] : vector<32x32xf32> to vector<32xf32>
    %151 = vector.shape_cast %150 : vector<32xf32> to vector<32x1xf32>
    %152 = vector.broadcast %151 : vector<32x1xf32> to vector<32x32xf32>
    %153 = arith.subf %149, %152 : vector<32x32xf32>
    %154 = math.exp %153 : vector<32x32xf32>
    %cst_83 = arith.constant dense<0.000000e+00> : vector<32xf32>
    %155 = vector.multi_reduction <add>, %154, %cst_83 [1] : vector<32x32xf32> to vector<32xf32>
    %156 = vector.shape_cast %155 : vector<32xf32> to vector<32x1xf32>
    %157 = vector.broadcast %156 : vector<32x1xf32> to vector<32x32xf32>
    %158 = arith.divf %154, %157 : vector<32x32xf32>
    %cst_84 = arith.constant dense<0.000000e+00> : vector<32x8xf32>
    %159 = tpu.matmul %158, %147, %cst_84 {dimension_numbers = #tpu.dot_dimension_numbers<[1], [0], [0], [1], [0, 0, 1, 1], [], []>} : vector<32x32xf32>, vector<32x8xf32>, vector<32x8xf32> -> vector<32x8xf32>
    %160 = vector.extract_strided_slice %144 {offsets = [0, 8], sizes = [32, 8], strides = [1, 1]} : vector<32x96xf32> to vector<32x8xf32>
    %161 = vector.extract_strided_slice %144 {offsets = [0, 40], sizes = [32, 8], strides = [1, 1]} : vector<32x96xf32> to vector<32x8xf32>
    %162 = vector.extract_strided_slice %144 {offsets = [0, 72], sizes = [32, 8], strides = [1, 1]} : vector<32x96xf32> to vector<32x8xf32>
    %cst_85 = arith.constant dense<0.000000e+00> : vector<32x32xf32>
    %163 = tpu.matmul %160, %161, %cst_85 {dimension_numbers = #tpu.dot_dimension_numbers<[1], [1], [0], [0], [0, 0, 1, 0], [], []>} : vector<32x8xf32>, vector<32x8xf32>, vector<32x32xf32> -> vector<32x32xf32>
    %164 = arith.addf %163, %44 : vector<32x32xf32>
    %cst_86 = arith.constant dense<0xFF800000> : vector<32xf32>
    %165 = vector.multi_reduction <maximumf>, %164, %cst_86 [1] : vector<32x32xf32> to vector<32xf32>
    %166 = vector.shape_cast %165 : vector<32xf32> to vector<32x1xf32>
    %167 = vector.broadcast %166 : vector<32x1xf32> to vector<32x32xf32>
    %168 = arith.subf %164, %167 : vector<32x32xf32>
    %169 = math.exp %168 : vector<32x32xf32>
    %cst_87 = arith.constant dense<0.000000e+00> : vector<32xf32>
    %170 = vector.multi_reduction <add>, %169, %cst_87 [1] : vector<32x32xf32> to vector<32xf32>
    %171 = vector.shape_cast %170 : vector<32xf32> to vector<32x1xf32>
    %172 = vector.broadcast %171 : vector<32x1xf32> to vector<32x32xf32>
    %173 = arith.divf %169, %172 : vector<32x32xf32>
    %cst_88 = arith.constant dense<0.000000e+00> : vector<32x8xf32>
    %174 = tpu.matmul %173, %162, %cst_88 {dimension_numbers = #tpu.dot_dimension_numbers<[1], [0], [0], [1], [0, 0, 1, 1], [], []>} : vector<32x32xf32>, vector<32x8xf32>, vector<32x8xf32> -> vector<32x8xf32>
    %175 = vector.extract_strided_slice %144 {offsets = [0, 16], sizes = [32, 8], strides = [1, 1]} : vector<32x96xf32> to vector<32x8xf32>
    %176 = vector.extract_strided_slice %144 {offsets = [0, 48], sizes = [32, 8], strides = [1, 1]} : vector<32x96xf32> to vector<32x8xf32>
    %177 = vector.extract_strided_slice %144 {offsets = [0, 80], sizes = [32, 8], strides = [1, 1]} : vector<32x96xf32> to vector<32x8xf32>
    %cst_89 = arith.constant dense<0.000000e+00> : vector<32x32xf32>
    %178 = tpu.matmul %175, %176, %cst_89 {dimension_numbers = #tpu.dot_dimension_numbers<[1], [1], [0], [0], [0, 0, 1, 0], [], []>} : vector<32x8xf32>, vector<32x8xf32>, vector<32x32xf32> -> vector<32x32xf32>
    %179 = arith.addf %178, %44 : vector<32x32xf32>
    %cst_90 = arith.constant dense<0xFF800000> : vector<32xf32>
    %180 = vector.multi_reduction <maximumf>, %179, %cst_90 [1] : vector<32x32xf32> to vector<32xf32>
    %181 = vector.shape_cast %180 : vector<32xf32> to vector<32x1xf32>
    %182 = vector.broadcast %181 : vector<32x1xf32> to vector<32x32xf32>
    %183 = arith.subf %179, %182 : vector<32x32xf32>
    %184 = math.exp %183 : vector<32x32xf32>
    %cst_91 = arith.constant dense<0.000000e+00> : vector<32xf32>
    %185 = vector.multi_reduction <add>, %184, %cst_91 [1] : vector<32x32xf32> to vector<32xf32>
    %186 = vector.shape_cast %185 : vector<32xf32> to vector<32x1xf32>
    %187 = vector.broadcast %186 : vector<32x1xf32> to vector<32x32xf32>
    %188 = arith.divf %184, %187 : vector<32x32xf32>
    %cst_92 = arith.constant dense<0.000000e+00> : vector<32x8xf32>
    %189 = tpu.matmul %188, %177, %cst_92 {dimension_numbers = #tpu.dot_dimension_numbers<[1], [0], [0], [1], [0, 0, 1, 1], [], []>} : vector<32x32xf32>, vector<32x8xf32>, vector<32x8xf32> -> vector<32x8xf32>
    %190 = vector.extract_strided_slice %144 {offsets = [0, 24], sizes = [32, 8], strides = [1, 1]} : vector<32x96xf32> to vector<32x8xf32>
    %191 = vector.extract_strided_slice %144 {offsets = [0, 56], sizes = [32, 8], strides = [1, 1]} : vector<32x96xf32> to vector<32x8xf32>
    %192 = vector.extract_strided_slice %144 {offsets = [0, 88], sizes = [32, 8], strides = [1, 1]} : vector<32x96xf32> to vector<32x8xf32>
    %cst_93 = arith.constant dense<0.000000e+00> : vector<32x32xf32>
    %193 = tpu.matmul %190, %191, %cst_93 {dimension_numbers = #tpu.dot_dimension_numbers<[1], [1], [0], [0], [0, 0, 1, 0], [], []>} : vector<32x8xf32>, vector<32x8xf32>, vector<32x32xf32> -> vector<32x32xf32>
    %194 = arith.addf %193, %44 : vector<32x32xf32>
    %cst_94 = arith.constant dense<0xFF800000> : vector<32xf32>
    %195 = vector.multi_reduction <maximumf>, %194, %cst_94 [1] : vector<32x32xf32> to vector<32xf32>
    %196 = vector.shape_cast %195 : vector<32xf32> to vector<32x1xf32>
    %197 = vector.broadcast %196 : vector<32x1xf32> to vector<32x32xf32>
    %198 = arith.subf %194, %197 : vector<32x32xf32>
    %199 = math.exp %198 : vector<32x32xf32>
    %cst_95 = arith.constant dense<0.000000e+00> : vector<32xf32>
    %200 = vector.multi_reduction <add>, %199, %cst_95 [1] : vector<32x32xf32> to vector<32xf32>
    %201 = vector.shape_cast %200 : vector<32xf32> to vector<32x1xf32>
    %202 = vector.broadcast %201 : vector<32x1xf32> to vector<32x32xf32>
    %203 = arith.divf %199, %202 : vector<32x32xf32>
    %cst_96 = arith.constant dense<0.000000e+00> : vector<32x8xf32>
    %204 = tpu.matmul %203, %192, %cst_96 {dimension_numbers = #tpu.dot_dimension_numbers<[1], [0], [0], [1], [0, 0, 1, 1], [], []>} : vector<32x32xf32>, vector<32x8xf32>, vector<32x8xf32> -> vector<32x8xf32>
    %205 = tpu.concatenate %159, %174, %189, %204 in 1 : vector<32x8xf32>, vector<32x8xf32>, vector<32x8xf32>, vector<32x8xf32> -> vector<32x32xf32>
    %c0_97 = arith.constant 0 : index
    %c0_98 = arith.constant 0 : index
    %c0_99 = arith.constant 0 : index
    %206 = vector.load %arg25[%c0_97, %c0_98, %c0_99] : memref<2x32x32xf32, #tpu.memory_space<vmem>>, vector<1x32x32xf32>
    %207 = vector.shape_cast %206 : vector<1x32x32xf32> to vector<32x32xf32>
    %cst_100 = arith.constant dense<0.000000e+00> : vector<32x32xf32>
    %208 = tpu.matmul %205, %207, %cst_100 {dimension_numbers = #tpu.dot_dimension_numbers<[1], [0], [0], [1], [0, 0, 1, 1], [], []>} : vector<32x32xf32>, vector<32x32xf32>, vector<32x32xf32> -> vector<32x32xf32>
    %c0_101 = arith.constant 0 : index
    %c0_102 = arith.constant 0 : index
    %c0_103 = arith.constant 0 : index
    %209 = vector.load %arg26[%c0_101, %c0_102, %c0_103] : memref<2x1x32xf32, #tpu.memory_space<vmem>>, vector<1x1x32xf32>
    %210 = vector.shape_cast %209 : vector<1x1x32xf32> to vector<1x32xf32>
    %211 = vector.broadcast %210 : vector<1x32xf32> to vector<32x32xf32>
    %212 = arith.addf %208, %211 : vector<32x32xf32>
    %cst_104 = arith.constant dense<0.000000e+00> : vector<24x32xf32>
    %213 = tpu.matmul %23, %212, %cst_104 {dimension_numbers = #tpu.dot_dimension_numbers<[1], [0], [0], [1], [0, 0, 1, 1], [], []>} : vector<24x32xf32>, vector<32x32xf32>, vector<24x32xf32> -> vector<24x32xf32>
    %214 = arith.addf %213, %78 : vector<24x32xf32>
    %c0_105 = arith.constant 0 : index
    %c0_106 = arith.constant 0 : index
    %c0_107 = arith.constant 0 : index
    %215 = vector.load %arg27[%c0_105, %c0_106, %c0_107] : memref<2x1x32xf32, #tpu.memory_space<vmem>>, vector<1x1x32xf32>
    %216 = vector.shape_cast %215 : vector<1x1x32xf32> to vector<1x32xf32>
    %c0_108 = arith.constant 0 : index
    %c0_109 = arith.constant 0 : index
    %c0_110 = arith.constant 0 : index
    %217 = vector.load %arg28[%c0_108, %c0_109, %c0_110] : memref<2x1x32xf32, #tpu.memory_space<vmem>>, vector<1x1x32xf32>
    %218 = vector.shape_cast %217 : vector<1x1x32xf32> to vector<1x32xf32>
    %cst_111 = arith.constant dense<0.000000e+00> : vector<32xf32>
    %219 = vector.multi_reduction <add>, %214, %cst_111 [0] : vector<24x32xf32> to vector<32xf32>
    %220 = vector.shape_cast %219 : vector<32xf32> to vector<1x32xf32>
    %cst_112 = arith.constant 2.400000e+01 : f32
    %221 = vector.broadcast %cst_112 : f32 to vector<1x32xf32>
    %222 = arith.divf %220, %221 : vector<1x32xf32>
    %223 = vector.broadcast %222 : vector<1x32xf32> to vector<24x32xf32>
    %224 = arith.subf %214, %223 : vector<24x32xf32>
    %225 = arith.mulf %224, %224 : vector<24x32xf32>
    %cst_113 = arith.constant dense<0.000000e+00> : vector<32xf32>
    %226 = vector.multi_reduction <add>, %225, %cst_113 [0] : vector<24x32xf32> to vector<32xf32>
    %227 = vector.shape_cast %226 : vector<32xf32> to vector<1x32xf32>
    %cst_114 = arith.constant 2.400000e+01 : f32
    %228 = vector.broadcast %cst_114 : f32 to vector<1x32xf32>
    %229 = arith.divf %227, %228 : vector<1x32xf32>
    %230 = vector.broadcast %222 : vector<1x32xf32> to vector<24x32xf32>
    %231 = arith.subf %214, %230 : vector<24x32xf32>
    %cst_115 = arith.constant 9.99999974E-6 : f32
    %232 = vector.broadcast %cst_115 : f32 to vector<1x32xf32>
    %233 = arith.addf %229, %232 : vector<1x32xf32>
    %234 = math.rsqrt %233 : vector<1x32xf32>
    %235 = vector.broadcast %234 : vector<1x32xf32> to vector<24x32xf32>
    %236 = arith.mulf %231, %235 : vector<24x32xf32>
    %237 = vector.broadcast %216 : vector<1x32xf32> to vector<24x32xf32>
    %238 = arith.mulf %236, %237 : vector<24x32xf32>
    %239 = vector.broadcast %218 : vector<1x32xf32> to vector<24x32xf32>
    %240 = arith.addf %238, %239 : vector<24x32xf32>
    %241 = arith.addf %137, %240 : vector<24x32xf32>
    %c0_116 = arith.constant 0 : index
    %c0_117 = arith.constant 0 : index
    %c0_118 = arith.constant 0 : index
    %242 = vector.load %arg29[%c0_116, %c0_117, %c0_118] : memref<2x32x64xf32, #tpu.memory_space<vmem>>, vector<1x32x64xf32>
    %243 = vector.shape_cast %242 : vector<1x32x64xf32> to vector<32x64xf32>
    %cst_119 = arith.constant dense<0.000000e+00> : vector<24x64xf32>
    %244 = tpu.matmul %241, %243, %cst_119 {dimension_numbers = #tpu.dot_dimension_numbers<[1], [0], [0], [1], [0, 0, 1, 1], [], []>} : vector<24x32xf32>, vector<32x64xf32>, vector<24x64xf32> -> vector<24x64xf32>
    %c0_120 = arith.constant 0 : index
    %c0_121 = arith.constant 0 : index
    %c0_122 = arith.constant 0 : index
    %245 = vector.load %arg30[%c0_120, %c0_121, %c0_122] : memref<2x1x64xf32, #tpu.memory_space<vmem>>, vector<1x1x64xf32>
    %246 = vector.shape_cast %245 : vector<1x1x64xf32> to vector<1x64xf32>
    %247 = vector.broadcast %246 : vector<1x64xf32> to vector<24x64xf32>
    %248 = arith.addf %244, %247 : vector<24x64xf32>
    %cst_123 = arith.constant 0.000000e+00 : f32
    %249 = vector.broadcast %cst_123 : f32 to vector<24x64xf32>
    %250 = arith.maximumf %248, %249 : vector<24x64xf32>
    %c0_124 = arith.constant 0 : index
    %c0_125 = arith.constant 0 : index
    %c0_126 = arith.constant 0 : index
    %251 = vector.load %arg31[%c0_124, %c0_125, %c0_126] : memref<2x64x32xf32, #tpu.memory_space<vmem>>, vector<1x64x32xf32>
    %252 = vector.shape_cast %251 : vector<1x64x32xf32> to vector<64x32xf32>
    %cst_127 = arith.constant dense<0.000000e+00> : vector<24x32xf32>
    %253 = tpu.matmul %250, %252, %cst_127 {dimension_numbers = #tpu.dot_dimension_numbers<[1], [0], [0], [1], [0, 0, 1, 1], [], []>} : vector<24x64xf32>, vector<64x32xf32>, vector<24x32xf32> -> vector<24x32xf32>
    %c0_128 = arith.constant 0 : index
    %c0_129 = arith.constant 0 : index
    %c0_130 = arith.constant 0 : index
    %254 = vector.load %arg32[%c0_128, %c0_129, %c0_130] : memref<2x1x32xf32, #tpu.memory_space<vmem>>, vector<1x1x32xf32>
    %255 = vector.shape_cast %254 : vector<1x1x32xf32> to vector<1x32xf32>
    %256 = vector.broadcast %255 : vector<1x32xf32> to vector<24x32xf32>
    %257 = arith.addf %253, %256 : vector<24x32xf32>
    %258 = arith.addf %241, %257 : vector<24x32xf32>
    %c0_131 = arith.constant 0 : index
    %c0_132 = arith.constant 0 : index
    %c0_133 = arith.constant 0 : index
    %259 = vector.load %arg33[%c0_131, %c0_132, %c0_133] : memref<2x1x32xf32, #tpu.memory_space<vmem>>, vector<1x1x32xf32>
    %260 = vector.shape_cast %259 : vector<1x1x32xf32> to vector<1x32xf32>
    %c0_134 = arith.constant 0 : index
    %c0_135 = arith.constant 0 : index
    %c0_136 = arith.constant 0 : index
    %261 = vector.load %arg34[%c0_134, %c0_135, %c0_136] : memref<2x1x32xf32, #tpu.memory_space<vmem>>, vector<1x1x32xf32>
    %262 = vector.shape_cast %261 : vector<1x1x32xf32> to vector<1x32xf32>
    %cst_137 = arith.constant dense<0.000000e+00> : vector<32xf32>
    %263 = vector.multi_reduction <add>, %258, %cst_137 [0] : vector<24x32xf32> to vector<32xf32>
    %264 = vector.shape_cast %263 : vector<32xf32> to vector<1x32xf32>
    %cst_138 = arith.constant 2.400000e+01 : f32
    %265 = vector.broadcast %cst_138 : f32 to vector<1x32xf32>
    %266 = arith.divf %264, %265 : vector<1x32xf32>
    %267 = vector.broadcast %266 : vector<1x32xf32> to vector<24x32xf32>
    %268 = arith.subf %258, %267 : vector<24x32xf32>
    %269 = arith.mulf %268, %268 : vector<24x32xf32>
    %cst_139 = arith.constant dense<0.000000e+00> : vector<32xf32>
    %270 = vector.multi_reduction <add>, %269, %cst_139 [0] : vector<24x32xf32> to vector<32xf32>
    %271 = vector.shape_cast %270 : vector<32xf32> to vector<1x32xf32>
    %cst_140 = arith.constant 2.400000e+01 : f32
    %272 = vector.broadcast %cst_140 : f32 to vector<1x32xf32>
    %273 = arith.divf %271, %272 : vector<1x32xf32>
    %274 = vector.broadcast %266 : vector<1x32xf32> to vector<24x32xf32>
    %275 = arith.subf %258, %274 : vector<24x32xf32>
    %cst_141 = arith.constant 9.99999974E-6 : f32
    %276 = vector.broadcast %cst_141 : f32 to vector<1x32xf32>
    %277 = arith.addf %273, %276 : vector<1x32xf32>
    %278 = math.rsqrt %277 : vector<1x32xf32>
    %279 = vector.broadcast %278 : vector<1x32xf32> to vector<24x32xf32>
    %280 = arith.mulf %275, %279 : vector<24x32xf32>
    %281 = vector.broadcast %260 : vector<1x32xf32> to vector<24x32xf32>
    %282 = arith.mulf %280, %281 : vector<24x32xf32>
    %283 = vector.broadcast %262 : vector<1x32xf32> to vector<24x32xf32>
    %284 = arith.addf %282, %283 : vector<24x32xf32>
    %cst_142 = arith.constant dense<0.000000e+00> : vector<80x32xf32>
    %285 = tpu.matmul %30, %284, %cst_142 {dimension_numbers = #tpu.dot_dimension_numbers<[1], [0], [0], [1], [0, 0, 1, 1], [], []>} : vector<80x24xf32>, vector<24x32xf32>, vector<80x32xf32> -> vector<80x32xf32>
    %286 = vector.extract_strided_slice %285 {offsets = [0, 0], sizes = [48, 32], strides = [1, 1]} : vector<80x32xf32> to vector<48x32xf32>
    %287 = vector.extract_strided_slice %285 {offsets = [48, 0], sizes = [32, 32], strides = [1, 1]} : vector<80x32xf32> to vector<32x32xf32>
    %288 = arith.addf %286, %84 : vector<48x32xf32>
    %cst_143 = arith.constant 0.000000e+00 : f32
    %289 = vector.broadcast %cst_143 : f32 to vector<48x32xf32>
    %290 = arith.maximumf %288, %289 : vector<48x32xf32>
    %cst_144 = arith.constant dense<0.000000e+00> : vector<24x32xf32>
    %291 = tpu.matmul %11, %290, %cst_144 {dimension_numbers = #tpu.dot_dimension_numbers<[1], [0], [0], [1], [0, 0, 1, 1], [], []>} : vector<24x48xf32>, vector<48x32xf32>, vector<24x32xf32> -> vector<24x32xf32>
    %cst_145 = arith.constant 1.000000e+00 : f32
    %292 = vector.broadcast %cst_145 : f32 to vector<24x32xf32>
    %293 = arith.mulf %292, %284 : vector<24x32xf32>
    %294 = arith.addf %293, %291 : vector<24x32xf32>
    %c1 = arith.constant 1 : index
    %c0_146 = arith.constant 0 : index
    %c0_147 = arith.constant 0 : index
    %295 = vector.load %arg17[%c1, %c0_146, %c0_147] : memref<2x32x32xf32, #tpu.memory_space<vmem>>, vector<1x32x32xf32>
    %296 = vector.shape_cast %295 : vector<1x32x32xf32> to vector<32x32xf32>
    %cst_148 = arith.constant dense<0.000000e+00> : vector<24x32xf32>
    %297 = tpu.matmul %294, %296, %cst_148 {dimension_numbers = #tpu.dot_dimension_numbers<[1], [0], [0], [1], [0, 0, 1, 1], [], []>} : vector<24x32xf32>, vector<32x32xf32>, vector<24x32xf32> -> vector<24x32xf32>
    %c1_149 = arith.constant 1 : index
    %c0_150 = arith.constant 0 : index
    %c0_151 = arith.constant 0 : index
    %298 = vector.load %arg18[%c1_149, %c0_150, %c0_151] : memref<2x1x32xf32, #tpu.memory_space<vmem>>, vector<1x1x32xf32>
    %299 = vector.shape_cast %298 : vector<1x1x32xf32> to vector<1x32xf32>
    %300 = vector.broadcast %299 : vector<1x32xf32> to vector<24x32xf32>
    %301 = arith.addf %297, %300 : vector<24x32xf32>
    %cst_152 = arith.constant 0.000000e+00 : f32
    %302 = vector.broadcast %cst_152 : f32 to vector<24x32xf32>
    %303 = arith.maximumf %301, %302 : vector<24x32xf32>
    %c1_153 = arith.constant 1 : index
    %c0_154 = arith.constant 0 : index
    %c0_155 = arith.constant 0 : index
    %304 = vector.load %arg19[%c1_153, %c0_154, %c0_155] : memref<2x32x32xf32, #tpu.memory_space<vmem>>, vector<1x32x32xf32>
    %305 = vector.shape_cast %304 : vector<1x32x32xf32> to vector<32x32xf32>
    %cst_156 = arith.constant dense<0.000000e+00> : vector<24x32xf32>
    %306 = tpu.matmul %303, %305, %cst_156 {dimension_numbers = #tpu.dot_dimension_numbers<[1], [0], [0], [1], [0, 0, 1, 1], [], []>} : vector<24x32xf32>, vector<32x32xf32>, vector<24x32xf32> -> vector<24x32xf32>
    %c1_157 = arith.constant 1 : index
    %c0_158 = arith.constant 0 : index
    %c0_159 = arith.constant 0 : index
    %307 = vector.load %arg20[%c1_157, %c0_158, %c0_159] : memref<2x1x32xf32, #tpu.memory_space<vmem>>, vector<1x1x32xf32>
    %308 = vector.shape_cast %307 : vector<1x1x32xf32> to vector<1x32xf32>
    %309 = vector.broadcast %308 : vector<1x32xf32> to vector<24x32xf32>
    %310 = arith.addf %306, %309 : vector<24x32xf32>
    %311 = arith.addf %310, %284 : vector<24x32xf32>
    %c1_160 = arith.constant 1 : index
    %c0_161 = arith.constant 0 : index
    %c0_162 = arith.constant 0 : index
    %312 = vector.load %arg21[%c1_160, %c0_161, %c0_162] : memref<2x1x32xf32, #tpu.memory_space<vmem>>, vector<1x1x32xf32>
    %313 = vector.shape_cast %312 : vector<1x1x32xf32> to vector<1x32xf32>
    %c1_163 = arith.constant 1 : index
    %c0_164 = arith.constant 0 : index
    %c0_165 = arith.constant 0 : index
    %314 = vector.load %arg22[%c1_163, %c0_164, %c0_165] : memref<2x1x32xf32, #tpu.memory_space<vmem>>, vector<1x1x32xf32>
    %315 = vector.shape_cast %314 : vector<1x1x32xf32> to vector<1x32xf32>
    %cst_166 = arith.constant dense<0.000000e+00> : vector<32xf32>
    %316 = vector.multi_reduction <add>, %311, %cst_166 [0] : vector<24x32xf32> to vector<32xf32>
    %317 = vector.shape_cast %316 : vector<32xf32> to vector<1x32xf32>
    %cst_167 = arith.constant 2.400000e+01 : f32
    %318 = vector.broadcast %cst_167 : f32 to vector<1x32xf32>
    %319 = arith.divf %317, %318 : vector<1x32xf32>
    %320 = vector.broadcast %319 : vector<1x32xf32> to vector<24x32xf32>
    %321 = arith.subf %311, %320 : vector<24x32xf32>
    %322 = arith.mulf %321, %321 : vector<24x32xf32>
    %cst_168 = arith.constant dense<0.000000e+00> : vector<32xf32>
    %323 = vector.multi_reduction <add>, %322, %cst_168 [0] : vector<24x32xf32> to vector<32xf32>
    %324 = vector.shape_cast %323 : vector<32xf32> to vector<1x32xf32>
    %cst_169 = arith.constant 2.400000e+01 : f32
    %325 = vector.broadcast %cst_169 : f32 to vector<1x32xf32>
    %326 = arith.divf %324, %325 : vector<1x32xf32>
    %327 = vector.broadcast %319 : vector<1x32xf32> to vector<24x32xf32>
    %328 = arith.subf %311, %327 : vector<24x32xf32>
    %cst_170 = arith.constant 9.99999974E-6 : f32
    %329 = vector.broadcast %cst_170 : f32 to vector<1x32xf32>
    %330 = arith.addf %326, %329 : vector<1x32xf32>
    %331 = math.rsqrt %330 : vector<1x32xf32>
    %332 = vector.broadcast %331 : vector<1x32xf32> to vector<24x32xf32>
    %333 = arith.mulf %328, %332 : vector<24x32xf32>
    %334 = vector.broadcast %313 : vector<1x32xf32> to vector<24x32xf32>
    %335 = arith.mulf %333, %334 : vector<24x32xf32>
    %336 = vector.broadcast %315 : vector<1x32xf32> to vector<24x32xf32>
    %337 = arith.addf %335, %336 : vector<24x32xf32>
    %c1_171 = arith.constant 1 : index
    %c0_172 = arith.constant 0 : index
    %c0_173 = arith.constant 0 : index
    %338 = vector.load %arg23[%c1_171, %c0_172, %c0_173] : memref<2x32x96xf32, #tpu.memory_space<vmem>>, vector<1x32x96xf32>
    %339 = vector.shape_cast %338 : vector<1x32x96xf32> to vector<32x96xf32>
    %cst_174 = arith.constant dense<0.000000e+00> : vector<32x96xf32>
    %340 = tpu.matmul %287, %339, %cst_174 {dimension_numbers = #tpu.dot_dimension_numbers<[1], [0], [0], [1], [0, 0, 1, 1], [], []>} : vector<32x32xf32>, vector<32x96xf32>, vector<32x96xf32> -> vector<32x96xf32>
    %c1_175 = arith.constant 1 : index
    %c0_176 = arith.constant 0 : index
    %c0_177 = arith.constant 0 : index
    %341 = vector.load %arg24[%c1_175, %c0_176, %c0_177] : memref<2x1x96xf32, #tpu.memory_space<vmem>>, vector<1x1x96xf32>
    %342 = vector.shape_cast %341 : vector<1x1x96xf32> to vector<1x96xf32>
    %343 = vector.broadcast %342 : vector<1x96xf32> to vector<32x96xf32>
    %344 = arith.addf %340, %343 : vector<32x96xf32>
    %345 = vector.extract_strided_slice %344 {offsets = [0, 0], sizes = [32, 8], strides = [1, 1]} : vector<32x96xf32> to vector<32x8xf32>
    %346 = vector.extract_strided_slice %344 {offsets = [0, 32], sizes = [32, 8], strides = [1, 1]} : vector<32x96xf32> to vector<32x8xf32>
    %347 = vector.extract_strided_slice %344 {offsets = [0, 64], sizes = [32, 8], strides = [1, 1]} : vector<32x96xf32> to vector<32x8xf32>
    %cst_178 = arith.constant dense<0.000000e+00> : vector<32x32xf32>
    %348 = tpu.matmul %345, %346, %cst_178 {dimension_numbers = #tpu.dot_dimension_numbers<[1], [1], [0], [0], [0, 0, 1, 0], [], []>} : vector<32x8xf32>, vector<32x8xf32>, vector<32x32xf32> -> vector<32x32xf32>
    %349 = arith.addf %348, %44 : vector<32x32xf32>
    %cst_179 = arith.constant dense<0xFF800000> : vector<32xf32>
    %350 = vector.multi_reduction <maximumf>, %349, %cst_179 [1] : vector<32x32xf32> to vector<32xf32>
    %351 = vector.shape_cast %350 : vector<32xf32> to vector<32x1xf32>
    %352 = vector.broadcast %351 : vector<32x1xf32> to vector<32x32xf32>
    %353 = arith.subf %349, %352 : vector<32x32xf32>
    %354 = math.exp %353 : vector<32x32xf32>
    %cst_180 = arith.constant dense<0.000000e+00> : vector<32xf32>
    %355 = vector.multi_reduction <add>, %354, %cst_180 [1] : vector<32x32xf32> to vector<32xf32>
    %356 = vector.shape_cast %355 : vector<32xf32> to vector<32x1xf32>
    %357 = vector.broadcast %356 : vector<32x1xf32> to vector<32x32xf32>
    %358 = arith.divf %354, %357 : vector<32x32xf32>
    %cst_181 = arith.constant dense<0.000000e+00> : vector<32x8xf32>
    %359 = tpu.matmul %358, %347, %cst_181 {dimension_numbers = #tpu.dot_dimension_numbers<[1], [0], [0], [1], [0, 0, 1, 1], [], []>} : vector<32x32xf32>, vector<32x8xf32>, vector<32x8xf32> -> vector<32x8xf32>
    %360 = vector.extract_strided_slice %344 {offsets = [0, 8], sizes = [32, 8], strides = [1, 1]} : vector<32x96xf32> to vector<32x8xf32>
    %361 = vector.extract_strided_slice %344 {offsets = [0, 40], sizes = [32, 8], strides = [1, 1]} : vector<32x96xf32> to vector<32x8xf32>
    %362 = vector.extract_strided_slice %344 {offsets = [0, 72], sizes = [32, 8], strides = [1, 1]} : vector<32x96xf32> to vector<32x8xf32>
    %cst_182 = arith.constant dense<0.000000e+00> : vector<32x32xf32>
    %363 = tpu.matmul %360, %361, %cst_182 {dimension_numbers = #tpu.dot_dimension_numbers<[1], [1], [0], [0], [0, 0, 1, 0], [], []>} : vector<32x8xf32>, vector<32x8xf32>, vector<32x32xf32> -> vector<32x32xf32>
    %364 = arith.addf %363, %44 : vector<32x32xf32>
    %cst_183 = arith.constant dense<0xFF800000> : vector<32xf32>
    %365 = vector.multi_reduction <maximumf>, %364, %cst_183 [1] : vector<32x32xf32> to vector<32xf32>
    %366 = vector.shape_cast %365 : vector<32xf32> to vector<32x1xf32>
    %367 = vector.broadcast %366 : vector<32x1xf32> to vector<32x32xf32>
    %368 = arith.subf %364, %367 : vector<32x32xf32>
    %369 = math.exp %368 : vector<32x32xf32>
    %cst_184 = arith.constant dense<0.000000e+00> : vector<32xf32>
    %370 = vector.multi_reduction <add>, %369, %cst_184 [1] : vector<32x32xf32> to vector<32xf32>
    %371 = vector.shape_cast %370 : vector<32xf32> to vector<32x1xf32>
    %372 = vector.broadcast %371 : vector<32x1xf32> to vector<32x32xf32>
    %373 = arith.divf %369, %372 : vector<32x32xf32>
    %cst_185 = arith.constant dense<0.000000e+00> : vector<32x8xf32>
    %374 = tpu.matmul %373, %362, %cst_185 {dimension_numbers = #tpu.dot_dimension_numbers<[1], [0], [0], [1], [0, 0, 1, 1], [], []>} : vector<32x32xf32>, vector<32x8xf32>, vector<32x8xf32> -> vector<32x8xf32>
    %375 = vector.extract_strided_slice %344 {offsets = [0, 16], sizes = [32, 8], strides = [1, 1]} : vector<32x96xf32> to vector<32x8xf32>
    %376 = vector.extract_strided_slice %344 {offsets = [0, 48], sizes = [32, 8], strides = [1, 1]} : vector<32x96xf32> to vector<32x8xf32>
    %377 = vector.extract_strided_slice %344 {offsets = [0, 80], sizes = [32, 8], strides = [1, 1]} : vector<32x96xf32> to vector<32x8xf32>
    %cst_186 = arith.constant dense<0.000000e+00> : vector<32x32xf32>
    %378 = tpu.matmul %375, %376, %cst_186 {dimension_numbers = #tpu.dot_dimension_numbers<[1], [1], [0], [0], [0, 0, 1, 0], [], []>} : vector<32x8xf32>, vector<32x8xf32>, vector<32x32xf32> -> vector<32x32xf32>
    %379 = arith.addf %378, %44 : vector<32x32xf32>
    %cst_187 = arith.constant dense<0xFF800000> : vector<32xf32>
    %380 = vector.multi_reduction <maximumf>, %379, %cst_187 [1] : vector<32x32xf32> to vector<32xf32>
    %381 = vector.shape_cast %380 : vector<32xf32> to vector<32x1xf32>
    %382 = vector.broadcast %381 : vector<32x1xf32> to vector<32x32xf32>
    %383 = arith.subf %379, %382 : vector<32x32xf32>
    %384 = math.exp %383 : vector<32x32xf32>
    %cst_188 = arith.constant dense<0.000000e+00> : vector<32xf32>
    %385 = vector.multi_reduction <add>, %384, %cst_188 [1] : vector<32x32xf32> to vector<32xf32>
    %386 = vector.shape_cast %385 : vector<32xf32> to vector<32x1xf32>
    %387 = vector.broadcast %386 : vector<32x1xf32> to vector<32x32xf32>
    %388 = arith.divf %384, %387 : vector<32x32xf32>
    %cst_189 = arith.constant dense<0.000000e+00> : vector<32x8xf32>
    %389 = tpu.matmul %388, %377, %cst_189 {dimension_numbers = #tpu.dot_dimension_numbers<[1], [0], [0], [1], [0, 0, 1, 1], [], []>} : vector<32x32xf32>, vector<32x8xf32>, vector<32x8xf32> -> vector<32x8xf32>
    %390 = vector.extract_strided_slice %344 {offsets = [0, 24], sizes = [32, 8], strides = [1, 1]} : vector<32x96xf32> to vector<32x8xf32>
    %391 = vector.extract_strided_slice %344 {offsets = [0, 56], sizes = [32, 8], strides = [1, 1]} : vector<32x96xf32> to vector<32x8xf32>
    %392 = vector.extract_strided_slice %344 {offsets = [0, 88], sizes = [32, 8], strides = [1, 1]} : vector<32x96xf32> to vector<32x8xf32>
    %cst_190 = arith.constant dense<0.000000e+00> : vector<32x32xf32>
    %393 = tpu.matmul %390, %391, %cst_190 {dimension_numbers = #tpu.dot_dimension_numbers<[1], [1], [0], [0], [0, 0, 1, 0], [], []>} : vector<32x8xf32>, vector<32x8xf32>, vector<32x32xf32> -> vector<32x32xf32>
    %394 = arith.addf %393, %44 : vector<32x32xf32>
    %cst_191 = arith.constant dense<0xFF800000> : vector<32xf32>
    %395 = vector.multi_reduction <maximumf>, %394, %cst_191 [1] : vector<32x32xf32> to vector<32xf32>
    %396 = vector.shape_cast %395 : vector<32xf32> to vector<32x1xf32>
    %397 = vector.broadcast %396 : vector<32x1xf32> to vector<32x32xf32>
    %398 = arith.subf %394, %397 : vector<32x32xf32>
    %399 = math.exp %398 : vector<32x32xf32>
    %cst_192 = arith.constant dense<0.000000e+00> : vector<32xf32>
    %400 = vector.multi_reduction <add>, %399, %cst_192 [1] : vector<32x32xf32> to vector<32xf32>
    %401 = vector.shape_cast %400 : vector<32xf32> to vector<32x1xf32>
    %402 = vector.broadcast %401 : vector<32x1xf32> to vector<32x32xf32>
    %403 = arith.divf %399, %402 : vector<32x32xf32>
    %cst_193 = arith.constant dense<0.000000e+00> : vector<32x8xf32>
    %404 = tpu.matmul %403, %392, %cst_193 {dimension_numbers = #tpu.dot_dimension_numbers<[1], [0], [0], [1], [0, 0, 1, 1], [], []>} : vector<32x32xf32>, vector<32x8xf32>, vector<32x8xf32> -> vector<32x8xf32>
    %405 = tpu.concatenate %359, %374, %389, %404 in 1 : vector<32x8xf32>, vector<32x8xf32>, vector<32x8xf32>, vector<32x8xf32> -> vector<32x32xf32>
    %c1_194 = arith.constant 1 : index
    %c0_195 = arith.constant 0 : index
    %c0_196 = arith.constant 0 : index
    %406 = vector.load %arg25[%c1_194, %c0_195, %c0_196] : memref<2x32x32xf32, #tpu.memory_space<vmem>>, vector<1x32x32xf32>
    %407 = vector.shape_cast %406 : vector<1x32x32xf32> to vector<32x32xf32>
    %cst_197 = arith.constant dense<0.000000e+00> : vector<32x32xf32>
    %408 = tpu.matmul %405, %407, %cst_197 {dimension_numbers = #tpu.dot_dimension_numbers<[1], [0], [0], [1], [0, 0, 1, 1], [], []>} : vector<32x32xf32>, vector<32x32xf32>, vector<32x32xf32> -> vector<32x32xf32>
    %c1_198 = arith.constant 1 : index
    %c0_199 = arith.constant 0 : index
    %c0_200 = arith.constant 0 : index
    %409 = vector.load %arg26[%c1_198, %c0_199, %c0_200] : memref<2x1x32xf32, #tpu.memory_space<vmem>>, vector<1x1x32xf32>
    %410 = vector.shape_cast %409 : vector<1x1x32xf32> to vector<1x32xf32>
    %411 = vector.broadcast %410 : vector<1x32xf32> to vector<32x32xf32>
    %412 = arith.addf %408, %411 : vector<32x32xf32>
    %cst_201 = arith.constant dense<0.000000e+00> : vector<24x32xf32>
    %413 = tpu.matmul %23, %412, %cst_201 {dimension_numbers = #tpu.dot_dimension_numbers<[1], [0], [0], [1], [0, 0, 1, 1], [], []>} : vector<24x32xf32>, vector<32x32xf32>, vector<24x32xf32> -> vector<24x32xf32>
    %414 = arith.addf %413, %284 : vector<24x32xf32>
    %c1_202 = arith.constant 1 : index
    %c0_203 = arith.constant 0 : index
    %c0_204 = arith.constant 0 : index
    %415 = vector.load %arg27[%c1_202, %c0_203, %c0_204] : memref<2x1x32xf32, #tpu.memory_space<vmem>>, vector<1x1x32xf32>
    %416 = vector.shape_cast %415 : vector<1x1x32xf32> to vector<1x32xf32>
    %c1_205 = arith.constant 1 : index
    %c0_206 = arith.constant 0 : index
    %c0_207 = arith.constant 0 : index
    %417 = vector.load %arg28[%c1_205, %c0_206, %c0_207] : memref<2x1x32xf32, #tpu.memory_space<vmem>>, vector<1x1x32xf32>
    %418 = vector.shape_cast %417 : vector<1x1x32xf32> to vector<1x32xf32>
    %cst_208 = arith.constant dense<0.000000e+00> : vector<32xf32>
    %419 = vector.multi_reduction <add>, %414, %cst_208 [0] : vector<24x32xf32> to vector<32xf32>
    %420 = vector.shape_cast %419 : vector<32xf32> to vector<1x32xf32>
    %cst_209 = arith.constant 2.400000e+01 : f32
    %421 = vector.broadcast %cst_209 : f32 to vector<1x32xf32>
    %422 = arith.divf %420, %421 : vector<1x32xf32>
    %423 = vector.broadcast %422 : vector<1x32xf32> to vector<24x32xf32>
    %424 = arith.subf %414, %423 : vector<24x32xf32>
    %425 = arith.mulf %424, %424 : vector<24x32xf32>
    %cst_210 = arith.constant dense<0.000000e+00> : vector<32xf32>
    %426 = vector.multi_reduction <add>, %425, %cst_210 [0] : vector<24x32xf32> to vector<32xf32>
    %427 = vector.shape_cast %426 : vector<32xf32> to vector<1x32xf32>
    %cst_211 = arith.constant 2.400000e+01 : f32
    %428 = vector.broadcast %cst_211 : f32 to vector<1x32xf32>
    %429 = arith.divf %427, %428 : vector<1x32xf32>
    %430 = vector.broadcast %422 : vector<1x32xf32> to vector<24x32xf32>
    %431 = arith.subf %414, %430 : vector<24x32xf32>
    %cst_212 = arith.constant 9.99999974E-6 : f32
    %432 = vector.broadcast %cst_212 : f32 to vector<1x32xf32>
    %433 = arith.addf %429, %432 : vector<1x32xf32>
    %434 = math.rsqrt %433 : vector<1x32xf32>
    %435 = vector.broadcast %434 : vector<1x32xf32> to vector<24x32xf32>
    %436 = arith.mulf %431, %435 : vector<24x32xf32>
    %437 = vector.broadcast %416 : vector<1x32xf32> to vector<24x32xf32>
    %438 = arith.mulf %436, %437 : vector<24x32xf32>
    %439 = vector.broadcast %418 : vector<1x32xf32> to vector<24x32xf32>
    %440 = arith.addf %438, %439 : vector<24x32xf32>
    %441 = arith.addf %337, %440 : vector<24x32xf32>
    %c1_213 = arith.constant 1 : index
    %c0_214 = arith.constant 0 : index
    %c0_215 = arith.constant 0 : index
    %442 = vector.load %arg29[%c1_213, %c0_214, %c0_215] : memref<2x32x64xf32, #tpu.memory_space<vmem>>, vector<1x32x64xf32>
    %443 = vector.shape_cast %442 : vector<1x32x64xf32> to vector<32x64xf32>
    %cst_216 = arith.constant dense<0.000000e+00> : vector<24x64xf32>
    %444 = tpu.matmul %441, %443, %cst_216 {dimension_numbers = #tpu.dot_dimension_numbers<[1], [0], [0], [1], [0, 0, 1, 1], [], []>} : vector<24x32xf32>, vector<32x64xf32>, vector<24x64xf32> -> vector<24x64xf32>
    %c1_217 = arith.constant 1 : index
    %c0_218 = arith.constant 0 : index
    %c0_219 = arith.constant 0 : index
    %445 = vector.load %arg30[%c1_217, %c0_218, %c0_219] : memref<2x1x64xf32, #tpu.memory_space<vmem>>, vector<1x1x64xf32>
    %446 = vector.shape_cast %445 : vector<1x1x64xf32> to vector<1x64xf32>
    %447 = vector.broadcast %446 : vector<1x64xf32> to vector<24x64xf32>
    %448 = arith.addf %444, %447 : vector<24x64xf32>
    %cst_220 = arith.constant 0.000000e+00 : f32
    %449 = vector.broadcast %cst_220 : f32 to vector<24x64xf32>
    %450 = arith.maximumf %448, %449 : vector<24x64xf32>
    %c1_221 = arith.constant 1 : index
    %c0_222 = arith.constant 0 : index
    %c0_223 = arith.constant 0 : index
    %451 = vector.load %arg31[%c1_221, %c0_222, %c0_223] : memref<2x64x32xf32, #tpu.memory_space<vmem>>, vector<1x64x32xf32>
    %452 = vector.shape_cast %451 : vector<1x64x32xf32> to vector<64x32xf32>
    %cst_224 = arith.constant dense<0.000000e+00> : vector<24x32xf32>
    %453 = tpu.matmul %450, %452, %cst_224 {dimension_numbers = #tpu.dot_dimension_numbers<[1], [0], [0], [1], [0, 0, 1, 1], [], []>} : vector<24x64xf32>, vector<64x32xf32>, vector<24x32xf32> -> vector<24x32xf32>
    %c1_225 = arith.constant 1 : index
    %c0_226 = arith.constant 0 : index
    %c0_227 = arith.constant 0 : index
    %454 = vector.load %arg32[%c1_225, %c0_226, %c0_227] : memref<2x1x32xf32, #tpu.memory_space<vmem>>, vector<1x1x32xf32>
    %455 = vector.shape_cast %454 : vector<1x1x32xf32> to vector<1x32xf32>
    %456 = vector.broadcast %455 : vector<1x32xf32> to vector<24x32xf32>
    %457 = arith.addf %453, %456 : vector<24x32xf32>
    %458 = arith.addf %441, %457 : vector<24x32xf32>
    %c1_228 = arith.constant 1 : index
    %c0_229 = arith.constant 0 : index
    %c0_230 = arith.constant 0 : index
    %459 = vector.load %arg33[%c1_228, %c0_229, %c0_230] : memref<2x1x32xf32, #tpu.memory_space<vmem>>, vector<1x1x32xf32>
    %460 = vector.shape_cast %459 : vector<1x1x32xf32> to vector<1x32xf32>
    %c1_231 = arith.constant 1 : index
    %c0_232 = arith.constant 0 : index
    %c0_233 = arith.constant 0 : index
    %461 = vector.load %arg34[%c1_231, %c0_232, %c0_233] : memref<2x1x32xf32, #tpu.memory_space<vmem>>, vector<1x1x32xf32>
    %462 = vector.shape_cast %461 : vector<1x1x32xf32> to vector<1x32xf32>
    %cst_234 = arith.constant dense<0.000000e+00> : vector<32xf32>
    %463 = vector.multi_reduction <add>, %458, %cst_234 [0] : vector<24x32xf32> to vector<32xf32>
    %464 = vector.shape_cast %463 : vector<32xf32> to vector<1x32xf32>
    %cst_235 = arith.constant 2.400000e+01 : f32
    %465 = vector.broadcast %cst_235 : f32 to vector<1x32xf32>
    %466 = arith.divf %464, %465 : vector<1x32xf32>
    %467 = vector.broadcast %466 : vector<1x32xf32> to vector<24x32xf32>
    %468 = arith.subf %458, %467 : vector<24x32xf32>
    %469 = arith.mulf %468, %468 : vector<24x32xf32>
    %cst_236 = arith.constant dense<0.000000e+00> : vector<32xf32>
    %470 = vector.multi_reduction <add>, %469, %cst_236 [0] : vector<24x32xf32> to vector<32xf32>
    %471 = vector.shape_cast %470 : vector<32xf32> to vector<1x32xf32>
    %cst_237 = arith.constant 2.400000e+01 : f32
    %472 = vector.broadcast %cst_237 : f32 to vector<1x32xf32>
    %473 = arith.divf %471, %472 : vector<1x32xf32>
    %474 = vector.broadcast %466 : vector<1x32xf32> to vector<24x32xf32>
    %475 = arith.subf %458, %474 : vector<24x32xf32>
    %cst_238 = arith.constant 9.99999974E-6 : f32
    %476 = vector.broadcast %cst_238 : f32 to vector<1x32xf32>
    %477 = arith.addf %473, %476 : vector<1x32xf32>
    %478 = math.rsqrt %477 : vector<1x32xf32>
    %479 = vector.broadcast %478 : vector<1x32xf32> to vector<24x32xf32>
    %480 = arith.mulf %475, %479 : vector<24x32xf32>
    %481 = vector.broadcast %460 : vector<1x32xf32> to vector<24x32xf32>
    %482 = arith.mulf %480, %481 : vector<24x32xf32>
    %483 = vector.broadcast %462 : vector<1x32xf32> to vector<24x32xf32>
    %484 = arith.addf %482, %483 : vector<24x32xf32>
    %c0_239 = arith.constant 0 : index
    %c0_240 = arith.constant 0 : index
    %485 = vector.load %arg36[%c0_239, %c0_240] : memref<24x32xf32, #tpu.memory_space<vmem>>, vector<24x32xf32>
    tpu.vector_store %arg36[%c0_239, %c0_240], %484 {strides = array<i32>} : memref<24x32xf32, #tpu.memory_space<vmem>>, vector<24x32xf32>,
    %cst_241 = arith.constant dense<0.000000e+00> : vector<3x32xf32>
    %486 = tpu.matmul %29, %484, %cst_241 {dimension_numbers = #tpu.dot_dimension_numbers<[1], [0], [0], [1], [0, 0, 1, 1], [], []>} : vector<3x24xf32>, vector<24x32xf32>, vector<3x32xf32> -> vector<3x32xf32>
    %c0_242 = arith.constant 0 : index
    %c0_243 = arith.constant 0 : index
    %487 = vector.load %arg35[%c0_242, %c0_243] : memref<3x32xf32, #tpu.memory_space<vmem>>, vector<3x32xf32>
    tpu.vector_store %arg35[%c0_242, %c0_243], %486 {strides = array<i32>} : memref<3x32xf32, #tpu.memory_space<vmem>>, vector<3x32xf32>,
    return
  }
}

</mosaic_0001>

<llo_original>
// kernel: gps_forward.1
$region0: #{gps_forward.1}
  #allocation0 [shape = 'u32[]', space=smem, size = 0x4, offset = 0x4, fixed_abs, tag = 'smem constant byte address 0x4 - core index']
  #allocation1 [shape = 'u32[72,128]{1,0:T(1,128)}', space=vmem, size = 0x9000, scoped, tag = 'internal scratch']
  %s0 = inlined_call_operand.smem [shape: u32[37], index: -1, kind: input, shape index: {}]
  %s1 = sld [smem:[%s0]]
  %s2 = scalar_lea.smem %s0, 1
  %s3 = sld [smem:[%s2]]
  %s4 = scalar_lea.smem %s0, 2
  %s5 = sld [smem:[%s4]]
  %s6 = scalar_lea.smem %s0, 3
  %s7 = sld [smem:[%s6]]
  %s8 = scalar_lea.smem %s0, 4
  %s9 = sld [smem:[%s8]]
  %s10 = scalar_lea.smem %s0, 5
  %s11 = sld [smem:[%s10]]
  %s12 = scalar_lea.smem %s0, 6
  %s13 = sld [smem:[%s12]]
  %s14 = scalar_lea.smem %s0, 7
  %s15 = sld [smem:[%s14]]
  %s16 = scalar_lea.smem %s0, 8
  %s17 = sld [smem:[%s16]]
  %s18 = scalar_lea.smem %s0, 9
  %s19 = sld [smem:[%s18]]
  %s20 = scalar_lea.smem %s0, 10
  %s21 = sld [smem:[%s20]]
  %s22 = scalar_lea.smem %s0, 11
  %s23 = sld [smem:[%s22]]
  %s24 = scalar_lea.smem %s0, 12
  %s25 = sld [smem:[%s24]]
  %s26 = scalar_lea.smem %s0, 13
  %s27 = sld [smem:[%s26]]
  %s28 = scalar_lea.smem %s0, 14
  %s29 = sld [smem:[%s28]]
  %s30 = scalar_lea.smem %s0, 15
  %s31 = sld [smem:[%s30]]
  %s32 = scalar_lea.smem %s0, 16
  %s33 = sld [smem:[%s32]]
  %s34 = scalar_lea.smem %s0, 17
  %s35 = sld [smem:[%s34]]
  %s36 = scalar_lea.smem %s0, 18
  %s37 = sld [smem:[%s36]]
  %s38 = scalar_lea.smem %s0, 19
  %s39 = sld [smem:[%s38]]
  %s40 = scalar_lea.smem %s0, 20
  %s41 = sld [smem:[%s40]]
  %s42 = scalar_lea.smem %s0, 21
  %s43 = sld [smem:[%s42]]
  %s44 = scalar_lea.smem %s0, 22
  %s45 = sld [smem:[%s44]]
  %s46 = scalar_lea.smem %s0, 23
  %s47 = sld [smem:[%s46]]
  %s48 = scalar_lea.smem %s0, 24
  %s49 = sld [smem:[%s48]]
  %s50 = scalar_lea.smem %s0, 25
  %s51 = sld [smem:[%s50]]
  %s52 = scalar_lea.smem %s0, 26
  %s53 = sld [smem:[%s52]]
  %s54 = scalar_lea.smem %s0, 27
  %s55 = sld [smem:[%s54]]
  %s56 = scalar_lea.smem %s0, 28
  %s57 = sld [smem:[%s56]]
  %s58 = scalar_lea.smem %s0, 29
  %s59 = sld [smem:[%s58]]
  %s60 = scalar_lea.smem %s0, 30
  %s61 = sld [smem:[%s60]]
  %s62 = scalar_lea.smem %s0, 31
  %s63 = sld [smem:[%s62]]
  %s64 = scalar_lea.smem %s0, 32
  %s65 = sld [smem:[%s64]]
  %s66 = scalar_lea.smem %s0, 33
  %s67 = sld [smem:[%s66]]
  %s68 = scalar_lea.smem %s0, 34
  %s69 = sld [smem:[%s68]]
  %s70 = scalar_lea.smem %s0, 35
  %s71 = sld [smem:[%s70]]
  %s72 = scalar_lea.smem %s0, 36
  %s73 = sld [smem:[%s72]]
  %74 = xla_tuple %s71, %s73
  %s75 = sld [smem:[#allocation0]]
  $region230: #{gps_forward.1} parent=0
    _
  %s77 = ssub.s32 1, %s75
  %s78 = scalar_select 0, %s77, %s75
  $region1: #{gps_forward.1} parent=0
    #allocation2 [shape = 'u8[512]{0}', space=vmem, size = 0x400, scoped, tag = 'input window, operand 10, single buffered']
    #allocation3 [shape = 's32[1]{0}', space=sflag, size = 0x4, scoped, tag = 'scoped memory for gps_forward.1']
    #allocation4 [shape = 's32[1]{0}', space=sflag, size = 0x4, scoped, tag = 'scoped memory for gps_forward.1']
    #allocation5 [shape = 'u8[512]{0}', space=vmem, size = 0x400, scoped, tag = 'input window, operand 11, single buffered']
    #allocation6 [shape = 's32[1]{0}', space=sflag, size = 0x4, scoped, tag = 'scoped memory for gps_forward.1']
    #allocation7 [shape = 'u8[12288]{0}', space=vmem, size = 0x3000, scoped, tag = 'input window, operand 13, single buffered']
    #allocation8 [shape = 'u8[512]{0}', space=vmem, size = 0x400, scoped, tag = 'input window, operand 14, single buffered']
    #allocation9 [shape = 's32[1]{0}', space=sflag, size = 0x4, scoped, tag = 'scoped memory for gps_forward.1']
    #allocation10 [shape = 'u8[4096]{0}', space=vmem, size = 0x1000, scoped, tag = 'input window, operand 15, single buffered']
    #allocation11 [shape = 'u8[512]{0}', space=vmem, size = 0x400, scoped, tag = 'input window, operand 16, single buffered']
    #allocation12 [shape = 's32[1]{0}', space=sflag, size = 0x4, scoped, tag = 'scoped memory for gps_forward.1']
    #allocation13 [shape = 'u8[1024]{0}', space=vmem, size = 0x400, scoped, tag = 'input window, operand 18, single buffered']
    #allocation14 [shape = 'u8[1024]{0}', space=vmem, size = 0x400, scoped, tag = 'input window, operand 20, single buffered']
    #allocation15 [shape = 's32[1]{0}', space=sflag, size = 0x4, scoped, tag = 'scoped memory for gps_forward.1']
    #allocation16 [shape = 'u8[1024]{0}', space=vmem, size = 0x400, scoped, tag = 'input window, operand 21, single buffered']
    #allocation17 [shape = 'u8[1024]{0}', space=vmem, size = 0x400, scoped, tag = 'input window, operand 22, single buffered']
    #allocation18 [shape = 's32[1]{0}', space=sflag, size = 0x4, scoped, tag = 'scoped memory for gps_forward.1']
    #allocation19 [shape = 'u8[1024]{0}', space=vmem, size = 0x400, scoped, tag = 'input window, operand 24, single buffered']
    #allocation20 [shape = 'u8[1024]{0}', space=vmem, size = 0x400, scoped, tag = 'input window, operand 26, single buffered']
    #allocation21 [shape = 's32[1]{0}', space=sflag, size = 0x4, scoped, tag = 'scoped memory for gps_forward.1']
    #allocation22 [shape = 'u8[1024]{0}', space=vmem, size = 0x400, scoped, tag = 'input window, operand 27, single buffered']
    #allocation23 [shape = 'u8[1024]{0}', space=vmem, size = 0x400, scoped, tag = 'input window, operand 28, single buffered']
    #allocation24 [shape = 's32[1]{0}', space=sflag, size = 0x4, scoped, tag = 'scoped memory for gps_forward.1']
    #allocation25 [shape = 'u8[1024]{0}', space=vmem, size = 0x400, scoped, tag = 'input window, operand 30, single buffered']
    #allocation26 [shape = 'u8[1024]{0}', space=vmem, size = 0x400, scoped, tag = 'input window, operand 32, single buffered']
    #allocation27 [shape = 's32[1]{0}', space=sflag, size = 0x4, scoped, tag = 'scoped memory for gps_forward.1']
    #allocation28 [shape = 'u8[1024]{0}', space=vmem, size = 0x400, scoped, tag = 'input window, operand 33, single buffered']
    #allocation29 [shape = 'u8[1024]{0}', space=vmem, size = 0x400, scoped, tag = 'input window, operand 34, single buffered']
    #allocation30 [shape = 's32[1]{0}', space=sflag, size = 0x4, scoped, tag = 'scoped memory for gps_forward.1']
    #allocation31 [shape = 'u8[2048]{0}', space=vmem, size = 0x800, scoped, tag = 'output window, operand 0, single buffered']
    #allocation32 [shape = 'u8[12288]{0}', space=vmem, size = 0x3000, scoped, tag = 'output window, operand 1, single buffered']
    #allocation33 [shape = 's32[1]{0}', space=sflag, size = 0x4, scoped, tag = 'scoped memory for gps_forward.1']
    %79 = vsyncpa [#allocation3], 0
    %80 = vsyncpa [#allocation6], 0
    %81 = vsyncpa [#allocation9], 0
    %82 = vsyncpa [#allocation12], 0
    %83 = vsyncpa [#allocation15], 0
    %84 = vsyncpa [#allocation18], 0
    %85 = vsyncpa [#allocation21], 0
    %86 = vsyncpa [#allocation24], 0
    %87 = vsyncpa [#allocation27], 0
    %88 = vsyncpa [#allocation30], 0
    %89 = vsyncpa [#allocation4], 0
    %90 = vsyncpa [#allocation33], 0
    // Predicated region
    $region2: #{gps_forward.1} parent=1 // pred_check
      _
    $region3: #{gps_forward.1} parent=1 // pred_check_branch
      %92 = sbr.rel (0) target = $region5
    $region4: #{gps_forward.1} parent=1 // pred_region
      _
    $region5: #{gps_forward.1} parent=1 // pred_fallthru
      _
    // Predicated region
    $region6: #{gps_forward.1} parent=1 // pred_check
      _
    $region7: #{gps_forward.1} parent=1 // pred_check_branch
      %94 = sbr.rel (0) target = $region9
    $region8: #{gps_forward.1} parent=1 // pred_region
      _
    $region9: #{gps_forward.1} parent=1 // pred_fallthru
      _
    // Predicated region
    $region10: #{gps_forward.1} parent=1 // pred_check
      _
    $region11: #{gps_forward.1} parent=1 // pred_check_branch
      %96 = sbr.rel (0) target = $region13
    $region12: #{gps_forward.1} parent=1 // pred_region
      _
    $region13: #{gps_forward.1} parent=1 // pred_fallthru
      _
    // Predicated region
    $region14: #{gps_forward.1} parent=1 // pred_check
      _
    $region15: #{gps_forward.1} parent=1 // pred_check_branch
      %98 = sbr.rel (0) target = $region17
    $region16: #{gps_forward.1} parent=1 // pred_region
      _
    $region17: #{gps_forward.1} parent=1 // pred_fallthru
      _
    // Predicated region
    $region18: #{gps_forward.1} parent=1 // pred_check
      _
    $region19: #{gps_forward.1} parent=1 // pred_check_branch
      %100 = sbr.rel (0) target = $region21
    $region20: #{gps_forward.1} parent=1 // pred_region
      _
    $region21: #{gps_forward.1} parent=1 // pred_fallthru
      _
    // Predicated region
    $region22: #{gps_forward.1} parent=1 // pred_check
      _
    $region23: #{gps_forward.1} parent=1 // pred_check_branch
      %102 = sbr.rel (0) target = $region25
    $region24: #{gps_forward.1} parent=1 // pred_region
      _
    $region25: #{gps_forward.1} parent=1 // pred_fallthru
      _
    // Predicated region
    $region26: #{gps_forward.1} parent=1 // pred_check
      _
    $region27: #{gps_forward.1} parent=1 // pred_check_branch
      %104 = sbr.rel (0) target = $region29
    $region28: #{gps_forward.1} parent=1 // pred_region
      _
    $region29: #{gps_forward.1} parent=1 // pred_fallthru
      _
    // Predicated region
    $region30: #{gps_forward.1} parent=1 // pred_check
      _
    $region31: #{gps_forward.1} parent=1 // pred_check_branch
      %106 = sbr.rel (0) target = $region33
    $region32: #{gps_forward.1} parent=1 // pred_region
      _
    $region33: #{gps_forward.1} parent=1 // pred_fallthru
      _
    // Predicated region
    $region34: #{gps_forward.1} parent=1 // pred_check
      _
    $region35: #{gps_forward.1} parent=1 // pred_check_branch
      %108 = sbr.rel (0) target = $region37
    $region36: #{gps_forward.1} parent=1 // pred_region
      _
    $region37: #{gps_forward.1} parent=1 // pred_fallthru
      _
    // Predicated region
    $region38: #{gps_forward.1} parent=1 // pred_check
      _
    $region39: #{gps_forward.1} parent=1 // pred_check_branch
      %110 = sbr.rel (0) target = $region41
    $region40: #{gps_forward.1} parent=1 // pred_region
      _
    $region41: #{gps_forward.1} parent=1 // pred_fallthru
      _
    // Predicated region
    $region42: #{gps_forward.1} parent=1 // pred_check
      _
    $region43: #{gps_forward.1} parent=1 // pred_check_branch
      %112 = sbr.rel (0) target = $region45
    $region44: #{gps_forward.1} parent=1 // pred_region
      %114 = vsyncadd [#allocation3], 0
      %s116 = sshll.u32 %s21, 4
      %s117 = int_to_ptr.hbm [resolvable:$true] %s116
      %s118 = sshll.u32 [#allocation2], 4
      %s119 = int_to_ptr.vmem [resolvable:$true] %s118
      %121 = dma.hbm_to_vmem [thread:$0]  %s117, 16, %s119, [#allocation3]
    $region45: #{gps_forward.1} parent=1 // pred_fallthru
      _
    // Predicated region
    $region46: #{gps_forward.1} parent=1 // pred_check
      _
    $region47: #{gps_forward.1} parent=1 // pred_check_branch
      %123 = sbr.rel (0) target = $region49
    $region48: #{gps_forward.1} parent=1 // pred_region
      %125 = vsyncadd [#allocation6], 0
      %s127 = sshll.u32 %s23, 4
      %s128 = int_to_ptr.hbm [resolvable:$true] %s127
      %s129 = sshll.u32 [#allocation5], 4
      %s130 = int_to_ptr.vmem [resolvable:$true] %s129
      %132 = dma.hbm_to_vmem [thread:$0]  %s128, 16, %s130, [#allocation6]
    $region49: #{gps_forward.1} parent=1 // pred_fallthru
      _
    // Predicated region
    $region50: #{gps_forward.1} parent=1 // pred_check
      _
    $region51: #{gps_forward.1} parent=1 // pred_check_branch
      %134 = sbr.rel (0) target = $region53
    $region52: #{gps_forward.1} parent=1 // pred_region
      _
    $region53: #{gps_forward.1} parent=1 // pred_fallthru
      _
    // Predicated region
    $region54: #{gps_forward.1} parent=1 // pred_check
      _
    $region55: #{gps_forward.1} parent=1 // pred_check_branch
      %136 = sbr.rel (0) target = $region57
    $region56: #{gps_forward.1} parent=1 // pred_region
      %138 = vsyncadd [#allocation6], 0
      %s139 = sshll.u32 %s27, 4
      %s140 = int_to_ptr.hbm [resolvable:$true] %s139
      %s141 = sshll.u32 [#allocation7], 4
      %s142 = int_to_ptr.vmem [resolvable:$true] %s141
      %147 = dma.hbm_to_vmem [thread:$0]  %s140, 384, %s142, [#allocation6], 128, 128, 8
    $region57: #{gps_forward.1} parent=1 // pred_fallthru
      _
    // Predicated region
    $region58: #{gps_forward.1} parent=1 // pred_check
      _
    $region59: #{gps_forward.1} parent=1 // pred_check_branch
      %149 = sbr.rel (0) target = $region61
    $region60: #{gps_forward.1} parent=1 // pred_region
      %151 = vsyncadd [#allocation9], 0
      %s153 = sshll.u32 %s29, 4
      %s154 = int_to_ptr.hbm [resolvable:$true] %s153
      %s155 = sshll.u32 [#allocation8], 4
      %s156 = int_to_ptr.vmem [resolvable:$true] %s155
      %158 = dma.hbm_to_vmem [thread:$0]  %s154, 16, %s156, [#allocation9]
    $region61: #{gps_forward.1} parent=1 // pred_fallthru
      _
    // Predicated region
    $region62: #{gps_forward.1} parent=1 // pred_check
      _
    $region63: #{gps_forward.1} parent=1 // pred_check_branch
      %160 = sbr.rel (0) target = $region65
    $region64: #{gps_forward.1} parent=1 // pred_region
      %162 = vsyncadd [#allocation9], 0
      %s164 = sshll.u32 %s31, 4
      %s165 = int_to_ptr.hbm [resolvable:$true] %s164
      %s166 = sshll.u32 [#allocation10], 4
      %s167 = int_to_ptr.vmem [resolvable:$true] %s166
      %169 = dma.hbm_to_vmem [thread:$0]  %s165, 128, %s167, [#allocation9]
    $region65: #{gps_forward.1} parent=1 // pred_fallthru
      _
    // Predicated region
    $region66: #{gps_forward.1} parent=1 // pred_check
      _
    $region67: #{gps_forward.1} parent=1 // pred_check_branch
      %171 = sbr.rel (0) target = $region69
    $region68: #{gps_forward.1} parent=1 // pred_region
      %173 = vsyncadd [#allocation12], 0
      %s175 = sshll.u32 %s33, 4
      %s176 = int_to_ptr.hbm [resolvable:$true] %s175
      %s177 = sshll.u32 [#allocation11], 4
      %s178 = int_to_ptr.vmem [resolvable:$true] %s177
      %180 = dma.hbm_to_vmem [thread:$0]  %s176, 16, %s178, [#allocation12]
    $region69: #{gps_forward.1} parent=1 // pred_fallthru
      _
    // Predicated region
    $region70: #{gps_forward.1} parent=1 // pred_check
      _
    $region71: #{gps_forward.1} parent=1 // pred_check_branch
      %182 = sbr.rel (0) target = $region73
    $region72: #{gps_forward.1} parent=1 // pred_region
      _
    $region73: #{gps_forward.1} parent=1 // pred_fallthru
      _
    // Predicated region
    $region74: #{gps_forward.1} parent=1 // pred_check
      _
    $region75: #{gps_forward.1} parent=1 // pred_check_branch
      %184 = sbr.rel (0) target = $region77
    $region76: #{gps_forward.1} parent=1 // pred_region
      %186 = vsyncadd [#allocation12], 0
      %s187 = sshll.u32 %s37, 4
      %s188 = int_to_ptr.hbm [resolvable:$true] %s187
      %s189 = sshll.u32 [#allocation13], 4
      %s190 = int_to_ptr.vmem [resolvable:$true] %s189
      %195 = dma.hbm_to_vmem [thread:$0]  %s188, 32, %s190, [#allocation12], 16, 16, 1
    $region77: #{gps_forward.1} parent=1 // pred_fallthru
      _
    // Predicated region
    $region78: #{gps_forward.1} parent=1 // pred_check
      _
    $region79: #{gps_forward.1} parent=1 // pred_check_branch
      %197 = sbr.rel (0) target = $region81
    $region80: #{gps_forward.1} parent=1 // pred_region
      _
    $region81: #{gps_forward.1} parent=1 // pred_fallthru
      _
    // Predicated region
    $region82: #{gps_forward.1} parent=1 // pred_check
      _
    $region83: #{gps_forward.1} parent=1 // pred_check_branch
      %199 = sbr.rel (0) target = $region85
    $region84: #{gps_forward.1} parent=1 // pred_region
      %201 = vsyncadd [#allocation15], 0
      %s202 = sshll.u32 %s41, 4
      %s203 = int_to_ptr.hbm [resolvable:$true] %s202
      %s204 = sshll.u32 [#allocation14], 4
      %s205 = int_to_ptr.vmem [resolvable:$true] %s204
      %210 = dma.hbm_to_vmem [thread:$0]  %s203, 32, %s205, [#allocation15], 16, 16, 1
    $region85: #{gps_forward.1} parent=1 // pred_fallthru
      _
    // Predicated region
    $region86: #{gps_forward.1} parent=1 // pred_check
      _
    $region87: #{gps_forward.1} parent=1 // pred_check_branch
      %212 = sbr.rel (0) target = $region89
    $region88: #{gps_forward.1} parent=1 // pred_region
      %214 = vsyncadd [#allocation15], 0
      %s215 = sshll.u32 %s43, 4
      %s216 = int_to_ptr.hbm [resolvable:$true] %s215
      %s217 = sshll.u32 [#allocation16], 4
      %s218 = int_to_ptr.vmem [resolvable:$true] %s217
      %223 = dma.hbm_to_vmem [thread:$0]  %s216, 32, %s218, [#allocation15], 16, 16, 1
    $region89: #{gps_forward.1} parent=1 // pred_fallthru
      _
    // Predicated region
    $region90: #{gps_forward.1} parent=1 // pred_check
      _
    $region91: #{gps_forward.1} parent=1 // pred_check_branch
      %225 = sbr.rel (0) target = $region93
    $region92: #{gps_forward.1} parent=1 // pred_region
      %227 = vsyncadd [#allocation18], 0
      %s228 = sshll.u32 %s45, 4
      %s229 = int_to_ptr.hbm [resolvable:$true] %s228
      %s230 = sshll.u32 [#allocation17], 4
      %s231 = int_to_ptr.vmem [resolvable:$true] %s230
      %236 = dma.hbm_to_vmem [thread:$0]  %s229, 32, %s231, [#allocation18], 16, 16, 1
    $region93: #{gps_forward.1} parent=1 // pred_fallthru
      _
    // Predicated region
    $region94: #{gps_forward.1} parent=1 // pred_check
      _
    $region95: #{gps_forward.1} parent=1 // pred_check_branch
      %238 = sbr.rel (0) target = $region97
    $region96: #{gps_forward.1} parent=1 // pred_region
      _
    $region97: #{gps_forward.1} parent=1 // pred_fallthru
      _
    // Predicated region
    $region98: #{gps_forward.1} parent=1 // pred_check
      _
    $region99: #{gps_forward.1} parent=1 // pred_check_branch
      %240 = sbr.rel (0) target = $region101
    $region100: #{gps_forward.1} parent=1 // pred_region
      %242 = vsyncadd [#allocation18], 0
      %s243 = sshll.u32 %s49, 4
      %s244 = int_to_ptr.hbm [resolvable:$true] %s243
      %s245 = sshll.u32 [#allocation19], 4
      %s246 = int_to_ptr.vmem [resolvable:$true] %s245
      %251 = dma.hbm_to_vmem [thread:$0]  %s244, 32, %s246, [#allocation18], 16, 16, 1
    $region101: #{gps_forward.1} parent=1 // pred_fallthru
      _
    // Predicated region
    $region102: #{gps_forward.1} parent=1 // pred_check
      _
    $region103: #{gps_forward.1} parent=1 // pred_check_branch
      %253 = sbr.rel (0) target = $region105
    $region104: #{gps_forward.1} parent=1 // pred_region
      _
    $region105: #{gps_forward.1} parent=1 // pred_fallthru
      _
    // Predicated region
    $region106: #{gps_forward.1} parent=1 // pred_check
      _
    $region107: #{gps_forward.1} parent=1 // pred_check_branch
      %255 = sbr.rel (0) target = $region109
    $region108: #{gps_forward.1} parent=1 // pred_region
      %257 = vsyncadd [#allocation21], 0
      %s258 = sshll.u32 %s53, 4
      %s259 = int_to_ptr.hbm [resolvable:$true] %s258
      %s260 = sshll.u32 [#allocation20], 4
      %s261 = int_to_ptr.vmem [resolvable:$true] %s260
      %266 = dma.hbm_to_vmem [thread:$0]  %s259, 32, %s261, [#allocation21], 16, 16, 1
    $region109: #{gps_forward.1} parent=1 // pred_fallthru
      _
    // Predicated region
    $region110: #{gps_forward.1} parent=1 // pred_check
      _
    $region111: #{gps_forward.1} parent=1 // pred_check_branch
      %268 = sbr.rel (0) target = $region113
    $region112: #{gps_forward.1} parent=1 // pred_region
      %270 = vsyncadd [#allocation21], 0
      %s271 = sshll.u32 %s55, 4
      %s272 = int_to_ptr.hbm [resolvable:$true] %s271
      %s273 = sshll.u32 [#allocation22], 4
      %s274 = int_to_ptr.vmem [resolvable:$true] %s273
      %279 = dma.hbm_to_vmem [thread:$0]  %s272, 32, %s274, [#allocation21], 16, 16, 1
    $region113: #{gps_forward.1} parent=1 // pred_fallthru
      _
    // Predicated region
    $region114: #{gps_forward.1} parent=1 // pred_check
      _
    $region115: #{gps_forward.1} parent=1 // pred_check_branch
      %281 = sbr.rel (0) target = $region117
    $region116: #{gps_forward.1} parent=1 // pred_region
      %283 = vsyncadd [#allocation24], 0
      %s284 = sshll.u32 %s57, 4
      %s285 = int_to_ptr.hbm [resolvable:$true] %s284
      %s286 = sshll.u32 [#allocation23], 4
      %s287 = int_to_ptr.vmem [resolvable:$true] %s286
      %292 = dma.hbm_to_vmem [thread:$0]  %s285, 32, %s287, [#allocation24], 16, 16, 1
    $region117: #{gps_forward.1} parent=1 // pred_fallthru
      _
    // Predicated region
    $region118: #{gps_forward.1} parent=1 // pred_check
      _
    $region119: #{gps_forward.1} parent=1 // pred_check_branch
      %294 = sbr.rel (0) target = $region121
    $region120: #{gps_forward.1} parent=1 // pred_region
      _
    $region121: #{gps_forward.1} parent=1 // pred_fallthru
      _
    // Predicated region
    $region122: #{gps_forward.1} parent=1 // pred_check
      _
    $region123: #{gps_forward.1} parent=1 // pred_check_branch
      %296 = sbr.rel (0) target = $region125
    $region124: #{gps_forward.1} parent=1 // pred_region
      %298 = vsyncadd [#allocation24], 0
      %s299 = sshll.u32 %s61, 4
      %s300 = int_to_ptr.hbm [resolvable:$true] %s299
      %s301 = sshll.u32 [#allocation25], 4
      %s302 = int_to_ptr.vmem [resolvable:$true] %s301
      %307 = dma.hbm_to_vmem [thread:$0]  %s300, 32, %s302, [#allocation24], 16, 16, 1
    $region125: #{gps_forward.1} parent=1 // pred_fallthru
      _
    // Predicated region
    $region126: #{gps_forward.1} parent=1 // pred_check
      _
    $region127: #{gps_forward.1} parent=1 // pred_check_branch
      %309 = sbr.rel (0) target = $region129
    $region128: #{gps_forward.1} parent=1 // pred_region
      _
    $region129: #{gps_forward.1} parent=1 // pred_fallthru
      _
    // Predicated region
    $region130: #{gps_forward.1} parent=1 // pred_check
      _
    $region131: #{gps_forward.1} parent=1 // pred_check_branch
      %311 = sbr.rel (0) target = $region133
    $region132: #{gps_forward.1} parent=1 // pred_region
      %313 = vsyncadd [#allocation27], 0
      %s314 = sshll.u32 %s65, 4
      %s315 = int_to_ptr.hbm [resolvable:$true] %s314
      %s316 = sshll.u32 [#allocation26], 4
      %s317 = int_to_ptr.vmem [resolvable:$true] %s316
      %322 = dma.hbm_to_vmem [thread:$0]  %s315, 32, %s317, [#allocation27], 16, 16, 1
    $region133: #{gps_forward.1} parent=1 // pred_fallthru
      _
    // Predicated region
    $region134: #{gps_forward.1} parent=1 // pred_check
      _
    $region135: #{gps_forward.1} parent=1 // pred_check_branch
      %324 = sbr.rel (0) target = $region137
    $region136: #{gps_forward.1} parent=1 // pred_region
      %326 = vsyncadd [#allocation27], 0
      %s327 = sshll.u32 %s67, 4
      %s328 = int_to_ptr.hbm [resolvable:$true] %s327
      %s329 = sshll.u32 [#allocation28], 4
      %s330 = int_to_ptr.vmem [resolvable:$true] %s329
      %335 = dma.hbm_to_vmem [thread:$0]  %s328, 32, %s330, [#allocation27], 16, 16, 1
    $region137: #{gps_forward.1} parent=1 // pred_fallthru
      _
    // Predicated region
    $region138: #{gps_forward.1} parent=1 // pred_check
      _
    $region139: #{gps_forward.1} parent=1 // pred_check_branch
      %337 = sbr.rel (0) target = $region141
    $region140: #{gps_forward.1} parent=1 // pred_region
      %339 = vsyncadd [#allocation30], 0
      %s340 = sshll.u32 %s69, 4
      %s341 = int_to_ptr.hbm [resolvable:$true] %s340
      %s342 = sshll.u32 [#allocation29], 4
      %s343 = int_to_ptr.vmem [resolvable:$true] %s342
      %348 = dma.hbm_to_vmem [thread:$0]  %s341, 32, %s343, [#allocation30], 16, 16, 1
    $region141: #{gps_forward.1} parent=1 // pred_fallthru
      _
    // Predicated region
    $region142: #{gps_forward.1} parent=1 // pred_check
      _
    $region143: #{gps_forward.1} parent=1 // pred_check_branch
      %350 = sbr.rel (0) target = $region145
    $region144: #{gps_forward.1} parent=1 // pred_region
      %352 = dma.done [#allocation3], 16
    $region145: #{gps_forward.1} parent=1 // pred_fallthru
      _
    // Predicated region
    $region146: #{gps_forward.1} parent=1 // pred_check
      _
    $region147: #{gps_forward.1} parent=1 // pred_check_branch
      %354 = sbr.rel (0) target = $region149
    $region148: #{gps_forward.1} parent=1 // pred_region
      %356 = dma.done [#allocation6], 16
    $region149: #{gps_forward.1} parent=1 // pred_fallthru
      _
    // Predicated region
    $region150: #{gps_forward.1} parent=1 // pred_check
      _
    $region151: #{gps_forward.1} parent=1 // pred_check_branch
      %358 = sbr.rel (0) target = $region153
    $region152: #{gps_forward.1} parent=1 // pred_region
      %360 = dma.done [#allocation6], 384
    $region153: #{gps_forward.1} parent=1 // pred_fallthru
      _
    // Predicated region
    $region154: #{gps_forward.1} parent=1 // pred_check
      _
    $region155: #{gps_forward.1} parent=1 // pred_check_branch
      %362 = sbr.rel (0) target = $region157
    $region156: #{gps_forward.1} parent=1 // pred_region
      %364 = dma.done [#allocation9], 16
    $region157: #{gps_forward.1} parent=1 // pred_fallthru
      _
    // Predicated region
    $region158: #{gps_forward.1} parent=1 // pred_check
      _
    $region159: #{gps_forward.1} parent=1 // pred_check_branch
      %366 = sbr.rel (0) target = $region161
    $region160: #{gps_forward.1} parent=1 // pred_region
      %368 = dma.done [#allocation9], 128
    $region161: #{gps_forward.1} parent=1 // pred_fallthru
      _
    // Predicated region
    $region162: #{gps_forward.1} parent=1 // pred_check
      _
    $region163: #{gps_forward.1} parent=1 // pred_check_branch
      %370 = sbr.rel (0) target = $region165
    $region164: #{gps_forward.1} parent=1 // pred_region
      %372 = dma.done [#allocation12], 16
    $region165: #{gps_forward.1} parent=1 // pred_fallthru
      _
    // Predicated region
    $region166: #{gps_forward.1} parent=1 // pred_check
      _
    $region167: #{gps_forward.1} parent=1 // pred_check_branch
      %374 = sbr.rel (0) target = $region169
    $region168: #{gps_forward.1} parent=1 // pred_region
      %376 = dma.done [#allocation12], 32
    $region169: #{gps_forward.1} parent=1 // pred_fallthru
      _
    // Predicated region
    $region170: #{gps_forward.1} parent=1 // pred_check
      _
    $region171: #{gps_forward.1} parent=1 // pred_check_branch
      %378 = sbr.rel (0) target = $region173
    $region172: #{gps_forward.1} parent=1 // pred_region
      %380 = dma.done [#allocation15], 32
    $region173: #{gps_forward.1} parent=1 // pred_fallthru
      _
    // Predicated region
    $region174: #{gps_forward.1} parent=1 // pred_check
      _
    $region175: #{gps_forward.1} parent=1 // pred_check_branch
      %382 = sbr.rel (0) target = $region177
    $region176: #{gps_forward.1} parent=1 // pred_region
      %384 = dma.done [#allocation15], 32
    $region177: #{gps_forward.1} parent=1 // pred_fallthru
      _
    // Predicated region
    $region178: #{gps_forward.1} parent=1 // pred_check
      _
    $region179: #{gps_forward.1} parent=1 // pred_check_branch
      %386 = sbr.rel (0) target = $region181
    $region180: #{gps_forward.1} parent=1 // pred_region
      %388 = dma.done [#allocation18], 32
    $region181: #{gps_forward.1} parent=1 // pred_fallthru
      _
    // Predicated region
    $region182: #{gps_forward.1} parent=1 // pred_check
      _
    $region183: #{gps_forward.1} parent=1 // pred_check_branch
      %390 = sbr.rel (0) target = $region185
    $region184: #{gps_forward.1} parent=1 // pred_region
      %392 = dma.done [#allocation18], 32
    $region185: #{gps_forward.1} parent=1 // pred_fallthru
      _
    // Predicated region
    $region186: #{gps_forward.1} parent=1 // pred_check
      _
    $region187: #{gps_forward.1} parent=1 // pred_check_branch
      %394 = sbr.rel (0) target = $region189
    $region188: #{gps_forward.1} parent=1 // pred_region
      %396 = dma.done [#allocation21], 32
    $region189: #{gps_forward.1} parent=1 // pred_fallthru
      _
    // Predicated region
    $region190: #{gps_forward.1} parent=1 // pred_check
      _
    $region191: #{gps_forward.1} parent=1 // pred_check_branch
      %398 = sbr.rel (0) target = $region193
    $region192: #{gps_forward.1} parent=1 // pred_region
      %400 = dma.done [#allocation21], 32
    $region193: #{gps_forward.1} parent=1 // pred_fallthru
      _
    // Predicated region
    $region194: #{gps_forward.1} parent=1 // pred_check
      _
    $region195: #{gps_forward.1} parent=1 // pred_check_branch
      %402 = sbr.rel (0) target = $region197
    $region196: #{gps_forward.1} parent=1 // pred_region
      %404 = dma.done [#allocation24], 32
    $region197: #{gps_forward.1} parent=1 // pred_fallthru
      _
    // Predicated region
    $region198: #{gps_forward.1} parent=1 // pred_check
      _
    $region199: #{gps_forward.1} parent=1 // pred_check_branch
      %406 = sbr.rel (0) target = $region201
    $region200: #{gps_forward.1} parent=1 // pred_region
      %408 = dma.done [#allocation24], 32
    $region201: #{gps_forward.1} parent=1 // pred_fallthru
      _
    // Predicated region
    $region202: #{gps_forward.1} parent=1 // pred_check
      _
    $region203: #{gps_forward.1} parent=1 // pred_check_branch
      %410 = sbr.rel (0) target = $region205
    $region204: #{gps_forward.1} parent=1 // pred_region
      %412 = dma.done [#allocation27], 32
    $region205: #{gps_forward.1} parent=1 // pred_fallthru
      _
    // Predicated region
    $region206: #{gps_forward.1} parent=1 // pred_check
      _
    $region207: #{gps_forward.1} parent=1 // pred_check_branch
      %414 = sbr.rel (0) target = $region209
    $region208: #{gps_forward.1} parent=1 // pred_region
      %416 = dma.done [#allocation27], 32
    $region209: #{gps_forward.1} parent=1 // pred_fallthru
      _
    // Predicated region
    $region210: #{gps_forward.1} parent=1 // pred_check
      _
    $region211: #{gps_forward.1} parent=1 // pred_check_branch
      %418 = sbr.rel (0) target = $region213
    $region212: #{gps_forward.1} parent=1 // pred_region
      %420 = dma.done [#allocation30], 32
    $region213: #{gps_forward.1} parent=1 // pred_fallthru
      _
    %v421 = vld [vmem:[%s7] sm:$0xff]
    %v422 = vld [vmem:[%s7 + $0x8] sm:$0xff]
    %v423 = vld [vmem:[%s7 + $0x10] sm:$0xff]
    %v424 = vld [vmem:[%s7 + $0x18] sm:$0xff]
    %v425 = vld [vmem:[%s7 + $0x20] sm:$0xff]
    %v426 = vld [vmem:[%s7 + $0x28] sm:$0xff]
    %v427 = vlaneseq
    %v428 = vand.u32 %v427, 127
    %429 = vset.pattern.permute.xlu0 0
    %430 = vperm.xlu0 %429, %v421
    %v431 = vpop.permute.xlu0 %430
    %432 = vset.pattern.permute.xlu0 0
    %433 = vperm.xlu0 %432, %v422
    %v434 = vpop.permute.xlu0 %433
    %435 = vset.pattern.permute.xlu0 0
    %436 = vperm.xlu0 %435, %v423
    %v437 = vpop.permute.xlu0 %436
    %438 = vset.pattern.permute.xlu0 0
    %439 = vperm.xlu0 %438, %v424
    %v440 = vpop.permute.xlu0 %439
    %441 = vset.pattern.permute.xlu0 0
    %442 = vperm.xlu0 %441, %v425
    %v443 = vpop.permute.xlu0 %442
    %444 = vset.pattern.permute.xlu0 0
    %445 = vperm.xlu0 %444, %v426
    %v446 = vpop.permute.xlu0 %445
    %vm447 = vcmp.eq.s32.totalorder %v431, %v428
    %vm448 = vcmp.eq.s32.totalorder %v434, %v428
    %vm449 = vcmp.eq.s32.totalorder %v437, %v428
    %vm450 = vcmp.eq.s32.totalorder %v440, %v428
    %vm451 = vcmp.eq.s32.totalorder %v443, %v428
    %vm452 = vcmp.eq.s32.totalorder %v446, %v428
    %v453 = vsel %vm447, 1, 0
    %v454 = vsel %vm448, 1, 0
    %v455 = vsel %vm449, 1, 0
    %v456 = vsel %vm450, 1, 0
    %v457 = vsel %vm451, 1, 0
    %v458 = vsel %vm452, 1, 0
    %v459 = vcvt.s32.f32 %v453
    %v460 = vcvt.s32.f32 %v454
    %v461 = vcvt.s32.f32 %v455
    %v462 = vcvt.s32.f32 %v456
    %v463 = vcvt.s32.f32 %v457
    %v464 = vcvt.s32.f32 %v458
    %v465 = vlaneseq
    %v466 = vshrl.u32 %v465, 7
    %v467 = vadd.s32 %v466, 8
    %v468 = vadd.s32 %v466, 16
    %v469 = vld [vmem:[%s9] sm:$0x1]
    %v470 = vperm.slane %v469, 0
    %vm471 = vcmp.eq.s32.totalorder %v466, %v470
    %vm472 = vcmp.eq.s32.totalorder %v467, %v470
    %vm473 = vcmp.eq.s32.totalorder %v468, %v470
    %v474 = vsel %vm471, 1, 0
    %v475 = vsel %vm472, 1, 0
    %v476 = vsel %vm473, 1, 0
    %v477 = vcvt.s32.f32 %v474
    %v478 = vcvt.s32.f32 %v475
    %v479 = vcvt.s32.f32 %v476
    %v480 = vadd.s32 %v466, 24
    %v481 = vld [vmem:[%s11] sm:$0x1]
    %v482 = vperm.slane %v481, 0
    %vm483 = vcmp.eq.s32.totalorder %v466, %v482
    %vm484 = vcmp.eq.s32.totalorder %v467, %v482
    %vm485 = vcmp.eq.s32.totalorder %v468, %v482
    %vm486 = vcmp.eq.s32.totalorder %v480, %v482
    %v487 = vsel %vm483, 1, 0
    %v488 = vsel %vm484, 1, 0
    %v489 = vsel %vm485, 1, 0
    %v490 = vsel %vm486, 1, 0
    %v491 = vcvt.s32.f32 %v487
    %v492 = vcvt.s32.f32 %v488
    %v493 = vcvt.s32.f32 %v489
    %v494 = vcvt.s32.f32 %v490
    %v495 = vld [vmem:[%s13] sm:$0xff]
    %v496 = vld [vmem:[%s13 + $0x8] sm:$0xff]
    %v497 = vld [vmem:[%s13 + $0x10] sm:$0xff]
    %498 = vset.pattern.permute.xlu0 0
    %499 = vperm.xlu0 %498, %v495
    %v500 = vpop.permute.xlu0 %499
    %501 = vset.pattern.permute.xlu0 0
    %502 = vperm.xlu0 %501, %v496
    %v503 = vpop.permute.xlu0 %502
    %504 = vset.pattern.permute.xlu0 0
    %505 = vperm.xlu0 %504, %v497
    %v506 = vpop.permute.xlu0 %505
    %vm507 = vcmp.eq.s32.totalorder %v500, %v428
    %vm508 = vcmp.eq.s32.totalorder %v503, %v428
    %vm509 = vcmp.eq.s32.totalorder %v506, %v428
    %v510 = vsel %vm507, 1, 0
    %v511 = vsel %vm508, 1, 0
    %v512 = vsel %vm509, 1, 0
    %v513 = vcvt.s32.f32 %v510
    %v514 = vcvt.s32.f32 %v511
    %v515 = vcvt.s32.f32 %v512
    %v516 = vld [vmem:[%s19] sm:$0x1]
    %v517 = vperm.slane %v516, 0
    %vm518 = vcmp.eq.s32.totalorder %v466, %v517
    %v519 = vsel %vm518, 1, 0
    %v520 = vcvt.s32.f32 %v519
    %vm521 = vcmask 261120
    %v522 = vsel %vm521, %v513, -inf
    %v523 = vsel %vm521, %v514, -inf
    %v524 = vsel %vm521, %v515, -inf
    %v525 = vmax.f32 %v522, %v523
    %v526 = vmax.f32 %v525, %v524
    %v527 = vrot.slane %v526, 4
    %v528 = vmax.f32 %v526, %v527
    %v529 = vrot.slane %v528, 2
    %v530 = vmax.f32 %v528, %v529
    %v531 = vrot.slane %v530, 1
    %v532 = vmax.f32 %v530, %v531
    %v533 = vld [vmem:[%s17] sm:$0xff]
    %v534 = vld [vmem:[%s17 + $0x8] sm:$0xff]
    %v535 = vld [vmem:[%s17 + $0x10] sm:$0xff]
    %v536 = vld [vmem:[%s17 + $0x18] sm:$0xff]
    %v537 = vld [vmem:[%s15] sm:$0x1]
    %538 = vset.pattern.permute.xlu0 0
    %539 = vperm.xlu0 %538, %v533
    %v540 = vpop.permute.xlu0 %539
    %541 = vset.pattern.permute.xlu0 0
    %542 = vperm.xlu0 %541, %v534
    %v543 = vpop.permute.xlu0 %542
    %544 = vset.pattern.permute.xlu0 0
    %545 = vperm.xlu0 %544, %v535
    %v546 = vpop.permute.xlu0 %545
    %547 = vset.pattern.permute.xlu0 0
    %548 = vperm.xlu0 %547, %v536
    %v549 = vpop.permute.xlu0 %548
    %v550 = vperm.slane %v537, 0
    %vm551 = vcmp.eq.s32.totalorder %v540, %v550
    %vm552 = vcmp.eq.s32.totalorder %v543, %v550
    %vm553 = vcmp.eq.s32.totalorder %v546, %v550
    %vm554 = vcmp.eq.s32.totalorder %v549, %v550
    %vm555 = vcmp.gt.f32.partialorder %v532, 0.5
    %v556 = vsel %vm555, 1, 0
    %vm557 = vcmp.eq.s32.totalorder %v556, 1
    %vm558 = vmand %vm551, %vm557
    %vm559 = vmand %vm552, %vm557
    %vm560 = vmand %vm553, %vm557
    %vm561 = vmand %vm554, %vm557
    %v562 = vsel %vm558, 0.0, -1e+30
    %v563 = vsel %vm559, 0.0, -1e+30
    %v564 = vsel %vm560, 0.0, -1e+30
    %v565 = vsel %vm561, 0.0, -1e+30
    %v566 = vld [vmem:[%s3] sm:$0xff]
    %v567 = vld [vmem:[%s3 + $0x8] sm:$0xff]
    %v568 = vld [vmem:[%s3 + $0x10] sm:$0xff]
    %v569 = vld [vmem:[#allocation2] sm:$0x1]
    %v570 = vld [vmem:[#allocation5] sm:$0x1]
    %vm571 = vcmask 162816
    %v572 = vsel %vm571, %v566, 0.0
    %v573 = vsel %vm571, %v567, 0.0
    %v574 = vadd.f32 %v572, %v573
    %v575 = vsel %vm571, %v568, 0.0
    %v576 = vadd.f32 %v574, %v575
    %v577 = vrot.slane %v576, 4
    %v578 = vadd.f32 %v576, %v577
    %v579 = vrot.slane %v578, 2
    %v580 = vadd.f32 %v578, %v579
    %v581 = vrot.slane %v580, 1
    %v582 = vadd.f32 %v580, %v581
    %v583 = vrcp.pop 24.0
    %v584 = vmul.f32 24.0, %v583
    %v585 = vsub.f32 1.0, %v584
    %v586 = vmul.f32 %v583, %v585
    %v587 = vadd.f32 %v583, %v586
    %vm588 = vweird.f32 %v583
    %v589 = vsel %vm588, %v583, %v587
    %v590 = vmul.f32 %v582, %v589
    %v591 = vsub.f32 %v566, %v590
    %v592 = vsub.f32 %v567, %v590
    %v593 = vsub.f32 %v568, %v590
    %v594 = vmul.f32 %v591, %v591
    %v595 = vmul.f32 %v592, %v592
    %v596 = vmul.f32 %v593, %v593
    %v597 = vsel %vm571, %v594, 0.0
    %v598 = vsel %vm571, %v595, 0.0
    %v599 = vadd.f32 %v597, %v598
    %v600 = vsel %vm571, %v596, 0.0
    %v601 = vadd.f32 %v599, %v600
    %v602 = vrot.slane %v601, 4
    %v603 = vadd.f32 %v601, %v602
    %v604 = vrot.slane %v603, 2
    %v605 = vadd.f32 %v603, %v604
    %v606 = vrot.slane %v605, 1
    %v607 = vadd.f32 %v605, %v606
    %v608 = vmul.f32 %v607, %v589
    %v609 = vadd.f32 %v608, 1e-05
    %v610 = vrsqrt.pop %v609
    %v611 = vmul.f32 %v610, %v609
    %v612 = vmul.f32 %v611, %v610
    %v613 = vmul.f32 0.5, %v612
    %v614 = vsub.f32 1.5, %v613
    %v615 = vmul.f32 %v610, %v614
    %vm616 = vweird.f32 %v609
    %vm617 = vweird.f32 %v610
    %vm618 = vmor %vm616, %vm617
    %v619 = vsel %vm618, %v610, %v615
    %v620 = vmul.f32 %v591, %v619
    %v621 = vmul.f32 %v592, %v619
    %v622 = vmul.f32 %v593, %v619
    %v624 = vperm.slane %v569, 0
    %v626 = vmul.f32 %v620, %v624
    %v627 = vmul.f32 %v621, %v624
    %v628 = vmul.f32 %v622, %v624
    %v630 = vperm.slane %v570, 0
    %v632 = vadd.f32 %v626, %v630
    %v633 = vadd.f32 %v627, %v630
    %v634 = vadd.f32 %v628, %v630
    %v635 = vld [vmem:[%s1] sm:$0xff]
    %v636 = vld [vmem:[%s1 + $0x8] sm:$0xff]
    %v637 = vld [vmem:[%s1 + $0x10] sm:$0xff]
    %v638 = vld [vmem:[%s25] sm:$0xff]
    %v639 = vld [vmem:[%s25 + $0x8] sm:$0xff]
    %v640 = vld [vmem:[#allocation7] sm:$0xff]
    %v641 = vld [vmem:[#allocation7 + $0x8] sm:$0xff]
    %v642 = vld [vmem:[#allocation7 + $0x10] sm:$0xf]
    %v644 = vsel %vm571, %v632, 0
    %v647 = vsel %vm571, %v633, 0
    %v650 = vsel %vm571, %v634, 0
    %vm652 = vcmask 1043456
    %v654 = vsel %vm652, %v642, 0
    %656 = vmatpush.msra.mxu0 0.0
    %657 = vmatpush.msra.mxu0 0.0
    %658 = vmatpush.msra.mxu0 0.0
    %659 = vmatpush.msra.mxu0 0.0
    %660 = vmatpush.msra.mxu0 0.0
    %661 = vmatpush.msra.mxu0 0.0
    %662 = vmatpush.msra.mxu0 0.0
    %663 = vmatpush.msra.mxu0 0.0
    %664 = vmatpush.msra.mxu0 0.0
    %665 = vmatpush.msra.mxu0 0.0
    %666 = vmatpush.msra.mxu0 0.0
    %667 = vmatpush.msra.mxu0 0.0
    %668 = vmatpush.msra.mxu0 0.0
    %669 = vmatpush.msra.mxu0 %v654
    %670 = vmatpush.msra.mxu0 %v641
    %671 = vmatpush.msra.mxu0 %v640
    %672 = vmatmul.f32.gmra.mxu0 %v644
    %v673 = vpop.f32.mrf.mxu0
    %v674 = vadd.f32 0.0, %v673
    %675 = vmatmul.f32.gmra.mxu0 %v647
    %v676 = vpop.f32.mrf.mxu0
    %v677 = vadd.f32 0.0, %v676
    %678 = vmatmul.f32.gmra.mxu0 %v650
    %v679 = vpop.f32.mrf.mxu0
    %v680 = vadd.f32 0.0, %v679
    %681 = vdwg.mxu0
    %vm682 = vcmask 130048
    %v684 = vsel %vm682, %v635, 0
    %v687 = vsel %vm682, %v636, 0
    %v690 = vsel %vm682, %v637, 0
    %692 = vmatpush.msra.mxu0 0.0
    %693 = vmatpush.msra.mxu0 0.0
    %694 = vmatpush.msra.mxu0 0.0
    %695 = vmatpush.msra.mxu0 0.0
    %696 = vmatpush.msra.mxu0 0.0
    %697 = vmatpush.msra.mxu0 0.0
    %698 = vmatpush.msra.mxu0 0.0
    %699 = vmatpush.msra.mxu0 0.0
    %700 = vmatpush.msra.mxu0 0.0
    %701 = vmatpush.msra.mxu0 0.0
    %702 = vmatpush.msra.mxu0 0.0
    %703 = vmatpush.msra.mxu0 0.0
    %704 = vmatpush.msra.mxu0 0.0
    %705 = vmatpush.msra.mxu0 0.0
    %706 = vmatpush.msra.mxu0 %v639
    %707 = vmatpush.msra.mxu0 %v638
    %708 = vmatmul.f32.gmra.mxu0 %v684
    %v709 = vpop.f32.mrf.mxu0
    %v710 = vadd.f32 %v674, %v709
    %711 = vmatmul.f32.gmra.mxu0 %v687
    %v712 = vpop.f32.mrf.mxu0
    %v713 = vadd.f32 %v677, %v712
    %714 = vmatmul.f32.gmra.mxu0 %v690
    %v715 = vpop.f32.mrf.mxu0
    %v716 = vadd.f32 %v680, %v715
    %717 = vdwg.mxu0
    %v718 = vld [vmem:[#allocation8] sm:$0x1]
    %v720 = vperm.slane %v718, 0
    %v722 = vadd.f32 %v710, %v720
    %v723 = vadd.f32 %v713, %v720
    %v724 = vadd.f32 %v716, %v720
    %v725 = vld [vmem:[%s5] sm:$0xff]
    %v726 = vld [vmem:[%s5 + $0x8] sm:$0xff]
    %v727 = vld [vmem:[%s5 + $0x10] sm:$0xff]
    %v728 = vld [vmem:[%s5 + $0x18] sm:$0xff]
    %v729 = vld [vmem:[%s5 + $0x20] sm:$0xff]
    %v730 = vld [vmem:[%s5 + $0x28] sm:$0xff]
    %v731 = vld [vmem:[#allocation10] sm:$0xff]
    %v732 = vld [vmem:[#allocation11] sm:$0x1]
    %v734 = vperm.slane %v732, 0
    %vm736 = vcmask 64512
    %v738 = vsel %vm736, %v725, 0
    %v741 = vsel %vm736, %v726, 0
    %v744 = vsel %vm736, %v727, 0
    %v747 = vsel %vm736, %v728, 0
    %v750 = vsel %vm736, %v729, 0
    %v753 = vsel %vm736, %v730, 0
    %755 = vmatpush.msra.mxu0 0.0
    %756 = vmatpush.msra.mxu0 0.0
    %757 = vmatpush.msra.mxu0 0.0
    %758 = vmatpush.msra.mxu0 0.0
    %759 = vmatpush.msra.mxu0 0.0
    %760 = vmatpush.msra.mxu0 0.0
    %761 = vmatpush.msra.mxu0 0.0
    %762 = vmatpush.msra.mxu0 0.0
    %763 = vmatpush.msra.mxu0 0.0
    %764 = vmatpush.msra.mxu0 0.0
    %765 = vmatpush.msra.mxu0 0.0
    %766 = vmatpush.msra.mxu0 0.0
    %767 = vmatpush.msra.mxu0 0.0
    %768 = vmatpush.msra.mxu0 0.0
    %769 = vmatpush.msra.mxu0 0.0
    %770 = vmatpush.msra.mxu0 %v731
    %771 = vmatmul.f32.gmra.mxu0 %v738
    %v772 = vpop.f32.mrf.mxu0
    %v773 = vadd.f32 %v734, %v772
    %774 = vmatmul.f32.gmra.mxu0 %v741
    %v775 = vpop.f32.mrf.mxu0
    %v776 = vadd.f32 %v734, %v775
    %777 = vmatmul.f32.gmra.mxu0 %v744
    %v778 = vpop.f32.mrf.mxu0
    %v779 = vadd.f32 %v734, %v778
    %780 = vmatmul.f32.gmra.mxu0 %v747
    %v781 = vpop.f32.mrf.mxu0
    %v782 = vadd.f32 %v734, %v781
    %783 = vmatmul.f32.gmra.mxu0 %v750
    %v784 = vpop.f32.mrf.mxu0
    %v785 = vadd.f32 %v734, %v784
    %786 = vmatmul.f32.gmra.mxu0 %v753
    %v787 = vpop.f32.mrf.mxu0
    %v788 = vadd.f32 %v734, %v787
    %789 = vdwg.mxu0
    %vm790 = vcmask 195584
    %v792 = vsel %vm790, %v459, 0
    %v795 = vsel %vm790, %v460, 0
    %v798 = vsel %vm790, %v461, 0
    %v801 = vsel %vm790, %v462, 0
    %v804 = vsel %vm790, %v463, 0
    %v807 = vsel %vm790, %v464, 0
    %v810 = vsel %vm790, %v491, 0
    %v813 = vsel %vm790, %v492, 0
    %v816 = vsel %vm790, %v493, 0
    %v819 = vsel %vm790, %v494, 0
    %821 = vmatpush.msra.mxu0 0.0
    %822 = vmatpush.msra.mxu0 0.0
    %823 = vmatpush.msra.mxu0 0.0
    %824 = vmatpush.msra.mxu0 0.0
    %825 = vmatpush.msra.mxu0 0.0
    %826 = vmatpush.msra.mxu0 0.0
    %827 = vmatpush.msra.mxu0 0.0
    %828 = vmatpush.msra.mxu0 0.0
    %829 = vmatpush.msra.mxu0 0.0
    %830 = vmatpush.msra.mxu0 0.0
    %831 = vmatpush.msra.mxu0 0.0
    %832 = vmatpush.msra.mxu0 0.0
    %833 = vmatpush.msra.mxu0 0.0
    %834 = vmatpush.msra.mxu0 %v724
    %835 = vmatpush.msra.mxu0 %v723
    %836 = vmatpush.msra.mxu0 %v722
    %837 = vmatmul.f32.gmra.mxu0 %v792
    %v838 = vpop.f32.mrf.mxu0
    %v839 = vadd.f32 0.0, %v838
    %840 = vmatmul.f32.gmra.mxu0 %v795
    %v841 = vpop.f32.mrf.mxu0
    %v842 = vadd.f32 0.0, %v841
    %843 = vmatmul.f32.gmra.mxu0 %v798
    %v844 = vpop.f32.mrf.mxu0
    %v845 = vadd.f32 0.0, %v844
    %846 = vmatmul.f32.gmra.mxu0 %v801
    %v847 = vpop.f32.mrf.mxu0
    %v848 = vadd.f32 0.0, %v847
    %849 = vmatmul.f32.gmra.mxu0 %v804
    %v850 = vpop.f32.mrf.mxu0
    %v851 = vadd.f32 0.0, %v850
    %852 = vmatmul.f32.gmra.mxu0 %v807
    %v853 = vpop.f32.mrf.mxu0
    %v854 = vadd.f32 0.0, %v853
    %855 = vmatmul.f32.gmra.mxu0 %v810
    %v856 = vpop.f32.mrf.mxu0
    %v857 = vadd.f32 0.0, %v856
    %858 = vmatmul.f32.gmra.mxu0 %v813
    %v859 = vpop.f32.mrf.mxu0
    %v860 = vadd.f32 0.0, %v859
    %861 = vmatmul.f32.gmra.mxu0 %v816
    %v862 = vpop.f32.mrf.mxu0
    %v863 = vadd.f32 0.0, %v862
    %864 = vmatmul.f32.gmra.mxu0 %v819
    %v865 = vpop.f32.mrf.mxu0
    %v866 = vadd.f32 0.0, %v865
    %867 = vdwg.mxu0
    %v868 = vadd.f32 %v839, %v773
    %v869 = vadd.f32 %v842, %v776
    %v870 = vadd.f32 %v845, %v779
    %v871 = vadd.f32 %v848, %v782
    %v872 = vadd.f32 %v851, %v785
    %v873 = vadd.f32 %v854, %v788
    %v874 = vmax.f32 %v868, 0.0
    %v875 = vmax.f32 %v869, 0.0
    %v876 = vmax.f32 %v870, 0.0
    %v877 = vmax.f32 %v871, 0.0
    %v878 = vmax.f32 %v872, 0.0
    %v879 = vmax.f32 %v873, 0.0
    %vm880 = vcmask 392192
    %v882 = vsel %vm880, %v477, 0
    %v885 = vsel %vm880, %v478, 0
    %v888 = vsel %vm880, %v479, 0
    %890 = vmatpush.msra.mxu0 0.0
    %891 = vmatpush.msra.mxu0 0.0
    %892 = vmatpush.msra.mxu0 0.0
    %893 = vmatpush.msra.mxu0 0.0
    %894 = vmatpush.msra.mxu0 0.0
    %895 = vmatpush.msra.mxu0 0.0
    %896 = vmatpush.msra.mxu0 0.0
    %897 = vmatpush.msra.mxu0 0.0
    %898 = vmatpush.msra.mxu0 0.0
    %899 = vmatpush.msra.mxu0 0.0
    %900 = vmatpush.msra.mxu0 %v879
    %901 = vmatpush.msra.mxu0 %v878
    %902 = vmatpush.msra.mxu0 %v877
    %903 = vmatpush.msra.mxu0 %v876
    %904 = vmatpush.msra.mxu0 %v875
    %905 = vmatpush.msra.mxu0 %v874
    %906 = vmatmul.f32.gmra.mxu0 %v882
    %v907 = vpop.f32.mrf.mxu0
    %v908 = vadd.f32 0.0, %v907
    %909 = vmatmul.f32.gmra.mxu0 %v885
    %v910 = vpop.f32.mrf.mxu0
    %v911 = vadd.f32 0.0, %v910
    %912 = vmatmul.f32.gmra.mxu0 %v888
    %v913 = vpop.f32.mrf.mxu0
    %v914 = vadd.f32 0.0, %v913
    %915 = vdwg.mxu0
    %v916 = vadd.f32 %v722, %v908
    %v917 = vadd.f32 %v723, %v911
    %v918 = vadd.f32 %v724, %v914
    %v919 = vld [vmem:[%s35] sm:$0xff]
    %v920 = vld [vmem:[%s35 + $0x8] sm:$0xff]
    %v921 = vld [vmem:[%s35 + $0x10] sm:$0xff]
    %v922 = vld [vmem:[%s35 + $0x18] sm:$0xff]
    %v923 = vld [vmem:[#allocation13] sm:$0x1]
    %v925 = vperm.slane %v923, 0
    %v928 = vsel %vm521, %v916, 0
    %v931 = vsel %vm521, %v917, 0
    %v934 = vsel %vm521, %v918, 0
    %936 = vmatpush.msra.mxu0 0.0
    %937 = vmatpush.msra.mxu0 0.0
    %938 = vmatpush.msra.mxu0 0.0
    %939 = vmatpush.msra.mxu0 0.0
    %940 = vmatpush.msra.mxu0 0.0
    %941 = vmatpush.msra.mxu0 0.0
    %942 = vmatpush.msra.mxu0 0.0
    %943 = vmatpush.msra.mxu0 0.0
    %944 = vmatpush.msra.mxu0 0.0
    %945 = vmatpush.msra.mxu0 0.0
    %946 = vmatpush.msra.mxu0 0.0
    %947 = vmatpush.msra.mxu0 0.0
    %948 = vmatpush.msra.mxu0 %v922
    %949 = vmatpush.msra.mxu0 %v921
    %950 = vmatpush.msra.mxu0 %v920
    %951 = vmatpush.msra.mxu0 %v919
    %952 = vmatmul.f32.gmra.mxu0 %v928
    %v953 = vpop.f32.mrf.mxu0
    %v954 = vadd.f32 %v925, %v953
    %955 = vmatmul.f32.gmra.mxu0 %v931
    %v956 = vpop.f32.mrf.mxu0
    %v957 = vadd.f32 %v925, %v956
    %958 = vmatmul.f32.gmra.mxu0 %v934
    %v959 = vpop.f32.mrf.mxu0
    %v960 = vadd.f32 %v925, %v959
    %961 = vdwg.mxu0
    %v962 = vmax.f32 %v954, 0.0
    %v963 = vmax.f32 %v957, 0.0
    %v964 = vmax.f32 %v960, 0.0
    %v965 = vld [vmem:[%s39] sm:$0xff]
    %v966 = vld [vmem:[%s39 + $0x8] sm:$0xff]
    %v967 = vld [vmem:[%s39 + $0x10] sm:$0xff]
    %v968 = vld [vmem:[%s39 + $0x18] sm:$0xff]
    %v969 = vld [vmem:[#allocation14] sm:$0x1]
    %v971 = vperm.slane %v969, 0
    %v974 = vsel %vm521, %v962, 0
    %v977 = vsel %vm521, %v963, 0
    %v980 = vsel %vm521, %v964, 0
    %982 = vmatpush.msra.mxu0 0.0
    %983 = vmatpush.msra.mxu0 0.0
    %984 = vmatpush.msra.mxu0 0.0
    %985 = vmatpush.msra.mxu0 0.0
    %986 = vmatpush.msra.mxu0 0.0
    %987 = vmatpush.msra.mxu0 0.0
    %988 = vmatpush.msra.mxu0 0.0
    %989 = vmatpush.msra.mxu0 0.0
    %990 = vmatpush.msra.mxu0 0.0
    %991 = vmatpush.msra.mxu0 0.0
    %992 = vmatpush.msra.mxu0 0.0
    %993 = vmatpush.msra.mxu0 0.0
    %994 = vmatpush.msra.mxu0 %v968
    %995 = vmatpush.msra.mxu0 %v967
    %996 = vmatpush.msra.mxu0 %v966
    %997 = vmatpush.msra.mxu0 %v965
    %998 = vmatmul.f32.gmra.mxu0 %v974
    %v999 = vpop.f32.mrf.mxu0
    %v1000 = vadd.f32 %v971, %v999
    %1001 = vmatmul.f32.gmra.mxu0 %v977
    %v1002 = vpop.f32.mrf.mxu0
    %v1003 = vadd.f32 %v971, %v1002
    %1004 = vmatmul.f32.gmra.mxu0 %v980
    %v1005 = vpop.f32.mrf.mxu0
    %v1006 = vadd.f32 %v971, %v1005
    %1007 = vdwg.mxu0
    %v1008 = vadd.f32 %v1000, %v722
    %v1009 = vadd.f32 %v1003, %v723
    %v1010 = vadd.f32 %v1006, %v724
    %v1011 = vld [vmem:[#allocation16] sm:$0x1]
    %v1012 = vld [vmem:[#allocation17] sm:$0x1]
    %v1013 = vsel %vm521, %v1008, 0.0
    %v1014 = vsel %vm521, %v1009, 0.0
    %v1015 = vadd.f32 %v1013, %v1014
    %v1016 = vsel %vm521, %v1010, 0.0
    %v1017 = vadd.f32 %v1015, %v1016
    %v1018 = vrot.slane %v1017, 4
    %v1019 = vadd.f32 %v1017, %v1018
    %v1020 = vrot.slane %v1019, 2
    %v1021 = vadd.f32 %v1019, %v1020
    %v1022 = vrot.slane %v1021, 1
    %v1023 = vadd.f32 %v1021, %v1022
    %v1024 = vmul.f32 %v1023, %v589
    %v1025 = vsub.f32 %v1008, %v1024
    %v1026 = vsub.f32 %v1009, %v1024
    %v1027 = vsub.f32 %v1010, %v1024
    %v1028 = vmul.f32 %v1025, %v1025
    %v1029 = vmul.f32 %v1026, %v1026
    %v1030 = vmul.f32 %v1027, %v1027
    %v1031 = vsel %vm521, %v1028, 0.0
    %v1032 = vsel %vm521, %v1029, 0.0
    %v1033 = vadd.f32 %v1031, %v1032
    %v1034 = vsel %vm521, %v1030, 0.0
    %v1035 = vadd.f32 %v1033, %v1034
    %v1036 = vrot.slane %v1035, 4
    %v1037 = vadd.f32 %v1035, %v1036
    %v1038 = vrot.slane %v1037, 2
    %v1039 = vadd.f32 %v1037, %v1038
    %v1040 = vrot.slane %v1039, 1
    %v1041 = vadd.f32 %v1039, %v1040
    %v1042 = vmul.f32 %v1041, %v589
    %v1043 = vadd.f32 %v1042, 1e-05
    %v1044 = vrsqrt.pop %v1043
    %v1045 = vmul.f32 %v1044, %v1043
    %v1046 = vmul.f32 %v1045, %v1044
    %v1047 = vmul.f32 0.5, %v1046
    %v1048 = vsub.f32 1.5, %v1047
    %v1049 = vmul.f32 %v1044, %v1048
    %vm1050 = vweird.f32 %v1043
    %vm1051 = vweird.f32 %v1044
    %vm1052 = vmor %vm1050, %vm1051
    %v1053 = vsel %vm1052, %v1044, %v1049
    %v1054 = vmul.f32 %v1025, %v1053
    %v1055 = vmul.f32 %v1026, %v1053
    %v1056 = vmul.f32 %v1027, %v1053
    %v1058 = vperm.slane %v1011, 0
    %v1060 = vmul.f32 %v1054, %v1058
    %v1061 = vmul.f32 %v1055, %v1058
    %v1062 = vmul.f32 %v1056, %v1058
    %v1064 = vperm.slane %v1012, 0
    %v1066 = vadd.f32 %v1060, %v1064
    %v1067 = vadd.f32 %v1061, %v1064
    %v1068 = vadd.f32 %v1062, %v1064
    %v1069 = vld [vmem:[%s47] sm:$0xff]
    %v1070 = vld [vmem:[%s47 + $0x8] sm:$0xff]
    %v1071 = vld [vmem:[%s47 + $0x10] sm:$0xff]
    %v1072 = vld [vmem:[%s47 + $0x18] sm:$0xff]
    %v1073 = vld [vmem:[#allocation19] sm:$0x1]
    %v1075 = vperm.slane %v1073, 0
    %v1078 = vsel %vm521, %v857, 0
    %v1081 = vsel %vm521, %v860, 0
    %v1084 = vsel %vm521, %v863, 0
    %v1087 = vsel %vm521, %v866, 0
    %1089 = vmatpush.msra.mxu0 0.0
    %1090 = vmatpush.msra.mxu0 0.0
    %1091 = vmatpush.msra.mxu0 0.0
    %1092 = vmatpush.msra.mxu0 0.0
    %1093 = vmatpush.msra.mxu0 0.0
    %1094 = vmatpush.msra.mxu0 0.0
    %1095 = vmatpush.msra.mxu0 0.0
    %1096 = vmatpush.msra.mxu0 0.0
    %1097 = vmatpush.msra.mxu0 0.0
    %1098 = vmatpush.msra.mxu0 0.0
    %1099 = vmatpush.msra.mxu0 0.0
    %1100 = vmatpush.msra.mxu0 0.0
    %1101 = vmatpush.msra.mxu0 %v1072
    %1102 = vmatpush.msra.mxu0 %v1071
    %1103 = vmatpush.msra.mxu0 %v1070
    %1104 = vmatpush.msra.mxu0 %v1069
    %1105 = vmatmul.f32.gmra.mxu0 %v1078
    %v1106 = vpop.f32.mrf.mxu0
    %v1107 = vadd.f32 %v1075, %v1106
    %1108 = vmatmul.f32.gmra.mxu0 %v1081
    %v1109 = vpop.f32.mrf.mxu0
    %v1110 = vadd.f32 %v1075, %v1109
    %1111 = vmatmul.f32.gmra.mxu0 %v1084
    %v1112 = vpop.f32.mrf.mxu0
    %v1113 = vadd.f32 %v1075, %v1112
    %1114 = vmatmul.f32.gmra.mxu0 %v1087
    %v1115 = vpop.f32.mrf.mxu0
    %v1116 = vadd.f32 %v1075, %v1115
    %1117 = vdwg.mxu0
    %1122 = vrot.lane.b32.xlu0 %v1107, 96
    %v1123 = vpop.permute.xlu0 %1122
    %1124 = vrot.lane.b32.xlu0 %v1110, 96
    %v1125 = vpop.permute.xlu0 %1124
    %1126 = vrot.lane.b32.xlu0 %v1113, 96
    %v1127 = vpop.permute.xlu0 %1126
    %1128 = vrot.lane.b32.xlu0 %v1116, 96
    %v1129 = vpop.permute.xlu0 %1128
    %v1130 = vsel %vm736, %v1107, 0
    %v1132 = vsel %vm736, %v1110, 0
    %v1134 = vsel %vm736, %v1113, 0
    %v1136 = vsel %vm736, %v1116, 0
    %v1138 = vsel %vm736, %v1123, 0
    %v1140 = vsel %vm736, %v1125, 0
    %v1142 = vsel %vm736, %v1127, 0
    %v1144 = vsel %vm736, %v1129, 0
    %1146 = vmatpush.xpose.msra.mxu0 0.0
    %1147 = vmatpush.xpose.msra.mxu0 0.0
    %1148 = vmatpush.xpose.msra.mxu0 0.0
    %1149 = vmatpush.xpose.msra.mxu0 0.0
    %1150 = vmatpush.xpose.msra.mxu0 0.0
    %1151 = vmatpush.xpose.msra.mxu0 0.0
    %1152 = vmatpush.xpose.msra.mxu0 0.0
    %1153 = vmatpush.xpose.msra.mxu0 0.0
    %1154 = vmatpush.xpose.msra.mxu0 0.0
    %1155 = vmatpush.xpose.msra.mxu0 0.0
    %1156 = vmatpush.xpose.msra.mxu0 0.0
    %1157 = vmatpush.xpose.msra.mxu0 0.0
    %1158 = vmatpush.xpose.msra.mxu0 %v1144
    %1159 = vmatpush.xpose.msra.mxu0 %v1142
    %1160 = vmatpush.xpose.msra.mxu0 %v1140
    %1161 = vmatpush.xpose.msra.mxu0 %v1138
    %1162 = vmatmul.f32.gmra.mxu0 %v1130
    %v1163 = vpop.f32.mrf.mxu0
    %v1164 = vadd.f32 %v562, %v1163
    %1165 = vmatmul.f32.gmra.mxu0 %v1132
    %v1166 = vpop.f32.mrf.mxu0
    %v1167 = vadd.f32 %v563, %v1166
    %1168 = vmatmul.f32.gmra.mxu0 %v1134
    %v1169 = vpop.f32.mrf.mxu0
    %v1170 = vadd.f32 %v564, %v1169
    %1171 = vmatmul.f32.gmra.mxu0 %v1136
    %v1172 = vpop.f32.mrf.mxu0
    %v1173 = vadd.f32 %v565, %v1172
    %1174 = vdwg.mxu0
    %v1175 = vsel %vm521, %v1164, -inf
    %1176 = vmax.xlane.f32.xlu0 %v1175
    %v1177 = vpop.xlane.xlu0 %1176
    %v1178 = vsel %vm521, %v1167, -inf
    %1179 = vmax.xlane.f32.xlu0 %v1178
    %v1180 = vpop.xlane.xlu0 %1179
    %v1181 = vsel %vm521, %v1170, -inf
    %1182 = vmax.xlane.f32.xlu0 %v1181
    %v1183 = vpop.xlane.xlu0 %1182
    %v1184 = vsel %vm521, %v1173, -inf
    %1185 = vmax.xlane.f32.xlu0 %v1184
    %v1186 = vpop.xlane.xlu0 %1185
    %v1187 = vsub.f32 %v1164, %v1177
    %v1188 = vsub.f32 %v1167, %v1180
    %v1189 = vsub.f32 %v1170, %v1183
    %v1190 = vsub.f32 %v1173, %v1186
    %v1191 = vmul.f32 %v1187, 1.442695
    %v1192 = vpow.pop %v1191
    %v1193 = vmul.f32 %v1188, 1.442695
    %v1194 = vpow.pop %v1193
    %v1195 = vmul.f32 %v1189, 1.442695
    %v1196 = vpow.pop %v1195
    %v1197 = vmul.f32 %v1190, 1.442695
    %v1198 = vpow.pop %v1197
    %v1199 = vsel %vm521, %v1192, 0.0
    %1200 = vadd.xlane.f32.xlu0 %v1199
    %v1201 = vpop.xlane.xlu0 %1200
    %v1202 = vsel %vm521, %v1194, 0.0
    %1203 = vadd.xlane.f32.xlu0 %v1202
    %v1204 = vpop.xlane.xlu0 %1203
    %v1205 = vsel %vm521, %v1196, 0.0
    %1206 = vadd.xlane.f32.xlu0 %v1205
    %v1207 = vpop.xlane.xlu0 %1206
    %v1208 = vsel %vm521, %v1198, 0.0
    %1209 = vadd.xlane.f32.xlu0 %v1208
    %v1210 = vpop.xlane.xlu0 %1209
    %v1211 = vrcp.pop %v1201
    %v1212 = vmul.f32 %v1201, %v1211
    %v1213 = vsub.f32 1.0, %v1212
    %v1214 = vmul.f32 %v1211, %v1213
    %v1215 = vadd.f32 %v1211, %v1214
    %vm1216 = vweird.f32 %v1201
    %vm1217 = vweird.f32 %v1211
    %vm1218 = vmor %vm1216, %vm1217
    %v1219 = vsel %vm1218, %v1211, %v1215
    %v1220 = vand.u32 2147483647, %v1201
    %vm1221 = vcmp.eq.f32.partialorder %v1220, 8.507059e+37
    %v1222 = vand.u32 %v1201, 2147483648
    %v1223 = vor.u32 1.1754944e-38, %v1222
    %v1224 = vsel %vm1221, %v1223, %v1219
    %v1225 = vmul.f32 %v1192, %v1224
    %v1226 = vrcp.pop %v1204
    %v1227 = vmul.f32 %v1204, %v1226
    %v1228 = vsub.f32 1.0, %v1227
    %v1229 = vmul.f32 %v1226, %v1228
    %v1230 = vadd.f32 %v1226, %v1229
    %vm1231 = vweird.f32 %v1204
    %vm1232 = vweird.f32 %v1226
    %vm1233 = vmor %vm1231, %vm1232
    %v1234 = vsel %vm1233, %v1226, %v1230
    %v1235 = vand.u32 2147483647, %v1204
    %vm1236 = vcmp.eq.f32.partialorder %v1235, 8.507059e+37
    %v1237 = vand.u32 %v1204, 2147483648
    %v1238 = vor.u32 1.1754944e-38, %v1237
    %v1239 = vsel %vm1236, %v1238, %v1234
    %v1240 = vmul.f32 %v1194, %v1239
    %v1241 = vrcp.pop %v1207
    %v1242 = vmul.f32 %v1207, %v1241
    %v1243 = vsub.f32 1.0, %v1242
    %v1244 = vmul.f32 %v1241, %v1243
    %v1245 = vadd.f32 %v1241, %v1244
    %vm1246 = vweird.f32 %v1207
    %vm1247 = vweird.f32 %v1241
    %vm1248 = vmor %vm1246, %vm1247
    %v1249 = vsel %vm1248, %v1241, %v1245
    %v1250 = vand.u32 2147483647, %v1207
    %vm1251 = vcmp.eq.f32.partialorder %v1250, 8.507059e+37
    %v1252 = vand.u32 %v1207, 2147483648
    %v1253 = vor.u32 1.1754944e-38, %v1252
    %v1254 = vsel %vm1251, %v1253, %v1249
    %v1255 = vmul.f32 %v1196, %v1254
    %v1256 = vrcp.pop %v1210
    %v1257 = vmul.f32 %v1210, %v1256
    %v1258 = vsub.f32 1.0, %v1257
    %v1259 = vmul.f32 %v1256, %v1258
    %v1260 = vadd.f32 %v1256, %v1259
    %vm1261 = vweird.f32 %v1210
    %vm1262 = vweird.f32 %v1256
    %vm1263 = vmor %vm1261, %vm1262
    %v1264 = vsel %vm1263, %v1256, %v1260
    %v1265 = vand.u32 2147483647, %v1210
    %vm1266 = vcmp.eq.f32.partialorder %v1265, 8.507059e+37
    %v1267 = vand.u32 %v1210, 2147483648
    %v1268 = vor.u32 1.1754944e-38, %v1267
    %v1269 = vsel %vm1266, %v1268, %v1264
    %v1270 = vmul.f32 %v1198, %v1269
    %1271 = vrot.lane.b32.xlu0 %v1107, 64
    %v1272 = vpop.permute.xlu0 %1271
    %1273 = vrot.lane.b32.xlu0 %v1110, 64
    %v1274 = vpop.permute.xlu0 %1273
    %1275 = vrot.lane.b32.xlu0 %v1113, 64
    %v1276 = vpop.permute.xlu0 %1275
    %1277 = vrot.lane.b32.xlu0 %v1116, 64
    %v1278 = vpop.permute.xlu0 %1277
    %v1284 = vsel %vm521, %v1225, 0
    %v1287 = vsel %vm521, %v1240, 0
    %v1290 = vsel %vm521, %v1255, 0
    %v1293 = vsel %vm521, %v1270, 0
    %1295 = vmatpush.msra.mxu0 0.0
    %1296 = vmatpush.msra.mxu0 0.0
    %1297 = vmatpush.msra.mxu0 0.0
    %1298 = vmatpush.msra.mxu0 0.0
    %1299 = vmatpush.msra.mxu0 0.0
    %1300 = vmatpush.msra.mxu0 0.0
    %1301 = vmatpush.msra.mxu0 0.0
    %1302 = vmatpush.msra.mxu0 0.0
    %1303 = vmatpush.msra.mxu0 0.0
    %1304 = vmatpush.msra.mxu0 0.0
    %1305 = vmatpush.msra.mxu0 0.0
    %1306 = vmatpush.msra.mxu0 0.0
    %1307 = vmatpush.msra.mxu0 %v1278
    %1308 = vmatpush.msra.mxu0 %v1276
    %1309 = vmatpush.msra.mxu0 %v1274
    %1310 = vmatpush.msra.mxu0 %v1272
    %1311 = vmatmul.f32.gmra.mxu0 %v1284
    %v1312 = vpop.f32.mrf.mxu0
    %v1313 = vadd.f32 0.0, %v1312
    %1314 = vmatmul.f32.gmra.mxu0 %v1287
    %v1315 = vpop.f32.mrf.mxu0
    %v1316 = vadd.f32 0.0, %v1315
    %1317 = vmatmul.f32.gmra.mxu0 %v1290
    %v1318 = vpop.f32.mrf.mxu0
    %v1319 = vadd.f32 0.0, %v1318
    %1320 = vmatmul.f32.gmra.mxu0 %v1293
    %v1321 = vpop.f32.mrf.mxu0
    %v1322 = vadd.f32 0.0, %v1321
    %1323 = vdwg.mxu0
    %1324 = vrot.lane.b32.xlu0 %v1107, 120
    %v1325 = vpop.permute.xlu0 %1324
    %1326 = vrot.lane.b32.xlu0 %v1110, 120
    %v1327 = vpop.permute.xlu0 %1326
    %1328 = vrot.lane.b32.xlu0 %v1113, 120
    %v1329 = vpop.permute.xlu0 %1328
    %1330 = vrot.lane.b32.xlu0 %v1116, 120
    %v1331 = vpop.permute.xlu0 %1330
    %1332 = vrot.lane.b32.xlu0 %v1107, 88
    %v1333 = vpop.permute.xlu0 %1332
    %1334 = vrot.lane.b32.xlu0 %v1110, 88
    %v1335 = vpop.permute.xlu0 %1334
    %1336 = vrot.lane.b32.xlu0 %v1113, 88
    %v1337 = vpop.permute.xlu0 %1336
    %1338 = vrot.lane.b32.xlu0 %v1116, 88
    %v1339 = vpop.permute.xlu0 %1338
    %v1340 = vsel %vm736, %v1325, 0
    %v1342 = vsel %vm736, %v1327, 0
    %v1344 = vsel %vm736, %v1329, 0
    %v1346 = vsel %vm736, %v1331, 0
    %v1348 = vsel %vm736, %v1333, 0
    %v1350 = vsel %vm736, %v1335, 0
    %v1352 = vsel %vm736, %v1337, 0
    %v1354 = vsel %vm736, %v1339, 0
    %1356 = vmatpush.xpose.msra.mxu0 0.0
    %1357 = vmatpush.xpose.msra.mxu0 0.0
    %1358 = vmatpush.xpose.msra.mxu0 0.0
    %1359 = vmatpush.xpose.msra.mxu0 0.0
    %1360 = vmatpush.xpose.msra.mxu0 0.0
    %1361 = vmatpush.xpose.msra.mxu0 0.0
    %1362 = vmatpush.xpose.msra.mxu0 0.0
    %1363 = vmatpush.xpose.msra.mxu0 0.0
    %1364 = vmatpush.xpose.msra.mxu0 0.0
    %1365 = vmatpush.xpose.msra.mxu0 0.0
    %1366 = vmatpush.xpose.msra.mxu0 0.0
    %1367 = vmatpush.xpose.msra.mxu0 0.0
    %1368 = vmatpush.xpose.msra.mxu0 %v1354
    %1369 = vmatpush.xpose.msra.mxu0 %v1352
    %1370 = vmatpush.xpose.msra.mxu0 %v1350
    %1371 = vmatpush.xpose.msra.mxu0 %v1348
    %1372 = vmatmul.f32.gmra.mxu0 %v1340
    %v1373 = vpop.f32.mrf.mxu0
    %v1374 = vadd.f32 %v562, %v1373
    %1375 = vmatmul.f32.gmra.mxu0 %v1342
    %v1376 = vpop.f32.mrf.mxu0
    %v1377 = vadd.f32 %v563, %v1376
    %1378 = vmatmul.f32.gmra.mxu0 %v1344
    %v1379 = vpop.f32.mrf.mxu0
    %v1380 = vadd.f32 %v564, %v1379
    %1381 = vmatmul.f32.gmra.mxu0 %v1346
    %v1382 = vpop.f32.mrf.mxu0
    %v1383 = vadd.f32 %v565, %v1382
    %1384 = vdwg.mxu0
    %v1385 = vsel %vm521, %v1374, -inf
    %1386 = vmax.xlane.f32.xlu0 %v1385
    %v1387 = vpop.xlane.xlu0 %1386
    %v1388 = vsel %vm521, %v1377, -inf
    %1389 = vmax.xlane.f32.xlu0 %v1388
    %v1390 = vpop.xlane.xlu0 %1389
    %v1391 = vsel %vm521, %v1380, -inf
    %1392 = vmax.xlane.f32.xlu0 %v1391
    %v1393 = vpop.xlane.xlu0 %1392
    %v1394 = vsel %vm521, %v1383, -inf
    %1395 = vmax.xlane.f32.xlu0 %v1394
    %v1396 = vpop.xlane.xlu0 %1395
    %v1397 = vsub.f32 %v1374, %v1387
    %v1398 = vsub.f32 %v1377, %v1390
    %v1399 = vsub.f32 %v1380, %v1393
    %v1400 = vsub.f32 %v1383, %v1396
    %v1401 = vmul.f32 %v1397, 1.442695
    %v1402 = vpow.pop %v1401
    %v1403 = vmul.f32 %v1398, 1.442695
    %v1404 = vpow.pop %v1403
    %v1405 = vmul.f32 %v1399, 1.442695
    %v1406 = vpow.pop %v1405
    %v1407 = vmul.f32 %v1400, 1.442695
    %v1408 = vpow.pop %v1407
    %v1409 = vsel %vm521, %v1402, 0.0
    %1410 = vadd.xlane.f32.xlu0 %v1409
    %v1411 = vpop.xlane.xlu0 %1410
    %v1412 = vsel %vm521, %v1404, 0.0
    %1413 = vadd.xlane.f32.xlu0 %v1412
    %v1414 = vpop.xlane.xlu0 %1413
    %v1415 = vsel %vm521, %v1406, 0.0
    %1416 = vadd.xlane.f32.xlu0 %v1415
    %v1417 = vpop.xlane.xlu0 %1416
    %v1418 = vsel %vm521, %v1408, 0.0
    %1419 = vadd.xlane.f32.xlu0 %v1418
    %v1420 = vpop.xlane.xlu0 %1419
    %v1421 = vrcp.pop %v1411
    %v1422 = vmul.f32 %v1411, %v1421
    %v1423 = vsub.f32 1.0, %v1422
    %v1424 = vmul.f32 %v1421, %v1423
    %v1425 = vadd.f32 %v1421, %v1424
    %vm1426 = vweird.f32 %v1411
    %vm1427 = vweird.f32 %v1421
    %vm1428 = vmor %vm1426, %vm1427
    %v1429 = vsel %vm1428, %v1421, %v1425
    %v1430 = vand.u32 2147483647, %v1411
    %vm1431 = vcmp.eq.f32.partialorder %v1430, 8.507059e+37
    %v1432 = vand.u32 %v1411, 2147483648
    %v1433 = vor.u32 1.1754944e-38, %v1432
    %v1434 = vsel %vm1431, %v1433, %v1429
    %v1435 = vmul.f32 %v1402, %v1434
    %v1436 = vrcp.pop %v1414
    %v1437 = vmul.f32 %v1414, %v1436
    %v1438 = vsub.f32 1.0, %v1437
    %v1439 = vmul.f32 %v1436, %v1438
    %v1440 = vadd.f32 %v1436, %v1439
    %vm1441 = vweird.f32 %v1414
    %vm1442 = vweird.f32 %v1436
    %vm1443 = vmor %vm1441, %vm1442
    %v1444 = vsel %vm1443, %v1436, %v1440
    %v1445 = vand.u32 2147483647, %v1414
    %vm1446 = vcmp.eq.f32.partialorder %v1445, 8.507059e+37
    %v1447 = vand.u32 %v1414, 2147483648
    %v1448 = vor.u32 1.1754944e-38, %v1447
    %v1449 = vsel %vm1446, %v1448, %v1444
    %v1450 = vmul.f32 %v1404, %v1449
    %v1451 = vrcp.pop %v1417
    %v1452 = vmul.f32 %v1417, %v1451
    %v1453 = vsub.f32 1.0, %v1452
    %v1454 = vmul.f32 %v1451, %v1453
    %v1455 = vadd.f32 %v1451, %v1454
    %vm1456 = vweird.f32 %v1417
    %vm1457 = vweird.f32 %v1451
    %vm1458 = vmor %vm1456, %vm1457
    %v1459 = vsel %vm1458, %v1451, %v1455
    %v1460 = vand.u32 2147483647, %v1417
    %vm1461 = vcmp.eq.f32.partialorder %v1460, 8.507059e+37
    %v1462 = vand.u32 %v1417, 2147483648
    %v1463 = vor.u32 1.1754944e-38, %v1462
    %v1464 = vsel %vm1461, %v1463, %v1459
    %v1465 = vmul.f32 %v1406, %v1464
    %v1466 = vrcp.pop %v1420
    %v1467 = vmul.f32 %v1420, %v1466
    %v1468 = vsub.f32 1.0, %v1467
    %v1469 = vmul.f32 %v1466, %v1468
    %v1470 = vadd.f32 %v1466, %v1469
    %vm1471 = vweird.f32 %v1420
    %vm1472 = vweird.f32 %v1466
    %vm1473 = vmor %vm1471, %vm1472
    %v1474 = vsel %vm1473, %v1466, %v1470
    %v1475 = vand.u32 2147483647, %v1420
    %vm1476 = vcmp.eq.f32.partialorder %v1475, 8.507059e+37
    %v1477 = vand.u32 %v1420, 2147483648
    %v1478 = vor.u32 1.1754944e-38, %v1477
    %v1479 = vsel %vm1476, %v1478, %v1474
    %v1480 = vmul.f32 %v1408, %v1479
    %1481 = vrot.lane.b32.xlu0 %v1107, 56
    %v1482 = vpop.permute.xlu0 %1481
    %1483 = vrot.lane.b32.xlu0 %v1110, 56
    %v1484 = vpop.permute.xlu0 %1483
    %1485 = vrot.lane.b32.xlu0 %v1113, 56
    %v1486 = vpop.permute.xlu0 %1485
    %1487 = vrot.lane.b32.xlu0 %v1116, 56
    %v1488 = vpop.permute.xlu0 %1487
    %v1494 = vsel %vm521, %v1435, 0
    %v1497 = vsel %vm521, %v1450, 0
    %v1500 = vsel %vm521, %v1465, 0
    %v1503 = vsel %vm521, %v1480, 0
    %1505 = vmatpush.msra.mxu0 0.0
    %1506 = vmatpush.msra.mxu0 0.0
    %1507 = vmatpush.msra.mxu0 0.0
    %1508 = vmatpush.msra.mxu0 0.0
    %1509 = vmatpush.msra.mxu0 0.0
    %1510 = vmatpush.msra.mxu0 0.0
    %1511 = vmatpush.msra.mxu0 0.0
    %1512 = vmatpush.msra.mxu0 0.0
    %1513 = vmatpush.msra.mxu0 0.0
    %1514 = vmatpush.msra.mxu0 0.0
    %1515 = vmatpush.msra.mxu0 0.0
    %1516 = vmatpush.msra.mxu0 0.0
    %1517 = vmatpush.msra.mxu0 %v1488
    %1518 = vmatpush.msra.mxu0 %v1486
    %1519 = vmatpush.msra.mxu0 %v1484
    %1520 = vmatpush.msra.mxu0 %v1482
    %1521 = vmatmul.f32.gmra.mxu0 %v1494
    %v1522 = vpop.f32.mrf.mxu0
    %v1523 = vadd.f32 0.0, %v1522
    %1524 = vmatmul.f32.gmra.mxu0 %v1497
    %v1525 = vpop.f32.mrf.mxu0
    %v1526 = vadd.f32 0.0, %v1525
    %1527 = vmatmul.f32.gmra.mxu0 %v1500
    %v1528 = vpop.f32.mrf.mxu0
    %v1529 = vadd.f32 0.0, %v1528
    %1530 = vmatmul.f32.gmra.mxu0 %v1503
    %v1531 = vpop.f32.mrf.mxu0
    %v1532 = vadd.f32 0.0, %v1531
    %1533 = vdwg.mxu0
    %1534 = vrot.lane.b32.xlu0 %v1107, 112
    %v1535 = vpop.permute.xlu0 %1534
    %1536 = vrot.lane.b32.xlu0 %v1110, 112
    %v1537 = vpop.permute.xlu0 %1536
    %1538 = vrot.lane.b32.xlu0 %v1113, 112
    %v1539 = vpop.permute.xlu0 %1538
    %1540 = vrot.lane.b32.xlu0 %v1116, 112
    %v1541 = vpop.permute.xlu0 %1540
    %1542 = vrot.lane.b32.xlu0 %v1107, 80
    %v1543 = vpop.permute.xlu0 %1542
    %1544 = vrot.lane.b32.xlu0 %v1110, 80
    %v1545 = vpop.permute.xlu0 %1544
    %1546 = vrot.lane.b32.xlu0 %v1113, 80
    %v1547 = vpop.permute.xlu0 %1546
    %1548 = vrot.lane.b32.xlu0 %v1116, 80
    %v1549 = vpop.permute.xlu0 %1548
    %v1550 = vsel %vm736, %v1535, 0
    %v1552 = vsel %vm736, %v1537, 0
    %v1554 = vsel %vm736, %v1539, 0
    %v1556 = vsel %vm736, %v1541, 0
    %v1558 = vsel %vm736, %v1543, 0
    %v1560 = vsel %vm736, %v1545, 0
    %v1562 = vsel %vm736, %v1547, 0
    %v1564 = vsel %vm736, %v1549, 0
    %1566 = vmatpush.xpose.msra.mxu0 0.0
    %1567 = vmatpush.xpose.msra.mxu0 0.0
    %1568 = vmatpush.xpose.msra.mxu0 0.0
    %1569 = vmatpush.xpose.msra.mxu0 0.0
    %1570 = vmatpush.xpose.msra.mxu0 0.0
    %1571 = vmatpush.xpose.msra.mxu0 0.0
    %1572 = vmatpush.xpose.msra.mxu0 0.0
    %1573 = vmatpush.xpose.msra.mxu0 0.0
    %1574 = vmatpush.xpose.msra.mxu0 0.0
    %1575 = vmatpush.xpose.msra.mxu0 0.0
    %1576 = vmatpush.xpose.msra.mxu0 0.0
    %1577 = vmatpush.xpose.msra.mxu0 0.0
    %1578 = vmatpush.xpose.msra.mxu0 %v1564
    %1579 = vmatpush.xpose.msra.mxu0 %v1562
    %1580 = vmatpush.xpose.msra.mxu0 %v1560
    %1581 = vmatpush.xpose.msra.mxu0 %v1558
    %1582 = vmatmul.f32.gmra.mxu0 %v1550
    %v1583 = vpop.f32.mrf.mxu0
    %v1584 = vadd.f32 %v562, %v1583
    %1585 = vmatmul.f32.gmra.mxu0 %v1552
    %v1586 = vpop.f32.mrf.mxu0
    %v1587 = vadd.f32 %v563, %v1586
    %1588 = vmatmul.f32.gmra.mxu0 %v1554
    %v1589 = vpop.f32.mrf.mxu0
    %v1590 = vadd.f32 %v564, %v1589
    %1591 = vmatmul.f32.gmra.mxu0 %v1556
    %v1592 = vpop.f32.mrf.mxu0
    %v1593 = vadd.f32 %v565, %v1592
    %1594 = vdwg.mxu0
    %v1595 = vsel %vm521, %v1584, -inf
    %1596 = vmax.xlane.f32.xlu0 %v1595
    %v1597 = vpop.xlane.xlu0 %1596
    %v1598 = vsel %vm521, %v1587, -inf
    %1599 = vmax.xlane.f32.xlu0 %v1598
    %v1600 = vpop.xlane.xlu0 %1599
    %v1601 = vsel %vm521, %v1590, -inf
    %1602 = vmax.xlane.f32.xlu0 %v1601
    %v1603 = vpop.xlane.xlu0 %1602
    %v1604 = vsel %vm521, %v1593, -inf
    %1605 = vmax.xlane.f32.xlu0 %v1604
    %v1606 = vpop.xlane.xlu0 %1605
    %v1607 = vsub.f32 %v1584, %v1597
    %v1608 = vsub.f32 %v1587, %v1600
    %v1609 = vsub.f32 %v1590, %v1603
    %v1610 = vsub.f32 %v1593, %v1606
    %v1611 = vmul.f32 %v1607, 1.442695
    %v1612 = vpow.pop %v1611
    %v1613 = vmul.f32 %v1608, 1.442695
    %v1614 = vpow.pop %v1613
    %v1615 = vmul.f32 %v1609, 1.442695
    %v1616 = vpow.pop %v1615
    %v1617 = vmul.f32 %v1610, 1.442695
    %v1618 = vpow.pop %v1617
    %v1619 = vsel %vm521, %v1612, 0.0
    %1620 = vadd.xlane.f32.xlu0 %v1619
    %v1621 = vpop.xlane.xlu0 %1620
    %v1622 = vsel %vm521, %v1614, 0.0
    %1623 = vadd.xlane.f32.xlu0 %v1622
    %v1624 = vpop.xlane.xlu0 %1623
    %v1625 = vsel %vm521, %v1616, 0.0
    %1626 = vadd.xlane.f32.xlu0 %v1625
    %v1627 = vpop.xlane.xlu0 %1626
    %v1628 = vsel %vm521, %v1618, 0.0
    %1629 = vadd.xlane.f32.xlu0 %v1628
    %v1630 = vpop.xlane.xlu0 %1629
    %v1631 = vrcp.pop %v1621
    %v1632 = vmul.f32 %v1621, %v1631
    %v1633 = vsub.f32 1.0, %v1632
    %v1634 = vmul.f32 %v1631, %v1633
    %v1635 = vadd.f32 %v1631, %v1634
    %vm1636 = vweird.f32 %v1621
    %vm1637 = vweird.f32 %v1631
    %vm1638 = vmor %vm1636, %vm1637
    %v1639 = vsel %vm1638, %v1631, %v1635
    %v1640 = vand.u32 2147483647, %v1621
    %vm1641 = vcmp.eq.f32.partialorder %v1640, 8.507059e+37
    %v1642 = vand.u32 %v1621, 2147483648
    %v1643 = vor.u32 1.1754944e-38, %v1642
    %v1644 = vsel %vm1641, %v1643, %v1639
    %v1645 = vmul.f32 %v1612, %v1644
    %v1646 = vrcp.pop %v1624
    %v1647 = vmul.f32 %v1624, %v1646
    %v1648 = vsub.f32 1.0, %v1647
    %v1649 = vmul.f32 %v1646, %v1648
    %v1650 = vadd.f32 %v1646, %v1649
    %vm1651 = vweird.f32 %v1624
    %vm1652 = vweird.f32 %v1646
    %vm1653 = vmor %vm1651, %vm1652
    %v1654 = vsel %vm1653, %v1646, %v1650
    %v1655 = vand.u32 2147483647, %v1624
    %vm1656 = vcmp.eq.f32.partialorder %v1655, 8.507059e+37
    %v1657 = vand.u32 %v1624, 2147483648
    %v1658 = vor.u32 1.1754944e-38, %v1657
    %v1659 = vsel %vm1656, %v1658, %v1654
    %v1660 = vmul.f32 %v1614, %v1659
    %v1661 = vrcp.pop %v1627
    %v1662 = vmul.f32 %v1627, %v1661
    %v1663 = vsub.f32 1.0, %v1662
    %v1664 = vmul.f32 %v1661, %v1663
    %v1665 = vadd.f32 %v1661, %v1664
    %vm1666 = vweird.f32 %v1627
    %vm1667 = vweird.f32 %v1661
    %vm1668 = vmor %vm1666, %vm1667
    %v1669 = vsel %vm1668, %v1661, %v1665
    %v1670 = vand.u32 2147483647, %v1627
    %vm1671 = vcmp.eq.f32.partialorder %v1670, 8.507059e+37
    %v1672 = vand.u32 %v1627, 2147483648
    %v1673 = vor.u32 1.1754944e-38, %v1672
    %v1674 = vsel %vm1671, %v1673, %v1669
    %v1675 = vmul.f32 %v1616, %v1674
    %v1676 = vrcp.pop %v1630
    %v1677 = vmul.f32 %v1630, %v1676
    %v1678 = vsub.f32 1.0, %v1677
    %v1679 = vmul.f32 %v1676, %v1678
    %v1680 = vadd.f32 %v1676, %v1679
    %vm1681 = vweird.f32 %v1630
    %vm1682 = vweird.f32 %v1676
    %vm1683 = vmor %vm1681, %vm1682
    %v1684 = vsel %vm1683, %v1676, %v1680
    %v1685 = vand.u32 2147483647, %v1630
    %vm1686 = vcmp.eq.f32.partialorder %v1685, 8.507059e+37
    %v1687 = vand.u32 %v1630, 2147483648
    %v1688 = vor.u32 1.1754944e-38, %v1687
    %v1689 = vsel %vm1686, %v1688, %v1684
    %v1690 = vmul.f32 %v1618, %v1689
    %1691 = vrot.lane.b32.xlu0 %v1107, 48
    %v1692 = vpop.permute.xlu0 %1691
    %1693 = vrot.lane.b32.xlu0 %v1110, 48
    %v1694 = vpop.permute.xlu0 %1693
    %1695 = vrot.lane.b32.xlu0 %v1113, 48
    %v1696 = vpop.permute.xlu0 %1695
    %1697 = vrot.lane.b32.xlu0 %v1116, 48
    %v1698 = vpop.permute.xlu0 %1697
    %v1704 = vsel %vm521, %v1645, 0
    %v1707 = vsel %vm521, %v1660, 0
    %v1710 = vsel %vm521, %v1675, 0
    %v1713 = vsel %vm521, %v1690, 0
    %1715 = vmatpush.msra.mxu0 0.0
    %1716 = vmatpush.msra.mxu0 0.0
    %1717 = vmatpush.msra.mxu0 0.0
    %1718 = vmatpush.msra.mxu0 0.0
    %1719 = vmatpush.msra.mxu0 0.0
    %1720 = vmatpush.msra.mxu0 0.0
    %1721 = vmatpush.msra.mxu0 0.0
    %1722 = vmatpush.msra.mxu0 0.0
    %1723 = vmatpush.msra.mxu0 0.0
    %1724 = vmatpush.msra.mxu0 0.0
    %1725 = vmatpush.msra.mxu0 0.0
    %1726 = vmatpush.msra.mxu0 0.0
    %1727 = vmatpush.msra.mxu0 %v1698
    %1728 = vmatpush.msra.mxu0 %v1696
    %1729 = vmatpush.msra.mxu0 %v1694
    %1730 = vmatpush.msra.mxu0 %v1692
    %1731 = vmatmul.f32.gmra.mxu0 %v1704
    %v1732 = vpop.f32.mrf.mxu0
    %v1733 = vadd.f32 0.0, %v1732
    %1734 = vmatmul.f32.gmra.mxu0 %v1707
    %v1735 = vpop.f32.mrf.mxu0
    %v1736 = vadd.f32 0.0, %v1735
    %1737 = vmatmul.f32.gmra.mxu0 %v1710
    %v1738 = vpop.f32.mrf.mxu0
    %v1739 = vadd.f32 0.0, %v1738
    %1740 = vmatmul.f32.gmra.mxu0 %v1713
    %v1741 = vpop.f32.mrf.mxu0
    %v1742 = vadd.f32 0.0, %v1741
    %1743 = vdwg.mxu0
    %1744 = vrot.lane.b32.xlu0 %v1107, 104
    %v1745 = vpop.permute.xlu0 %1744
    %1746 = vrot.lane.b32.xlu0 %v1110, 104
    %v1747 = vpop.permute.xlu0 %1746
    %1748 = vrot.lane.b32.xlu0 %v1113, 104
    %v1749 = vpop.permute.xlu0 %1748
    %1750 = vrot.lane.b32.xlu0 %v1116, 104
    %v1751 = vpop.permute.xlu0 %1750
    %1752 = vrot.lane.b32.xlu0 %v1107, 72
    %v1753 = vpop.permute.xlu0 %1752
    %1754 = vrot.lane.b32.xlu0 %v1110, 72
    %v1755 = vpop.permute.xlu0 %1754
    %1756 = vrot.lane.b32.xlu0 %v1113, 72
    %v1757 = vpop.permute.xlu0 %1756
    %1758 = vrot.lane.b32.xlu0 %v1116, 72
    %v1759 = vpop.permute.xlu0 %1758
    %v1760 = vsel %vm736, %v1745, 0
    %v1762 = vsel %vm736, %v1747, 0
    %v1764 = vsel %vm736, %v1749, 0
    %v1766 = vsel %vm736, %v1751, 0
    %v1768 = vsel %vm736, %v1753, 0
    %v1770 = vsel %vm736, %v1755, 0
    %v1772 = vsel %vm736, %v1757, 0
    %v1774 = vsel %vm736, %v1759, 0
    %1776 = vmatpush.xpose.msra.mxu0 0.0
    %1777 = vmatpush.xpose.msra.mxu0 0.0
    %1778 = vmatpush.xpose.msra.mxu0 0.0
    %1779 = vmatpush.xpose.msra.mxu0 0.0
    %1780 = vmatpush.xpose.msra.mxu0 0.0
    %1781 = vmatpush.xpose.msra.mxu0 0.0
    %1782 = vmatpush.xpose.msra.mxu0 0.0
    %1783 = vmatpush.xpose.msra.mxu0 0.0
    %1784 = vmatpush.xpose.msra.mxu0 0.0
    %1785 = vmatpush.xpose.msra.mxu0 0.0
    %1786 = vmatpush.xpose.msra.mxu0 0.0
    %1787 = vmatpush.xpose.msra.mxu0 0.0
    %1788 = vmatpush.xpose.msra.mxu0 %v1774
    %1789 = vmatpush.xpose.msra.mxu0 %v1772
    %1790 = vmatpush.xpose.msra.mxu0 %v1770
    %1791 = vmatpush.xpose.msra.mxu0 %v1768
    %1792 = vmatmul.f32.gmra.mxu0 %v1760
    %v1793 = vpop.f32.mrf.mxu0
    %v1794 = vadd.f32 %v562, %v1793
    %1795 = vmatmul.f32.gmra.mxu0 %v1762
    %v1796 = vpop.f32.mrf.mxu0
    %v1797 = vadd.f32 %v563, %v1796
    %1798 = vmatmul.f32.gmra.mxu0 %v1764
    %v1799 = vpop.f32.mrf.mxu0
    %v1800 = vadd.f32 %v564, %v1799
    %1801 = vmatmul.f32.gmra.mxu0 %v1766
    %v1802 = vpop.f32.mrf.mxu0
    %v1803 = vadd.f32 %v565, %v1802
    %1804 = vdwg.mxu0
    %v1805 = vsel %vm521, %v1794, -inf
    %1806 = vmax.xlane.f32.xlu0 %v1805
    %v1807 = vpop.xlane.xlu0 %1806
    %v1808 = vsel %vm521, %v1797, -inf
    %1809 = vmax.xlane.f32.xlu0 %v1808
    %v1810 = vpop.xlane.xlu0 %1809
    %v1811 = vsel %vm521, %v1800, -inf
    %1812 = vmax.xlane.f32.xlu0 %v1811
    %v1813 = vpop.xlane.xlu0 %1812
    %v1814 = vsel %vm521, %v1803, -inf
    %1815 = vmax.xlane.f32.xlu0 %v1814
    %v1816 = vpop.xlane.xlu0 %1815
    %v1817 = vsub.f32 %v1794, %v1807
    %v1818 = vsub.f32 %v1797, %v1810
    %v1819 = vsub.f32 %v1800, %v1813
    %v1820 = vsub.f32 %v1803, %v1816
    %v1821 = vmul.f32 %v1817, 1.442695
    %v1822 = vpow.pop %v1821
    %v1823 = vmul.f32 %v1818, 1.442695
    %v1824 = vpow.pop %v1823
    %v1825 = vmul.f32 %v1819, 1.442695
    %v1826 = vpow.pop %v1825
    %v1827 = vmul.f32 %v1820, 1.442695
    %v1828 = vpow.pop %v1827
    %v1829 = vsel %vm521, %v1822, 0.0
    %1830 = vadd.xlane.f32.xlu0 %v1829
    %v1831 = vpop.xlane.xlu0 %1830
    %v1832 = vsel %vm521, %v1824, 0.0
    %1833 = vadd.xlane.f32.xlu0 %v1832
    %v1834 = vpop.xlane.xlu0 %1833
    %v1835 = vsel %vm521, %v1826, 0.0
    %1836 = vadd.xlane.f32.xlu0 %v1835
    %v1837 = vpop.xlane.xlu0 %1836
    %v1838 = vsel %vm521, %v1828, 0.0
    %1839 = vadd.xlane.f32.xlu0 %v1838
    %v1840 = vpop.xlane.xlu0 %1839
    %v1841 = vrcp.pop %v1831
    %v1842 = vmul.f32 %v1831, %v1841
    %v1843 = vsub.f32 1.0, %v1842
    %v1844 = vmul.f32 %v1841, %v1843
    %v1845 = vadd.f32 %v1841, %v1844
    %vm1846 = vweird.f32 %v1831
    %vm1847 = vweird.f32 %v1841
    %vm1848 = vmor %vm1846, %vm1847
    %v1849 = vsel %vm1848, %v1841, %v1845
    %v1850 = vand.u32 2147483647, %v1831
    %vm1851 = vcmp.eq.f32.partialorder %v1850, 8.507059e+37
    %v1852 = vand.u32 %v1831, 2147483648
    %v1853 = vor.u32 1.1754944e-38, %v1852
    %v1854 = vsel %vm1851, %v1853, %v1849
    %v1855 = vmul.f32 %v1822, %v1854
    %v1856 = vrcp.pop %v1834
    %v1857 = vmul.f32 %v1834, %v1856
    %v1858 = vsub.f32 1.0, %v1857
    %v1859 = vmul.f32 %v1856, %v1858
    %v1860 = vadd.f32 %v1856, %v1859
    %vm1861 = vweird.f32 %v1834
    %vm1862 = vweird.f32 %v1856
    %vm1863 = vmor %vm1861, %vm1862
    %v1864 = vsel %vm1863, %v1856, %v1860
    %v1865 = vand.u32 2147483647, %v1834
    %vm1866 = vcmp.eq.f32.partialorder %v1865, 8.507059e+37
    %v1867 = vand.u32 %v1834, 2147483648
    %v1868 = vor.u32 1.1754944e-38, %v1867
    %v1869 = vsel %vm1866, %v1868, %v1864
    %v1870 = vmul.f32 %v1824, %v1869
    %v1871 = vrcp.pop %v1837
    %v1872 = vmul.f32 %v1837, %v1871
    %v1873 = vsub.f32 1.0, %v1872
    %v1874 = vmul.f32 %v1871, %v1873
    %v1875 = vadd.f32 %v1871, %v1874
    %vm1876 = vweird.f32 %v1837
    %vm1877 = vweird.f32 %v1871
    %vm1878 = vmor %vm1876, %vm1877
    %v1879 = vsel %vm1878, %v1871, %v1875
    %v1880 = vand.u32 2147483647, %v1837
    %vm1881 = vcmp.eq.f32.partialorder %v1880, 8.507059e+37
    %v1882 = vand.u32 %v1837, 2147483648
    %v1883 = vor.u32 1.1754944e-38, %v1882
    %v1884 = vsel %vm1881, %v1883, %v1879
    %v1885 = vmul.f32 %v1826, %v1884
    %v1886 = vrcp.pop %v1840
    %v1887 = vmul.f32 %v1840, %v1886
    %v1888 = vsub.f32 1.0, %v1887
    %v1889 = vmul.f32 %v1886, %v1888
    %v1890 = vadd.f32 %v1886, %v1889
    %vm1891 = vweird.f32 %v1840
    %vm1892 = vweird.f32 %v1886
    %vm1893 = vmor %vm1891, %vm1892
    %v1894 = vsel %vm1893, %v1886, %v1890
    %v1895 = vand.u32 2147483647, %v1840
    %vm1896 = vcmp.eq.f32.partialorder %v1895, 8.507059e+37
    %v1897 = vand.u32 %v1840, 2147483648
    %v1898 = vor.u32 1.1754944e-38, %v1897
    %v1899 = vsel %vm1896, %v1898, %v1894
    %v1900 = vmul.f32 %v1828, %v1899
    %1901 = vrot.lane.b32.xlu0 %v1107, 40
    %v1902 = vpop.permute.xlu0 %1901
    %1903 = vrot.lane.b32.xlu0 %v1110, 40
    %v1904 = vpop.permute.xlu0 %1903
    %1905 = vrot.lane.b32.xlu0 %v1113, 40
    %v1906 = vpop.permute.xlu0 %1905
    %1907 = vrot.lane.b32.xlu0 %v1116, 40
    %v1908 = vpop.permute.xlu0 %1907
    %v1914 = vsel %vm521, %v1855, 0
    %v1917 = vsel %vm521, %v1870, 0
    %v1920 = vsel %vm521, %v1885, 0
    %v1923 = vsel %vm521, %v1900, 0
    %1925 = vmatpush.msra.mxu0 0.0
    %1926 = vmatpush.msra.mxu0 0.0
    %1927 = vmatpush.msra.mxu0 0.0
    %1928 = vmatpush.msra.mxu0 0.0
    %1929 = vmatpush.msra.mxu0 0.0
    %1930 = vmatpush.msra.mxu0 0.0
    %1931 = vmatpush.msra.mxu0 0.0
    %1932 = vmatpush.msra.mxu0 0.0
    %1933 = vmatpush.msra.mxu0 0.0
    %1934 = vmatpush.msra.mxu0 0.0
    %1935 = vmatpush.msra.mxu0 0.0
    %1936 = vmatpush.msra.mxu0 0.0
    %1937 = vmatpush.msra.mxu0 %v1908
    %1938 = vmatpush.msra.mxu0 %v1906
    %1939 = vmatpush.msra.mxu0 %v1904
    %1940 = vmatpush.msra.mxu0 %v1902
    %1941 = vmatmul.f32.gmra.mxu0 %v1914
    %v1942 = vpop.f32.mrf.mxu0
    %v1943 = vadd.f32 0.0, %v1942
    %1944 = vmatmul.f32.gmra.mxu0 %v1917
    %v1945 = vpop.f32.mrf.mxu0
    %v1946 = vadd.f32 0.0, %v1945
    %1947 = vmatmul.f32.gmra.mxu0 %v1920
    %v1948 = vpop.f32.mrf.mxu0
    %v1949 = vadd.f32 0.0, %v1948
    %1950 = vmatmul.f32.gmra.mxu0 %v1923
    %v1951 = vpop.f32.mrf.mxu0
    %v1952 = vadd.f32 0.0, %v1951
    %1953 = vdwg.mxu0
    %1958 = vrot.lane.b32.xlu0 %v1523, 8
    %v1959 = vpop.permute.xlu0 %1958
    %1960 = vrot.lane.b32.xlu0 %v1526, 8
    %v1961 = vpop.permute.xlu0 %1960
    %1962 = vrot.lane.b32.xlu0 %v1529, 8
    %v1963 = vpop.permute.xlu0 %1962
    %1964 = vrot.lane.b32.xlu0 %v1532, 8
    %v1965 = vpop.permute.xlu0 %1964
    %1974 = vrot.lane.b32.xlu0 %v1733, 16
    %v1975 = vpop.permute.xlu0 %1974
    %1976 = vrot.lane.b32.xlu0 %v1736, 16
    %v1977 = vpop.permute.xlu0 %1976
    %1978 = vrot.lane.b32.xlu0 %v1739, 16
    %v1979 = vpop.permute.xlu0 %1978
    %1980 = vrot.lane.b32.xlu0 %v1742, 16
    %v1981 = vpop.permute.xlu0 %1980
    %1990 = vrot.lane.b32.xlu0 %v1943, 24
    %v1991 = vpop.permute.xlu0 %1990
    %1992 = vrot.lane.b32.xlu0 %v1946, 24
    %v1993 = vpop.permute.xlu0 %1992
    %1994 = vrot.lane.b32.xlu0 %v1949, 24
    %v1995 = vpop.permute.xlu0 %1994
    %1996 = vrot.lane.b32.xlu0 %v1952, 24
    %v1997 = vpop.permute.xlu0 %1996
    %v2002 = vsel %vm736, %v1313, %v1959
    %v2003 = vsel %vm736, %v1316, %v1961
    %v2004 = vsel %vm736, %v1319, %v1963
    %v2005 = vsel %vm736, %v1322, %v1965
    %v2006 = vsel %vm682, %v2002, %v1975
    %v2007 = vsel %vm682, %v2003, %v1977
    %v2008 = vsel %vm682, %v2004, %v1979
    %v2009 = vsel %vm682, %v2005, %v1981
    %v2010 = vsel %vm790, %v2006, %v1991
    %v2011 = vsel %vm790, %v2007, %v1993
    %v2012 = vsel %vm790, %v2008, %v1995
    %v2013 = vsel %vm790, %v2009, %v1997
    %v2014 = vld [vmem:[%s51] sm:$0xff]
    %v2015 = vld [vmem:[%s51 + $0x8] sm:$0xff]
    %v2016 = vld [vmem:[%s51 + $0x10] sm:$0xff]
    %v2017 = vld [vmem:[%s51 + $0x18] sm:$0xff]
    %v2018 = vld [vmem:[#allocation20] sm:$0x1]
    %v2020 = vperm.slane %v2018, 0
    %v2023 = vsel %vm521, %v2010, 0
    %v2026 = vsel %vm521, %v2011, 0
    %v2029 = vsel %vm521, %v2012, 0
    %v2032 = vsel %vm521, %v2013, 0
    %2034 = vmatpush.msra.mxu0 0.0
    %2035 = vmatpush.msra.mxu0 0.0
    %2036 = vmatpush.msra.mxu0 0.0
    %2037 = vmatpush.msra.mxu0 0.0
    %2038 = vmatpush.msra.mxu0 0.0
    %2039 = vmatpush.msra.mxu0 0.0
    %2040 = vmatpush.msra.mxu0 0.0
    %2041 = vmatpush.msra.mxu0 0.0
    %2042 = vmatpush.msra.mxu0 0.0
    %2043 = vmatpush.msra.mxu0 0.0
    %2044 = vmatpush.msra.mxu0 0.0
    %2045 = vmatpush.msra.mxu0 0.0
    %2046 = vmatpush.msra.mxu0 %v2017
    %2047 = vmatpush.msra.mxu0 %v2016
    %2048 = vmatpush.msra.mxu0 %v2015
    %2049 = vmatpush.msra.mxu0 %v2014
    %2050 = vmatmul.f32.gmra.mxu0 %v2023
    %v2051 = vpop.f32.mrf.mxu0
    %v2052 = vadd.f32 %v2020, %v2051
    %2053 = vmatmul.f32.gmra.mxu0 %v2026
    %v2054 = vpop.f32.mrf.mxu0
    %v2055 = vadd.f32 %v2020, %v2054
    %2056 = vmatmul.f32.gmra.mxu0 %v2029
    %v2057 = vpop.f32.mrf.mxu0
    %v2058 = vadd.f32 %v2020, %v2057
    %2059 = vmatmul.f32.gmra.mxu0 %v2032
    %v2060 = vpop.f32.mrf.mxu0
    %v2061 = vadd.f32 %v2020, %v2060
    %2062 = vdwg.mxu0
    %v2064 = vsel %vm521, %v513, 0
    %v2067 = vsel %vm521, %v514, 0
    %v2070 = vsel %vm521, %v515, 0
    %2072 = vmatpush.msra.mxu0 0.0
    %2073 = vmatpush.msra.mxu0 0.0
    %2074 = vmatpush.msra.mxu0 0.0
    %2075 = vmatpush.msra.mxu0 0.0
    %2076 = vmatpush.msra.mxu0 0.0
    %2077 = vmatpush.msra.mxu0 0.0
    %2078 = vmatpush.msra.mxu0 0.0
    %2079 = vmatpush.msra.mxu0 0.0
    %2080 = vmatpush.msra.mxu0 0.0
    %2081 = vmatpush.msra.mxu0 0.0
    %2082 = vmatpush.msra.mxu0 0.0
    %2083 = vmatpush.msra.mxu0 0.0
    %2084 = vmatpush.msra.mxu0 %v2061
    %2085 = vmatpush.msra.mxu0 %v2058
    %2086 = vmatpush.msra.mxu0 %v2055
    %2087 = vmatpush.msra.mxu0 %v2052
    %2088 = vmatmul.f32.gmra.mxu0 %v2064
    %v2089 = vpop.f32.mrf.mxu0
    %v2090 = vadd.f32 %v722, %v2089
    %2091 = vmatmul.f32.gmra.mxu0 %v2067
    %v2092 = vpop.f32.mrf.mxu0
    %v2093 = vadd.f32 %v723, %v2092
    %2094 = vmatmul.f32.gmra.mxu0 %v2070
    %v2095 = vpop.f32.mrf.mxu0
    %v2096 = vadd.f32 %v724, %v2095
    %2097 = vdwg.mxu0
    %v2098 = vld [vmem:[#allocation22] sm:$0x1]
    %v2099 = vld [vmem:[#allocation23] sm:$0x1]
    %v2100 = vsel %vm521, %v2090, 0.0
    %v2101 = vsel %vm521, %v2093, 0.0
    %v2102 = vadd.f32 %v2100, %v2101
    %v2103 = vsel %vm521, %v2096, 0.0
    %v2104 = vadd.f32 %v2102, %v2103
    %v2105 = vrot.slane %v2104, 4
    %v2106 = vadd.f32 %v2104, %v2105
    %v2107 = vrot.slane %v2106, 2
    %v2108 = vadd.f32 %v2106, %v2107
    %v2109 = vrot.slane %v2108, 1
    %v2110 = vadd.f32 %v2108, %v2109
    %v2111 = vmul.f32 %v2110, %v589
    %v2112 = vsub.f32 %v2090, %v2111
    %v2113 = vsub.f32 %v2093, %v2111
    %v2114 = vsub.f32 %v2096, %v2111
    %v2115 = vmul.f32 %v2112, %v2112
    %v2116 = vmul.f32 %v2113, %v2113
    %v2117 = vmul.f32 %v2114, %v2114
    %v2118 = vsel %vm521, %v2115, 0.0
    %v2119 = vsel %vm521, %v2116, 0.0
    %v2120 = vadd.f32 %v2118, %v2119
    %v2121 = vsel %vm521, %v2117, 0.0
    %v2122 = vadd.f32 %v2120, %v2121
    %v2123 = vrot.slane %v2122, 4
    %v2124 = vadd.f32 %v2122, %v2123
    %v2125 = vrot.slane %v2124, 2
    %v2126 = vadd.f32 %v2124, %v2125
    %v2127 = vrot.slane %v2126, 1
    %v2128 = vadd.f32 %v2126, %v2127
    %v2129 = vmul.f32 %v2128, %v589
    %v2130 = vadd.f32 %v2129, 1e-05
    %v2131 = vrsqrt.pop %v2130
    %v2132 = vmul.f32 %v2131, %v2130
    %v2133 = vmul.f32 %v2132, %v2131
    %v2134 = vmul.f32 0.5, %v2133
    %v2135 = vsub.f32 1.5, %v2134
    %v2136 = vmul.f32 %v2131, %v2135
    %vm2137 = vweird.f32 %v2130
    %vm2138 = vweird.f32 %v2131
    %vm2139 = vmor %vm2137, %vm2138
    %v2140 = vsel %vm2139, %v2131, %v2136
    %v2141 = vmul.f32 %v2112, %v2140
    %v2142 = vmul.f32 %v2113, %v2140
    %v2143 = vmul.f32 %v2114, %v2140
    %v2145 = vperm.slane %v2098, 0
    %v2147 = vmul.f32 %v2141, %v2145
    %v2148 = vmul.f32 %v2142, %v2145
    %v2149 = vmul.f32 %v2143, %v2145
    %v2151 = vperm.slane %v2099, 0
    %v2153 = vadd.f32 %v2147, %v2151
    %v2154 = vadd.f32 %v2148, %v2151
    %v2155 = vadd.f32 %v2149, %v2151
    %v2156 = vadd.f32 %v1066, %v2153
    %v2157 = vadd.f32 %v1067, %v2154
    %v2158 = vadd.f32 %v1068, %v2155
    %v2159 = vld [vmem:[%s59] sm:$0xff]
    %v2160 = vld [vmem:[%s59 + $0x8] sm:$0xff]
    %v2161 = vld [vmem:[%s59 + $0x10] sm:$0xff]
    %v2162 = vld [vmem:[%s59 + $0x18] sm:$0xff]
    %v2163 = vld [vmem:[#allocation25] sm:$0x1]
    %v2165 = vperm.slane %v2163, 0
    %v2168 = vsel %vm521, %v2156, 0
    %v2171 = vsel %vm521, %v2157, 0
    %v2174 = vsel %vm521, %v2158, 0
    %2176 = vmatpush.msra.mxu0 0.0
    %2177 = vmatpush.msra.mxu0 0.0
    %2178 = vmatpush.msra.mxu0 0.0
    %2179 = vmatpush.msra.mxu0 0.0
    %2180 = vmatpush.msra.mxu0 0.0
    %2181 = vmatpush.msra.mxu0 0.0
    %2182 = vmatpush.msra.mxu0 0.0
    %2183 = vmatpush.msra.mxu0 0.0
    %2184 = vmatpush.msra.mxu0 0.0
    %2185 = vmatpush.msra.mxu0 0.0
    %2186 = vmatpush.msra.mxu0 0.0
    %2187 = vmatpush.msra.mxu0 0.0
    %2188 = vmatpush.msra.mxu0 %v2162
    %2189 = vmatpush.msra.mxu0 %v2161
    %2190 = vmatpush.msra.mxu0 %v2160
    %2191 = vmatpush.msra.mxu0 %v2159
    %2192 = vmatmul.f32.gmra.mxu0 %v2168
    %v2193 = vpop.f32.mrf.mxu0
    %v2194 = vadd.f32 %v2165, %v2193
    %2195 = vmatmul.f32.gmra.mxu0 %v2171
    %v2196 = vpop.f32.mrf.mxu0
    %v2197 = vadd.f32 %v2165, %v2196
    %2198 = vmatmul.f32.gmra.mxu0 %v2174
    %v2199 = vpop.f32.mrf.mxu0
    %v2200 = vadd.f32 %v2165, %v2199
    %2201 = vdwg.mxu0
    %v2202 = vmax.f32 %v2194, 0.0
    %v2203 = vmax.f32 %v2197, 0.0
    %v2204 = vmax.f32 %v2200, 0.0
    %v2205 = vld [vmem:[%s63] sm:$0xff]
    %v2206 = vld [vmem:[%s63 + $0x8] sm:$0xff]
    %v2207 = vld [vmem:[%s63 + $0x10] sm:$0xff]
    %v2208 = vld [vmem:[%s63 + $0x18] sm:$0xff]
    %v2209 = vld [vmem:[%s63 + $0x20] sm:$0xff]
    %v2210 = vld [vmem:[%s63 + $0x28] sm:$0xff]
    %v2211 = vld [vmem:[%s63 + $0x30] sm:$0xff]
    %v2212 = vld [vmem:[%s63 + $0x38] sm:$0xff]
    %v2213 = vld [vmem:[#allocation26] sm:$0x1]
    %v2215 = vperm.slane %v2213, 0
    %vm2217 = vcmask 523264
    %v2219 = vsel %vm2217, %v2202, 0
    %v2222 = vsel %vm2217, %v2203, 0
    %v2225 = vsel %vm2217, %v2204, 0
    %2227 = vmatpush.msra.mxu0 0.0
    %2228 = vmatpush.msra.mxu0 0.0
    %2229 = vmatpush.msra.mxu0 0.0
    %2230 = vmatpush.msra.mxu0 0.0
    %2231 = vmatpush.msra.mxu0 0.0
    %2232 = vmatpush.msra.mxu0 0.0
    %2233 = vmatpush.msra.mxu0 0.0
    %2234 = vmatpush.msra.mxu0 0.0
    %2235 = vmatpush.msra.mxu0 %v2212
    %2236 = vmatpush.msra.mxu0 %v2211
    %2237 = vmatpush.msra.mxu0 %v2210
    %2238 = vmatpush.msra.mxu0 %v2209
    %2239 = vmatpush.msra.mxu0 %v2208
    %2240 = vmatpush.msra.mxu0 %v2207
    %2241 = vmatpush.msra.mxu0 %v2206
    %2242 = vmatpush.msra.mxu0 %v2205
    %2243 = vmatmul.f32.gmra.mxu0 %v2219
    %v2244 = vpop.f32.mrf.mxu0
    %v2245 = vadd.f32 %v2215, %v2244
    %2246 = vmatmul.f32.gmra.mxu0 %v2222
    %v2247 = vpop.f32.mrf.mxu0
    %v2248 = vadd.f32 %v2215, %v2247
    %2249 = vmatmul.f32.gmra.mxu0 %v2225
    %v2250 = vpop.f32.mrf.mxu0
    %v2251 = vadd.f32 %v2215, %v2250
    %2252 = vdwg.mxu0
    %v2253 = vadd.f32 %v2156, %v2245
    %v2254 = vadd.f32 %v2157, %v2248
    %v2255 = vadd.f32 %v2158, %v2251
    %v2256 = vld [vmem:[#allocation28] sm:$0x1]
    %v2257 = vld [vmem:[#allocation29] sm:$0x1]
    %v2258 = vsel %vm521, %v2253, 0.0
    %v2259 = vsel %vm521, %v2254, 0.0
    %v2260 = vadd.f32 %v2258, %v2259
    %v2261 = vsel %vm521, %v2255, 0.0
    %v2262 = vadd.f32 %v2260, %v2261
    %v2263 = vrot.slane %v2262, 4
    %v2264 = vadd.f32 %v2262, %v2263
    %v2265 = vrot.slane %v2264, 2
    %v2266 = vadd.f32 %v2264, %v2265
    %v2267 = vrot.slane %v2266, 1
    %v2268 = vadd.f32 %v2266, %v2267
    %v2269 = vmul.f32 %v2268, %v589
    %v2270 = vsub.f32 %v2253, %v2269
    %v2271 = vsub.f32 %v2254, %v2269
    %v2272 = vsub.f32 %v2255, %v2269
    %v2273 = vmul.f32 %v2270, %v2270
    %v2274 = vmul.f32 %v2271, %v2271
    %v2275 = vmul.f32 %v2272, %v2272
    %v2276 = vsel %vm521, %v2273, 0.0
    %v2277 = vsel %vm521, %v2274, 0.0
    %v2278 = vadd.f32 %v2276, %v2277
    %v2279 = vsel %vm521, %v2275, 0.0
    %v2280 = vadd.f32 %v2278, %v2279
    %v2281 = vrot.slane %v2280, 4
    %v2282 = vadd.f32 %v2280, %v2281
    %v2283 = vrot.slane %v2282, 2
    %v2284 = vadd.f32 %v2282, %v2283
    %v2285 = vrot.slane %v2284, 1
    %v2286 = vadd.f32 %v2284, %v2285
    %v2287 = vmul.f32 %v2286, %v589
    %v2288 = vadd.f32 %v2287, 1e-05
    %v2289 = vrsqrt.pop %v2288
    %v2290 = vmul.f32 %v2289, %v2288
    %v2291 = vmul.f32 %v2290, %v2289
    %v2292 = vmul.f32 0.5, %v2291
    %v2293 = vsub.f32 1.5, %v2292
    %v2294 = vmul.f32 %v2289, %v2293
    %vm2295 = vweird.f32 %v2288
    %vm2296 = vweird.f32 %v2289
    %vm2297 = vmor %vm2295, %vm2296
    %v2298 = vsel %vm2297, %v2289, %v2294
    %v2299 = vmul.f32 %v2270, %v2298
    %v2300 = vmul.f32 %v2271, %v2298
    %v2301 = vmul.f32 %v2272, %v2298
    %v2303 = vperm.slane %v2256, 0
    %v2305 = vmul.f32 %v2299, %v2303
    %v2306 = vmul.f32 %v2300, %v2303
    %v2307 = vmul.f32 %v2301, %v2303
    %v2309 = vperm.slane %v2257, 0
    %v2311 = vadd.f32 %v2305, %v2309
    %v2312 = vadd.f32 %v2306, %v2309
    %v2313 = vadd.f32 %v2307, %v2309
    %2314 = vmatpush.msra.mxu0 0.0
    %2315 = vmatpush.msra.mxu0 0.0
    %2316 = vmatpush.msra.mxu0 0.0
    %2317 = vmatpush.msra.mxu0 0.0
    %2318 = vmatpush.msra.mxu0 0.0
    %2319 = vmatpush.msra.mxu0 0.0
    %2320 = vmatpush.msra.mxu0 0.0
    %2321 = vmatpush.msra.mxu0 0.0
    %2322 = vmatpush.msra.mxu0 0.0
    %2323 = vmatpush.msra.mxu0 0.0
    %2324 = vmatpush.msra.mxu0 0.0
    %2325 = vmatpush.msra.mxu0 0.0
    %2326 = vmatpush.msra.mxu0 0.0
    %2327 = vmatpush.msra.mxu0 %v2313
    %2328 = vmatpush.msra.mxu0 %v2312
    %2329 = vmatpush.msra.mxu0 %v2311
    %2330 = vmatmul.f32.gmra.mxu0 %v792
    %v2331 = vpop.f32.mrf.mxu0
    %v2332 = vadd.f32 0.0, %v2331
    %2333 = vmatmul.f32.gmra.mxu0 %v795
    %v2334 = vpop.f32.mrf.mxu0
    %v2335 = vadd.f32 0.0, %v2334
    %2336 = vmatmul.f32.gmra.mxu0 %v798
    %v2337 = vpop.f32.mrf.mxu0
    %v2338 = vadd.f32 0.0, %v2337
    %2339 = vmatmul.f32.gmra.mxu0 %v801
    %v2340 = vpop.f32.mrf.mxu0
    %v2341 = vadd.f32 0.0, %v2340
    %2342 = vmatmul.f32.gmra.mxu0 %v804
    %v2343 = vpop.f32.mrf.mxu0
    %v2344 = vadd.f32 0.0, %v2343
    %2345 = vmatmul.f32.gmra.mxu0 %v807
    %v2346 = vpop.f32.mrf.mxu0
    %v2347 = vadd.f32 0.0, %v2346
    %2348 = vmatmul.f32.gmra.mxu0 %v810
    %v2349 = vpop.f32.mrf.mxu0
    %v2350 = vadd.f32 0.0, %v2349
    %2351 = vmatmul.f32.gmra.mxu0 %v813
    %v2352 = vpop.f32.mrf.mxu0
    %v2353 = vadd.f32 0.0, %v2352
    %2354 = vmatmul.f32.gmra.mxu0 %v816
    %v2355 = vpop.f32.mrf.mxu0
    %v2356 = vadd.f32 0.0, %v2355
    %2357 = vmatmul.f32.gmra.mxu0 %v819
    %v2358 = vpop.f32.mrf.mxu0
    %v2359 = vadd.f32 0.0, %v2358
    %2360 = vdwg.mxu0
    %v2361 = vadd.f32 %v2332, %v773
    %v2362 = vadd.f32 %v2335, %v776
    %v2363 = vadd.f32 %v2338, %v779
    %v2364 = vadd.f32 %v2341, %v782
    %v2365 = vadd.f32 %v2344, %v785
    %v2366 = vadd.f32 %v2347, %v788
    %v2367 = vmax.f32 %v2361, 0.0
    %v2368 = vmax.f32 %v2362, 0.0
    %v2369 = vmax.f32 %v2363, 0.0
    %v2370 = vmax.f32 %v2364, 0.0
    %v2371 = vmax.f32 %v2365, 0.0
    %v2372 = vmax.f32 %v2366, 0.0
    %2373 = vmatpush.msra.mxu0 0.0
    %2374 = vmatpush.msra.mxu0 0.0
    %2375 = vmatpush.msra.mxu0 0.0
    %2376 = vmatpush.msra.mxu0 0.0
    %2377 = vmatpush.msra.mxu0 0.0
    %2378 = vmatpush.msra.mxu0 0.0
    %2379 = vmatpush.msra.mxu0 0.0
    %2380 = vmatpush.msra.mxu0 0.0
    %2381 = vmatpush.msra.mxu0 0.0
    %2382 = vmatpush.msra.mxu0 0.0
    %2383 = vmatpush.msra.mxu0 %v2372
    %2384 = vmatpush.msra.mxu0 %v2371
    %2385 = vmatpush.msra.mxu0 %v2370
    %2386 = vmatpush.msra.mxu0 %v2369
    %2387 = vmatpush.msra.mxu0 %v2368
    %2388 = vmatpush.msra.mxu0 %v2367
    %2389 = vmatmul.f32.gmra.mxu0 %v882
    %v2390 = vpop.f32.mrf.mxu0
    %v2391 = vadd.f32 0.0, %v2390
    %2392 = vmatmul.f32.gmra.mxu0 %v885
    %v2393 = vpop.f32.mrf.mxu0
    %v2394 = vadd.f32 0.0, %v2393
    %2395 = vmatmul.f32.gmra.mxu0 %v888
    %v2396 = vpop.f32.mrf.mxu0
    %v2397 = vadd.f32 0.0, %v2396
    %2398 = vdwg.mxu0
    %v2399 = vadd.f32 %v2311, %v2391
    %v2400 = vadd.f32 %v2312, %v2394
    %v2401 = vadd.f32 %v2313, %v2397
    %s2402 = scalar_lea.vmem %s35, 32
    %v2403 = vld [vmem:[%s2402] sm:$0xff]
    %v2404 = vld [vmem:[%s2402 + $0x8] sm:$0xff]
    %v2405 = vld [vmem:[%s2402 + $0x10] sm:$0xff]
    %v2406 = vld [vmem:[%s2402 + $0x18] sm:$0xff]
    %s2407 = scalar_lea.vmem [#allocation13], 1
    %v2408 = vld [vmem:[%s2407] sm:$0x1]
    %v2410 = vperm.slane %v2408, 0
    %v2413 = vsel %vm521, %v2399, 0
    %v2416 = vsel %vm521, %v2400, 0
    %v2419 = vsel %vm521, %v2401, 0
    %2421 = vmatpush.msra.mxu0 0.0
    %2422 = vmatpush.msra.mxu0 0.0
    %2423 = vmatpush.msra.mxu0 0.0
    %2424 = vmatpush.msra.mxu0 0.0
    %2425 = vmatpush.msra.mxu0 0.0
    %2426 = vmatpush.msra.mxu0 0.0
    %2427 = vmatpush.msra.mxu0 0.0
    %2428 = vmatpush.msra.mxu0 0.0
    %2429 = vmatpush.msra.mxu0 0.0
    %2430 = vmatpush.msra.mxu0 0.0
    %2431 = vmatpush.msra.mxu0 0.0
    %2432 = vmatpush.msra.mxu0 0.0
    %2433 = vmatpush.msra.mxu0 %v2406
    %2434 = vmatpush.msra.mxu0 %v2405
    %2435 = vmatpush.msra.mxu0 %v2404
    %2436 = vmatpush.msra.mxu0 %v2403
    %2437 = vmatmul.f32.gmra.mxu0 %v2413
    %v2438 = vpop.f32.mrf.mxu0
    %v2439 = vadd.f32 %v2410, %v2438
    %2440 = vmatmul.f32.gmra.mxu0 %v2416
    %v2441 = vpop.f32.mrf.mxu0
    %v2442 = vadd.f32 %v2410, %v2441
    %2443 = vmatmul.f32.gmra.mxu0 %v2419
    %v2444 = vpop.f32.mrf.mxu0
    %v2445 = vadd.f32 %v2410, %v2444
    %2446 = vdwg.mxu0
    %v2447 = vmax.f32 %v2439, 0.0
    %v2448 = vmax.f32 %v2442, 0.0
    %v2449 = vmax.f32 %v2445, 0.0
    %s2450 = scalar_lea.vmem %s39, 32
    %v2451 = vld [vmem:[%s2450] sm:$0xff]
    %v2452 = vld [vmem:[%s2450 + $0x8] sm:$0xff]
    %v2453 = vld [vmem:[%s2450 + $0x10] sm:$0xff]
    %v2454 = vld [vmem:[%s2450 + $0x18] sm:$0xff]
    %s2455 = scalar_lea.vmem [#allocation14], 1
    %v2456 = vld [vmem:[%s2455] sm:$0x1]
    %v2458 = vperm.slane %v2456, 0
    %v2461 = vsel %vm521, %v2447, 0
    %v2464 = vsel %vm521, %v2448, 0
    %v2467 = vsel %vm521, %v2449, 0
    %2469 = vmatpush.msra.mxu0 0.0
    %2470 = vmatpush.msra.mxu0 0.0
    %2471 = vmatpush.msra.mxu0 0.0
    %2472 = vmatpush.msra.mxu0 0.0
    %2473 = vmatpush.msra.mxu0 0.0
    %2474 = vmatpush.msra.mxu0 0.0
    %2475 = vmatpush.msra.mxu0 0.0
    %2476 = vmatpush.msra.mxu0 0.0
    %2477 = vmatpush.msra.mxu0 0.0
    %2478 = vmatpush.msra.mxu0 0.0
    %2479 = vmatpush.msra.mxu0 0.0
    %2480 = vmatpush.msra.mxu0 0.0
    %2481 = vmatpush.msra.mxu0 %v2454
    %2482 = vmatpush.msra.mxu0 %v2453
    %2483 = vmatpush.msra.mxu0 %v2452
    %2484 = vmatpush.msra.mxu0 %v2451
    %2485 = vmatmul.f32.gmra.mxu0 %v2461
    %v2486 = vpop.f32.mrf.mxu0
    %v2487 = vadd.f32 %v2458, %v2486
    %2488 = vmatmul.f32.gmra.mxu0 %v2464
    %v2489 = vpop.f32.mrf.mxu0
    %v2490 = vadd.f32 %v2458, %v2489
    %2491 = vmatmul.f32.gmra.mxu0 %v2467
    %v2492 = vpop.f32.mrf.mxu0
    %v2493 = vadd.f32 %v2458, %v2492
    %2494 = vdwg.mxu0
    %v2495 = vadd.f32 %v2487, %v2311
    %v2496 = vadd.f32 %v2490, %v2312
    %v2497 = vadd.f32 %v2493, %v2313
    %s2498 = scalar_lea.vmem [#allocation16], 1
    %v2499 = vld [vmem:[%s2498] sm:$0x1]
    %s2500 = scalar_lea.vmem [#allocation17], 1
    %v2501 = vld [vmem:[%s2500] sm:$0x1]
    %v2502 = vsel %vm521, %v2495, 0.0
    %v2503 = vsel %vm521, %v2496, 0.0
    %v2504 = vadd.f32 %v2502, %v2503
    %v2505 = vsel %vm521, %v2497, 0.0
    %v2506 = vadd.f32 %v2504, %v2505
    %v2507 = vrot.slane %v2506, 4
    %v2508 = vadd.f32 %v2506, %v2507
    %v2509 = vrot.slane %v2508, 2
    %v2510 = vadd.f32 %v2508, %v2509
    %v2511 = vrot.slane %v2510, 1
    %v2512 = vadd.f32 %v2510, %v2511
    %v2513 = vmul.f32 %v2512, %v589
    %v2514 = vsub.f32 %v2495, %v2513
    %v2515 = vsub.f32 %v2496, %v2513
    %v2516 = vsub.f32 %v2497, %v2513
    %v2517 = vmul.f32 %v2514, %v2514
    %v2518 = vmul.f32 %v2515, %v2515
    %v2519 = vmul.f32 %v2516, %v2516
    %v2520 = vsel %vm521, %v2517, 0.0
    %v2521 = vsel %vm521, %v2518, 0.0
    %v2522 = vadd.f32 %v2520, %v2521
    %v2523 = vsel %vm521, %v2519, 0.0
    %v2524 = vadd.f32 %v2522, %v2523
    %v2525 = vrot.slane %v2524, 4
    %v2526 = vadd.f32 %v2524, %v2525
    %v2527 = vrot.slane %v2526, 2
    %v2528 = vadd.f32 %v2526, %v2527
    %v2529 = vrot.slane %v2528, 1
    %v2530 = vadd.f32 %v2528, %v2529
    %v2531 = vmul.f32 %v2530, %v589
    %v2532 = vadd.f32 %v2531, 1e-05
    %v2533 = vrsqrt.pop %v2532
    %v2534 = vmul.f32 %v2533, %v2532
    %v2535 = vmul.f32 %v2534, %v2533
    %v2536 = vmul.f32 0.5, %v2535
    %v2537 = vsub.f32 1.5, %v2536
    %v2538 = vmul.f32 %v2533, %v2537
    %vm2539 = vweird.f32 %v2532
    %vm2540 = vweird.f32 %v2533
    %vm2541 = vmor %vm2539, %vm2540
    %v2542 = vsel %vm2541, %v2533, %v2538
    %v2543 = vmul.f32 %v2514, %v2542
    %v2544 = vmul.f32 %v2515, %v2542
    %v2545 = vmul.f32 %v2516, %v2542
    %v2547 = vperm.slane %v2499, 0
    %v2549 = vmul.f32 %v2543, %v2547
    %v2550 = vmul.f32 %v2544, %v2547
    %v2551 = vmul.f32 %v2545, %v2547
    %v2553 = vperm.slane %v2501, 0
    %v2555 = vadd.f32 %v2549, %v2553
    %v2556 = vadd.f32 %v2550, %v2553
    %v2557 = vadd.f32 %v2551, %v2553
    %s2558 = scalar_lea.vmem %s47, 32
    %v2559 = vld [vmem:[%s2558] sm:$0xff]
    %v2560 = vld [vmem:[%s2558 + $0x8] sm:$0xff]
    %v2561 = vld [vmem:[%s2558 + $0x10] sm:$0xff]
    %v2562 = vld [vmem:[%s2558 + $0x18] sm:$0xff]
    %s2563 = scalar_lea.vmem [#allocation19], 1
    %v2564 = vld [vmem:[%s2563] sm:$0x1]
    %v2566 = vperm.slane %v2564, 0
    %v2569 = vsel %vm521, %v2350, 0
    %v2572 = vsel %vm521, %v2353, 0
    %v2575 = vsel %vm521, %v2356, 0
    %v2578 = vsel %vm521, %v2359, 0
    %2580 = vmatpush.msra.mxu0 0.0
    %2581 = vmatpush.msra.mxu0 0.0
    %2582 = vmatpush.msra.mxu0 0.0
    %2583 = vmatpush.msra.mxu0 0.0
    %2584 = vmatpush.msra.mxu0 0.0
    %2585 = vmatpush.msra.mxu0 0.0
    %2586 = vmatpush.msra.mxu0 0.0
    %2587 = vmatpush.msra.mxu0 0.0
    %2588 = vmatpush.msra.mxu0 0.0
    %2589 = vmatpush.msra.mxu0 0.0
    %2590 = vmatpush.msra.mxu0 0.0
    %2591 = vmatpush.msra.mxu0 0.0
    %2592 = vmatpush.msra.mxu0 %v2562
    %2593 = vmatpush.msra.mxu0 %v2561
    %2594 = vmatpush.msra.mxu0 %v2560
    %2595 = vmatpush.msra.mxu0 %v2559
    %2596 = vmatmul.f32.gmra.mxu0 %v2569
    %v2597 = vpop.f32.mrf.mxu0
    %v2598 = vadd.f32 %v2566, %v2597
    %2599 = vmatmul.f32.gmra.mxu0 %v2572
    %v2600 = vpop.f32.mrf.mxu0
    %v2601 = vadd.f32 %v2566, %v2600
    %2602 = vmatmul.f32.gmra.mxu0 %v2575
    %v2603 = vpop.f32.mrf.mxu0
    %v2604 = vadd.f32 %v2566, %v2603
    %2605 = vmatmul.f32.gmra.mxu0 %v2578
    %v2606 = vpop.f32.mrf.mxu0
    %v2607 = vadd.f32 %v2566, %v2606
    %2608 = vdwg.mxu0
    %2613 = vrot.lane.b32.xlu0 %v2598, 96
    %v2614 = vpop.permute.xlu0 %2613
    %2615 = vrot.lane.b32.xlu0 %v2601, 96
    %v2616 = vpop.permute.xlu0 %2615
    %2617 = vrot.lane.b32.xlu0 %v2604, 96
    %v2618 = vpop.permute.xlu0 %2617
    %2619 = vrot.lane.b32.xlu0 %v2607, 96
    %v2620 = vpop.permute.xlu0 %2619
    %v2621 = vsel %vm736, %v2598, 0
    %v2623 = vsel %vm736, %v2601, 0
    %v2625 = vsel %vm736, %v2604, 0
    %v2627 = vsel %vm736, %v2607, 0
    %v2629 = vsel %vm736, %v2614, 0
    %v2631 = vsel %vm736, %v2616, 0
    %v2633 = vsel %vm736, %v2618, 0
    %v2635 = vsel %vm736, %v2620, 0
    %2637 = vmatpush.xpose.msra.mxu0 0.0
    %2638 = vmatpush.xpose.msra.mxu0 0.0
    %2639 = vmatpush.xpose.msra.mxu0 0.0
    %2640 = vmatpush.xpose.msra.mxu0 0.0
    %2641 = vmatpush.xpose.msra.mxu0 0.0
    %2642 = vmatpush.xpose.msra.mxu0 0.0
    %2643 = vmatpush.xpose.msra.mxu0 0.0
    %2644 = vmatpush.xpose.msra.mxu0 0.0
    %2645 = vmatpush.xpose.msra.mxu0 0.0
    %2646 = vmatpush.xpose.msra.mxu0 0.0
    %2647 = vmatpush.xpose.msra.mxu0 0.0
    %2648 = vmatpush.xpose.msra.mxu0 0.0
    %2649 = vmatpush.xpose.msra.mxu0 %v2635
    %2650 = vmatpush.xpose.msra.mxu0 %v2633
    %2651 = vmatpush.xpose.msra.mxu0 %v2631
    %2652 = vmatpush.xpose.msra.mxu0 %v2629
    %2653 = vmatmul.f32.gmra.mxu0 %v2621
    %v2654 = vpop.f32.mrf.mxu0
    %v2655 = vadd.f32 %v562, %v2654
    %2656 = vmatmul.f32.gmra.mxu0 %v2623
    %v2657 = vpop.f32.mrf.mxu0
    %v2658 = vadd.f32 %v563, %v2657
    %2659 = vmatmul.f32.gmra.mxu0 %v2625
    %v2660 = vpop.f32.mrf.mxu0
    %v2661 = vadd.f32 %v564, %v2660
    %2662 = vmatmul.f32.gmra.mxu0 %v2627
    %v2663 = vpop.f32.mrf.mxu0
    %v2664 = vadd.f32 %v565, %v2663
    %2665 = vdwg.mxu0
    %v2666 = vsel %vm521, %v2655, -inf
    %2667 = vmax.xlane.f32.xlu0 %v2666
    %v2668 = vpop.xlane.xlu0 %2667
    %v2669 = vsel %vm521, %v2658, -inf
    %2670 = vmax.xlane.f32.xlu0 %v2669
    %v2671 = vpop.xlane.xlu0 %2670
    %v2672 = vsel %vm521, %v2661, -inf
    %2673 = vmax.xlane.f32.xlu0 %v2672
    %v2674 = vpop.xlane.xlu0 %2673
    %v2675 = vsel %vm521, %v2664, -inf
    %2676 = vmax.xlane.f32.xlu0 %v2675
    %v2677 = vpop.xlane.xlu0 %2676
    %v2678 = vsub.f32 %v2655, %v2668
    %v2679 = vsub.f32 %v2658, %v2671
    %v2680 = vsub.f32 %v2661, %v2674
    %v2681 = vsub.f32 %v2664, %v2677
    %v2682 = vmul.f32 %v2678, 1.442695
    %v2683 = vpow.pop %v2682
    %v2684 = vmul.f32 %v2679, 1.442695
    %v2685 = vpow.pop %v2684
    %v2686 = vmul.f32 %v2680, 1.442695
    %v2687 = vpow.pop %v2686
    %v2688 = vmul.f32 %v2681, 1.442695
    %v2689 = vpow.pop %v2688
    %v2690 = vsel %vm521, %v2683, 0.0
    %2691 = vadd.xlane.f32.xlu0 %v2690
    %v2692 = vpop.xlane.xlu0 %2691
    %v2693 = vsel %vm521, %v2685, 0.0
    %2694 = vadd.xlane.f32.xlu0 %v2693
    %v2695 = vpop.xlane.xlu0 %2694
    %v2696 = vsel %vm521, %v2687, 0.0
    %2697 = vadd.xlane.f32.xlu0 %v2696
    %v2698 = vpop.xlane.xlu0 %2697
    %v2699 = vsel %vm521, %v2689, 0.0
    %2700 = vadd.xlane.f32.xlu0 %v2699
    %v2701 = vpop.xlane.xlu0 %2700
    %v2702 = vrcp.pop %v2692
    %v2703 = vmul.f32 %v2692, %v2702
    %v2704 = vsub.f32 1.0, %v2703
    %v2705 = vmul.f32 %v2702, %v2704
    %v2706 = vadd.f32 %v2702, %v2705
    %vm2707 = vweird.f32 %v2692
    %vm2708 = vweird.f32 %v2702
    %vm2709 = vmor %vm2707, %vm2708
    %v2710 = vsel %vm2709, %v2702, %v2706
    %v2711 = vand.u32 2147483647, %v2692
    %vm2712 = vcmp.eq.f32.partialorder %v2711, 8.507059e+37
    %v2713 = vand.u32 %v2692, 2147483648
    %v2714 = vor.u32 1.1754944e-38, %v2713
    %v2715 = vsel %vm2712, %v2714, %v2710
    %v2716 = vmul.f32 %v2683, %v2715
    %v2717 = vrcp.pop %v2695
    %v2718 = vmul.f32 %v2695, %v2717
    %v2719 = vsub.f32 1.0, %v2718
    %v2720 = vmul.f32 %v2717, %v2719
    %v2721 = vadd.f32 %v2717, %v2720
    %vm2722 = vweird.f32 %v2695
    %vm2723 = vweird.f32 %v2717
    %vm2724 = vmor %vm2722, %vm2723
    %v2725 = vsel %vm2724, %v2717, %v2721
    %v2726 = vand.u32 2147483647, %v2695
    %vm2727 = vcmp.eq.f32.partialorder %v2726, 8.507059e+37
    %v2728 = vand.u32 %v2695, 2147483648
    %v2729 = vor.u32 1.1754944e-38, %v2728
    %v2730 = vsel %vm2727, %v2729, %v2725
    %v2731 = vmul.f32 %v2685, %v2730
    %v2732 = vrcp.pop %v2698
    %v2733 = vmul.f32 %v2698, %v2732
    %v2734 = vsub.f32 1.0, %v2733
    %v2735 = vmul.f32 %v2732, %v2734
    %v2736 = vadd.f32 %v2732, %v2735
    %vm2737 = vweird.f32 %v2698
    %vm2738 = vweird.f32 %v2732
    %vm2739 = vmor %vm2737, %vm2738
    %v2740 = vsel %vm2739, %v2732, %v2736
    %v2741 = vand.u32 2147483647, %v2698
    %vm2742 = vcmp.eq.f32.partialorder %v2741, 8.507059e+37
    %v2743 = vand.u32 %v2698, 2147483648
    %v2744 = vor.u32 1.1754944e-38, %v2743
    %v2745 = vsel %vm2742, %v2744, %v2740
    %v2746 = vmul.f32 %v2687, %v2745
    %v2747 = vrcp.pop %v2701
    %v2748 = vmul.f32 %v2701, %v2747
    %v2749 = vsub.f32 1.0, %v2748
    %v2750 = vmul.f32 %v2747, %v2749
    %v2751 = vadd.f32 %v2747, %v2750
    %vm2752 = vweird.f32 %v2701
    %vm2753 = vweird.f32 %v2747
    %vm2754 = vmor %vm2752, %vm2753
    %v2755 = vsel %vm2754, %v2747, %v2751
    %v2756 = vand.u32 2147483647, %v2701
    %vm2757 = vcmp.eq.f32.partialorder %v2756, 8.507059e+37
    %v2758 = vand.u32 %v2701, 2147483648
    %v2759 = vor.u32 1.1754944e-38, %v2758
    %v2760 = vsel %vm2757, %v2759, %v2755
    %v2761 = vmul.f32 %v2689, %v2760
    %2762 = vrot.lane.b32.xlu0 %v2598, 64
    %v2763 = vpop.permute.xlu0 %2762
    %2764 = vrot.lane.b32.xlu0 %v2601, 64
    %v2765 = vpop.permute.xlu0 %2764
    %2766 = vrot.lane.b32.xlu0 %v2604, 64
    %v2767 = vpop.permute.xlu0 %2766
    %2768 = vrot.lane.b32.xlu0 %v2607, 64
    %v2769 = vpop.permute.xlu0 %2768
    %v2775 = vsel %vm521, %v2716, 0
    %v2778 = vsel %vm521, %v2731, 0
    %v2781 = vsel %vm521, %v2746, 0
    %v2784 = vsel %vm521, %v2761, 0
    %2786 = vmatpush.msra.mxu0 0.0
    %2787 = vmatpush.msra.mxu0 0.0
    %2788 = vmatpush.msra.mxu0 0.0
    %2789 = vmatpush.msra.mxu0 0.0
    %2790 = vmatpush.msra.mxu0 0.0
    %2791 = vmatpush.msra.mxu0 0.0
    %2792 = vmatpush.msra.mxu0 0.0
    %2793 = vmatpush.msra.mxu0 0.0
    %2794 = vmatpush.msra.mxu0 0.0
    %2795 = vmatpush.msra.mxu0 0.0
    %2796 = vmatpush.msra.mxu0 0.0
    %2797 = vmatpush.msra.mxu0 0.0
    %2798 = vmatpush.msra.mxu0 %v2769
    %2799 = vmatpush.msra.mxu0 %v2767
    %2800 = vmatpush.msra.mxu0 %v2765
    %2801 = vmatpush.msra.mxu0 %v2763
    %2802 = vmatmul.f32.gmra.mxu0 %v2775
    %v2803 = vpop.f32.mrf.mxu0
    %v2804 = vadd.f32 0.0, %v2803
    %2805 = vmatmul.f32.gmra.mxu0 %v2778
    %v2806 = vpop.f32.mrf.mxu0
    %v2807 = vadd.f32 0.0, %v2806
    %2808 = vmatmul.f32.gmra.mxu0 %v2781
    %v2809 = vpop.f32.mrf.mxu0
    %v2810 = vadd.f32 0.0, %v2809
    %2811 = vmatmul.f32.gmra.mxu0 %v2784
    %v2812 = vpop.f32.mrf.mxu0
    %v2813 = vadd.f32 0.0, %v2812
    %2814 = vdwg.mxu0
    %2815 = vrot.lane.b32.xlu0 %v2598, 120
    %v2816 = vpop.permute.xlu0 %2815
    %2817 = vrot.lane.b32.xlu0 %v2601, 120
    %v2818 = vpop.permute.xlu0 %2817
    %2819 = vrot.lane.b32.xlu0 %v2604, 120
    %v2820 = vpop.permute.xlu0 %2819
    %2821 = vrot.lane.b32.xlu0 %v2607, 120
    %v2822 = vpop.permute.xlu0 %2821
    %2823 = vrot.lane.b32.xlu0 %v2598, 88
    %v2824 = vpop.permute.xlu0 %2823
    %2825 = vrot.lane.b32.xlu0 %v2601, 88
    %v2826 = vpop.permute.xlu0 %2825
    %2827 = vrot.lane.b32.xlu0 %v2604, 88
    %v2828 = vpop.permute.xlu0 %2827
    %2829 = vrot.lane.b32.xlu0 %v2607, 88
    %v2830 = vpop.permute.xlu0 %2829
    %v2831 = vsel %vm736, %v2816, 0
    %v2833 = vsel %vm736, %v2818, 0
    %v2835 = vsel %vm736, %v2820, 0
    %v2837 = vsel %vm736, %v2822, 0
    %v2839 = vsel %vm736, %v2824, 0
    %v2841 = vsel %vm736, %v2826, 0
    %v2843 = vsel %vm736, %v2828, 0
    %v2845 = vsel %vm736, %v2830, 0
    %2847 = vmatpush.xpose.msra.mxu0 0.0
    %2848 = vmatpush.xpose.msra.mxu0 0.0
    %2849 = vmatpush.xpose.msra.mxu0 0.0
    %2850 = vmatpush.xpose.msra.mxu0 0.0
    %2851 = vmatpush.xpose.msra.mxu0 0.0
    %2852 = vmatpush.xpose.msra.mxu0 0.0
    %2853 = vmatpush.xpose.msra.mxu0 0.0
    %2854 = vmatpush.xpose.msra.mxu0 0.0
    %2855 = vmatpush.xpose.msra.mxu0 0.0
    %2856 = vmatpush.xpose.msra.mxu0 0.0
    %2857 = vmatpush.xpose.msra.mxu0 0.0
    %2858 = vmatpush.xpose.msra.mxu0 0.0
    %2859 = vmatpush.xpose.msra.mxu0 %v2845
    %2860 = vmatpush.xpose.msra.mxu0 %v2843
    %2861 = vmatpush.xpose.msra.mxu0 %v2841
    %2862 = vmatpush.xpose.msra.mxu0 %v2839
    %2863 = vmatmul.f32.gmra.mxu0 %v2831
    %v2864 = vpop.f32.mrf.mxu0
    %v2865 = vadd.f32 %v562, %v2864
    %2866 = vmatmul.f32.gmra.mxu0 %v2833
    %v2867 = vpop.f32.mrf.mxu0
    %v2868 = vadd.f32 %v563, %v2867
    %2869 = vmatmul.f32.gmra.mxu0 %v2835
    %v2870 = vpop.f32.mrf.mxu0
    %v2871 = vadd.f32 %v564, %v2870
    %2872 = vmatmul.f32.gmra.mxu0 %v2837
    %v2873 = vpop.f32.mrf.mxu0
    %v2874 = vadd.f32 %v565, %v2873
    %2875 = vdwg.mxu0
    %v2876 = vsel %vm521, %v2865, -inf
    %2877 = vmax.xlane.f32.xlu0 %v2876
    %v2878 = vpop.xlane.xlu0 %2877
    %v2879 = vsel %vm521, %v2868, -inf
    %2880 = vmax.xlane.f32.xlu0 %v2879
    %v2881 = vpop.xlane.xlu0 %2880
    %v2882 = vsel %vm521, %v2871, -inf
    %2883 = vmax.xlane.f32.xlu0 %v2882
    %v2884 = vpop.xlane.xlu0 %2883
    %v2885 = vsel %vm521, %v2874, -inf
    %2886 = vmax.xlane.f32.xlu0 %v2885
    %v2887 = vpop.xlane.xlu0 %2886
    %v2888 = vsub.f32 %v2865, %v2878
    %v2889 = vsub.f32 %v2868, %v2881
    %v2890 = vsub.f32 %v2871, %v2884
    %v2891 = vsub.f32 %v2874, %v2887
    %v2892 = vmul.f32 %v2888, 1.442695
    %v2893 = vpow.pop %v2892
    %v2894 = vmul.f32 %v2889, 1.442695
    %v2895 = vpow.pop %v2894
    %v2896 = vmul.f32 %v2890, 1.442695
    %v2897 = vpow.pop %v2896
    %v2898 = vmul.f32 %v2891, 1.442695
    %v2899 = vpow.pop %v2898
    %v2900 = vsel %vm521, %v2893, 0.0
    %2901 = vadd.xlane.f32.xlu0 %v2900
    %v2902 = vpop.xlane.xlu0 %2901
    %v2903 = vsel %vm521, %v2895, 0.0
    %2904 = vadd.xlane.f32.xlu0 %v2903
    %v2905 = vpop.xlane.xlu0 %2904
    %v2906 = vsel %vm521, %v2897, 0.0
    %2907 = vadd.xlane.f32.xlu0 %v2906
    %v2908 = vpop.xlane.xlu0 %2907
    %v2909 = vsel %vm521, %v2899, 0.0
    %2910 = vadd.xlane.f32.xlu0 %v2909
    %v2911 = vpop.xlane.xlu0 %2910
    %v2912 = vrcp.pop %v2902
    %v2913 = vmul.f32 %v2902, %v2912
    %v2914 = vsub.f32 1.0, %v2913
    %v2915 = vmul.f32 %v2912, %v2914
    %v2916 = vadd.f32 %v2912, %v2915
    %vm2917 = vweird.f32 %v2902
    %vm2918 = vweird.f32 %v2912
    %vm2919 = vmor %vm2917, %vm2918
    %v2920 = vsel %vm2919, %v2912, %v2916
    %v2921 = vand.u32 2147483647, %v2902
    %vm2922 = vcmp.eq.f32.partialorder %v2921, 8.507059e+37
    %v2923 = vand.u32 %v2902, 2147483648
    %v2924 = vor.u32 1.1754944e-38, %v2923
    %v2925 = vsel %vm2922, %v2924, %v2920
    %v2926 = vmul.f32 %v2893, %v2925
    %v2927 = vrcp.pop %v2905
    %v2928 = vmul.f32 %v2905, %v2927
    %v2929 = vsub.f32 1.0, %v2928
    %v2930 = vmul.f32 %v2927, %v2929
    %v2931 = vadd.f32 %v2927, %v2930
    %vm2932 = vweird.f32 %v2905
    %vm2933 = vweird.f32 %v2927
    %vm2934 = vmor %vm2932, %vm2933
    %v2935 = vsel %vm2934, %v2927, %v2931
    %v2936 = vand.u32 2147483647, %v2905
    %vm2937 = vcmp.eq.f32.partialorder %v2936, 8.507059e+37
    %v2938 = vand.u32 %v2905, 2147483648
    %v2939 = vor.u32 1.1754944e-38, %v2938
    %v2940 = vsel %vm2937, %v2939, %v2935
    %v2941 = vmul.f32 %v2895, %v2940
    %v2942 = vrcp.pop %v2908
    %v2943 = vmul.f32 %v2908, %v2942
    %v2944 = vsub.f32 1.0, %v2943
    %v2945 = vmul.f32 %v2942, %v2944
    %v2946 = vadd.f32 %v2942, %v2945
    %vm2947 = vweird.f32 %v2908
    %vm2948 = vweird.f32 %v2942
    %vm2949 = vmor %vm2947, %vm2948
    %v2950 = vsel %vm2949, %v2942, %v2946
    %v2951 = vand.u32 2147483647, %v2908
    %vm2952 = vcmp.eq.f32.partialorder %v2951, 8.507059e+37
    %v2953 = vand.u32 %v2908, 2147483648
    %v2954 = vor.u32 1.1754944e-38, %v2953
    %v2955 = vsel %vm2952, %v2954, %v2950
    %v2956 = vmul.f32 %v2897, %v2955
    %v2957 = vrcp.pop %v2911
    %v2958 = vmul.f32 %v2911, %v2957
    %v2959 = vsub.f32 1.0, %v2958
    %v2960 = vmul.f32 %v2957, %v2959
    %v2961 = vadd.f32 %v2957, %v2960
    %vm2962 = vweird.f32 %v2911
    %vm2963 = vweird.f32 %v2957
    %vm2964 = vmor %vm2962, %vm2963
    %v2965 = vsel %vm2964, %v2957, %v2961
    %v2966 = vand.u32 2147483647, %v2911
    %vm2967 = vcmp.eq.f32.partialorder %v2966, 8.507059e+37
    %v2968 = vand.u32 %v2911, 2147483648
    %v2969 = vor.u32 1.1754944e-38, %v2968
    %v2970 = vsel %vm2967, %v2969, %v2965
    %v2971 = vmul.f32 %v2899, %v2970
    %2972 = vrot.lane.b32.xlu0 %v2598, 56
    %v2973 = vpop.permute.xlu0 %2972
    %2974 = vrot.lane.b32.xlu0 %v2601, 56
    %v2975 = vpop.permute.xlu0 %2974
    %2976 = vrot.lane.b32.xlu0 %v2604, 56
    %v2977 = vpop.permute.xlu0 %2976
    %2978 = vrot.lane.b32.xlu0 %v2607, 56
    %v2979 = vpop.permute.xlu0 %2978
    %v2985 = vsel %vm521, %v2926, 0
    %v2988 = vsel %vm521, %v2941, 0
    %v2991 = vsel %vm521, %v2956, 0
    %v2994 = vsel %vm521, %v2971, 0
    %2996 = vmatpush.msra.mxu0 0.0
    %2997 = vmatpush.msra.mxu0 0.0
    %2998 = vmatpush.msra.mxu0 0.0
    %2999 = vmatpush.msra.mxu0 0.0
    %3000 = vmatpush.msra.mxu0 0.0
    %3001 = vmatpush.msra.mxu0 0.0
    %3002 = vmatpush.msra.mxu0 0.0
    %3003 = vmatpush.msra.mxu0 0.0
    %3004 = vmatpush.msra.mxu0 0.0
    %3005 = vmatpush.msra.mxu0 0.0
    %3006 = vmatpush.msra.mxu0 0.0
    %3007 = vmatpush.msra.mxu0 0.0
    %3008 = vmatpush.msra.mxu0 %v2979
    %3009 = vmatpush.msra.mxu0 %v2977
    %3010 = vmatpush.msra.mxu0 %v2975
    %3011 = vmatpush.msra.mxu0 %v2973
    %3012 = vmatmul.f32.gmra.mxu0 %v2985
    %v3013 = vpop.f32.mrf.mxu0
    %v3014 = vadd.f32 0.0, %v3013
    %3015 = vmatmul.f32.gmra.mxu0 %v2988
    %v3016 = vpop.f32.mrf.mxu0
    %v3017 = vadd.f32 0.0, %v3016
    %3018 = vmatmul.f32.gmra.mxu0 %v2991
    %v3019 = vpop.f32.mrf.mxu0
    %v3020 = vadd.f32 0.0, %v3019
    %3021 = vmatmul.f32.gmra.mxu0 %v2994
    %v3022 = vpop.f32.mrf.mxu0
    %v3023 = vadd.f32 0.0, %v3022
    %3024 = vdwg.mxu0
    %3025 = vrot.lane.b32.xlu0 %v2598, 112
    %v3026 = vpop.permute.xlu0 %3025
    %3027 = vrot.lane.b32.xlu0 %v2601, 112
    %v3028 = vpop.permute.xlu0 %3027
    %3029 = vrot.lane.b32.xlu0 %v2604, 112
    %v3030 = vpop.permute.xlu0 %3029
    %3031 = vrot.lane.b32.xlu0 %v2607, 112
    %v3032 = vpop.permute.xlu0 %3031
    %3033 = vrot.lane.b32.xlu0 %v2598, 80
    %v3034 = vpop.permute.xlu0 %3033
    %3035 = vrot.lane.b32.xlu0 %v2601, 80
    %v3036 = vpop.permute.xlu0 %3035
    %3037 = vrot.lane.b32.xlu0 %v2604, 80
    %v3038 = vpop.permute.xlu0 %3037
    %3039 = vrot.lane.b32.xlu0 %v2607, 80
    %v3040 = vpop.permute.xlu0 %3039
    %v3041 = vsel %vm736, %v3026, 0
    %v3043 = vsel %vm736, %v3028, 0
    %v3045 = vsel %vm736, %v3030, 0
    %v3047 = vsel %vm736, %v3032, 0
    %v3049 = vsel %vm736, %v3034, 0
    %v3051 = vsel %vm736, %v3036, 0
    %v3053 = vsel %vm736, %v3038, 0
    %v3055 = vsel %vm736, %v3040, 0
    %3057 = vmatpush.xpose.msra.mxu0 0.0
    %3058 = vmatpush.xpose.msra.mxu0 0.0
    %3059 = vmatpush.xpose.msra.mxu0 0.0
    %3060 = vmatpush.xpose.msra.mxu0 0.0
    %3061 = vmatpush.xpose.msra.mxu0 0.0
    %3062 = vmatpush.xpose.msra.mxu0 0.0
    %3063 = vmatpush.xpose.msra.mxu0 0.0
    %3064 = vmatpush.xpose.msra.mxu0 0.0
    %3065 = vmatpush.xpose.msra.mxu0 0.0
    %3066 = vmatpush.xpose.msra.mxu0 0.0
    %3067 = vmatpush.xpose.msra.mxu0 0.0
    %3068 = vmatpush.xpose.msra.mxu0 0.0
    %3069 = vmatpush.xpose.msra.mxu0 %v3055
    %3070 = vmatpush.xpose.msra.mxu0 %v3053
    %3071 = vmatpush.xpose.msra.mxu0 %v3051
    %3072 = vmatpush.xpose.msra.mxu0 %v3049
    %3073 = vmatmul.f32.gmra.mxu0 %v3041
    %v3074 = vpop.f32.mrf.mxu0
    %v3075 = vadd.f32 %v562, %v3074
    %3076 = vmatmul.f32.gmra.mxu0 %v3043
    %v3077 = vpop.f32.mrf.mxu0
    %v3078 = vadd.f32 %v563, %v3077
    %3079 = vmatmul.f32.gmra.mxu0 %v3045
    %v3080 = vpop.f32.mrf.mxu0
    %v3081 = vadd.f32 %v564, %v3080
    %3082 = vmatmul.f32.gmra.mxu0 %v3047
    %v3083 = vpop.f32.mrf.mxu0
    %v3084 = vadd.f32 %v565, %v3083
    %3085 = vdwg.mxu0
    %v3086 = vsel %vm521, %v3075, -inf
    %3087 = vmax.xlane.f32.xlu0 %v3086
    %v3088 = vpop.xlane.xlu0 %3087
    %v3089 = vsel %vm521, %v3078, -inf
    %3090 = vmax.xlane.f32.xlu0 %v3089
    %v3091 = vpop.xlane.xlu0 %3090
    %v3092 = vsel %vm521, %v3081, -inf
    %3093 = vmax.xlane.f32.xlu0 %v3092
    %v3094 = vpop.xlane.xlu0 %3093
    %v3095 = vsel %vm521, %v3084, -inf
    %3096 = vmax.xlane.f32.xlu0 %v3095
    %v3097 = vpop.xlane.xlu0 %3096
    %v3098 = vsub.f32 %v3075, %v3088
    %v3099 = vsub.f32 %v3078, %v3091
    %v3100 = vsub.f32 %v3081, %v3094
    %v3101 = vsub.f32 %v3084, %v3097
    %v3102 = vmul.f32 %v3098, 1.442695
    %v3103 = vpow.pop %v3102
    %v3104 = vmul.f32 %v3099, 1.442695
    %v3105 = vpow.pop %v3104
    %v3106 = vmul.f32 %v3100, 1.442695
    %v3107 = vpow.pop %v3106
    %v3108 = vmul.f32 %v3101, 1.442695
    %v3109 = vpow.pop %v3108
    %v3110 = vsel %vm521, %v3103, 0.0
    %3111 = vadd.xlane.f32.xlu0 %v3110
    %v3112 = vpop.xlane.xlu0 %3111
    %v3113 = vsel %vm521, %v3105, 0.0
    %3114 = vadd.xlane.f32.xlu0 %v3113
    %v3115 = vpop.xlane.xlu0 %3114
    %v3116 = vsel %vm521, %v3107, 0.0
    %3117 = vadd.xlane.f32.xlu0 %v3116
    %v3118 = vpop.xlane.xlu0 %3117
    %v3119 = vsel %vm521, %v3109, 0.0
    %3120 = vadd.xlane.f32.xlu0 %v3119
    %v3121 = vpop.xlane.xlu0 %3120
    %v3122 = vrcp.pop %v3112
    %v3123 = vmul.f32 %v3112, %v3122
    %v3124 = vsub.f32 1.0, %v3123
    %v3125 = vmul.f32 %v3122, %v3124
    %v3126 = vadd.f32 %v3122, %v3125
    %vm3127 = vweird.f32 %v3112
    %vm3128 = vweird.f32 %v3122
    %vm3129 = vmor %vm3127, %vm3128
    %v3130 = vsel %vm3129, %v3122, %v3126
    %v3131 = vand.u32 2147483647, %v3112
    %vm3132 = vcmp.eq.f32.partialorder %v3131, 8.507059e+37
    %v3133 = vand.u32 %v3112, 2147483648
    %v3134 = vor.u32 1.1754944e-38, %v3133
    %v3135 = vsel %vm3132, %v3134, %v3130
    %v3136 = vmul.f32 %v3103, %v3135
    %v3137 = vrcp.pop %v3115
    %v3138 = vmul.f32 %v3115, %v3137
    %v3139 = vsub.f32 1.0, %v3138
    %v3140 = vmul.f32 %v3137, %v3139
    %v3141 = vadd.f32 %v3137, %v3140
    %vm3142 = vweird.f32 %v3115
    %vm3143 = vweird.f32 %v3137
    %vm3144 = vmor %vm3142, %vm3143
    %v3145 = vsel %vm3144, %v3137, %v3141
    %v3146 = vand.u32 2147483647, %v3115
    %vm3147 = vcmp.eq.f32.partialorder %v3146, 8.507059e+37
    %v3148 = vand.u32 %v3115, 2147483648
    %v3149 = vor.u32 1.1754944e-38, %v3148
    %v3150 = vsel %vm3147, %v3149, %v3145
    %v3151 = vmul.f32 %v3105, %v3150
    %v3152 = vrcp.pop %v3118
    %v3153 = vmul.f32 %v3118, %v3152
    %v3154 = vsub.f32 1.0, %v3153
    %v3155 = vmul.f32 %v3152, %v3154
    %v3156 = vadd.f32 %v3152, %v3155
    %vm3157 = vweird.f32 %v3118
    %vm3158 = vweird.f32 %v3152
    %vm3159 = vmor %vm3157, %vm3158
    %v3160 = vsel %vm3159, %v3152, %v3156
    %v3161 = vand.u32 2147483647, %v3118
    %vm3162 = vcmp.eq.f32.partialorder %v3161, 8.507059e+37
    %v3163 = vand.u32 %v3118, 2147483648
    %v3164 = vor.u32 1.1754944e-38, %v3163
    %v3165 = vsel %vm3162, %v3164, %v3160
    %v3166 = vmul.f32 %v3107, %v3165
    %v3167 = vrcp.pop %v3121
    %v3168 = vmul.f32 %v3121, %v3167
    %v3169 = vsub.f32 1.0, %v3168
    %v3170 = vmul.f32 %v3167, %v3169
    %v3171 = vadd.f32 %v3167, %v3170
    %vm3172 = vweird.f32 %v3121
    %vm3173 = vweird.f32 %v3167
    %vm3174 = vmor %vm3172, %vm3173
    %v3175 = vsel %vm3174, %v3167, %v3171
    %v3176 = vand.u32 2147483647, %v3121
    %vm3177 = vcmp.eq.f32.partialorder %v3176, 8.507059e+37
    %v3178 = vand.u32 %v3121, 2147483648
    %v3179 = vor.u32 1.1754944e-38, %v3178
    %v3180 = vsel %vm3177, %v3179, %v3175
    %v3181 = vmul.f32 %v3109, %v3180
    %3182 = vrot.lane.b32.xlu0 %v2598, 48
    %v3183 = vpop.permute.xlu0 %3182
    %3184 = vrot.lane.b32.xlu0 %v2601, 48
    %v3185 = vpop.permute.xlu0 %3184
    %3186 = vrot.lane.b32.xlu0 %v2604, 48
    %v3187 = vpop.permute.xlu0 %3186
    %3188 = vrot.lane.b32.xlu0 %v2607, 48
    %v3189 = vpop.permute.xlu0 %3188
    %v3195 = vsel %vm521, %v3136, 0
    %v3198 = vsel %vm521, %v3151, 0
    %v3201 = vsel %vm521, %v3166, 0
    %v3204 = vsel %vm521, %v3181, 0
    %3206 = vmatpush.msra.mxu0 0.0
    %3207 = vmatpush.msra.mxu0 0.0
    %3208 = vmatpush.msra.mxu0 0.0
    %3209 = vmatpush.msra.mxu0 0.0
    %3210 = vmatpush.msra.mxu0 0.0
    %3211 = vmatpush.msra.mxu0 0.0
    %3212 = vmatpush.msra.mxu0 0.0
    %3213 = vmatpush.msra.mxu0 0.0
    %3214 = vmatpush.msra.mxu0 0.0
    %3215 = vmatpush.msra.mxu0 0.0
    %3216 = vmatpush.msra.mxu0 0.0
    %3217 = vmatpush.msra.mxu0 0.0
    %3218 = vmatpush.msra.mxu0 %v3189
    %3219 = vmatpush.msra.mxu0 %v3187
    %3220 = vmatpush.msra.mxu0 %v3185
    %3221 = vmatpush.msra.mxu0 %v3183
    %3222 = vmatmul.f32.gmra.mxu0 %v3195
    %v3223 = vpop.f32.mrf.mxu0
    %v3224 = vadd.f32 0.0, %v3223
    %3225 = vmatmul.f32.gmra.mxu0 %v3198
    %v3226 = vpop.f32.mrf.mxu0
    %v3227 = vadd.f32 0.0, %v3226
    %3228 = vmatmul.f32.gmra.mxu0 %v3201
    %v3229 = vpop.f32.mrf.mxu0
    %v3230 = vadd.f32 0.0, %v3229
    %3231 = vmatmul.f32.gmra.mxu0 %v3204
    %v3232 = vpop.f32.mrf.mxu0
    %v3233 = vadd.f32 0.0, %v3232
    %3234 = vdwg.mxu0
    %3235 = vrot.lane.b32.xlu0 %v2598, 104
    %v3236 = vpop.permute.xlu0 %3235
    %3237 = vrot.lane.b32.xlu0 %v2601, 104
    %v3238 = vpop.permute.xlu0 %3237
    %3239 = vrot.lane.b32.xlu0 %v2604, 104
    %v3240 = vpop.permute.xlu0 %3239
    %3241 = vrot.lane.b32.xlu0 %v2607, 104
    %v3242 = vpop.permute.xlu0 %3241
    %3243 = vrot.lane.b32.xlu0 %v2598, 72
    %v3244 = vpop.permute.xlu0 %3243
    %3245 = vrot.lane.b32.xlu0 %v2601, 72
    %v3246 = vpop.permute.xlu0 %3245
    %3247 = vrot.lane.b32.xlu0 %v2604, 72
    %v3248 = vpop.permute.xlu0 %3247
    %3249 = vrot.lane.b32.xlu0 %v2607, 72
    %v3250 = vpop.permute.xlu0 %3249
    %v3251 = vsel %vm736, %v3236, 0
    %v3253 = vsel %vm736, %v3238, 0
    %v3255 = vsel %vm736, %v3240, 0
    %v3257 = vsel %vm736, %v3242, 0
    %v3259 = vsel %vm736, %v3244, 0
    %v3261 = vsel %vm736, %v3246, 0
    %v3263 = vsel %vm736, %v3248, 0
    %v3265 = vsel %vm736, %v3250, 0
    %3267 = vmatpush.xpose.msra.mxu0 0.0
    %3268 = vmatpush.xpose.msra.mxu0 0.0
    %3269 = vmatpush.xpose.msra.mxu0 0.0
    %3270 = vmatpush.xpose.msra.mxu0 0.0
    %3271 = vmatpush.xpose.msra.mxu0 0.0
    %3272 = vmatpush.xpose.msra.mxu0 0.0
    %3273 = vmatpush.xpose.msra.mxu0 0.0
    %3274 = vmatpush.xpose.msra.mxu0 0.0
    %3275 = vmatpush.xpose.msra.mxu0 0.0
    %3276 = vmatpush.xpose.msra.mxu0 0.0
    %3277 = vmatpush.xpose.msra.mxu0 0.0
    %3278 = vmatpush.xpose.msra.mxu0 0.0
    %3279 = vmatpush.xpose.msra.mxu0 %v3265
    %3280 = vmatpush.xpose.msra.mxu0 %v3263
    %3281 = vmatpush.xpose.msra.mxu0 %v3261
    %3282 = vmatpush.xpose.msra.mxu0 %v3259
    %3283 = vmatmul.f32.gmra.mxu0 %v3251
    %v3284 = vpop.f32.mrf.mxu0
    %v3285 = vadd.f32 %v562, %v3284
    %3286 = vmatmul.f32.gmra.mxu0 %v3253
    %v3287 = vpop.f32.mrf.mxu0
    %v3288 = vadd.f32 %v563, %v3287
    %3289 = vmatmul.f32.gmra.mxu0 %v3255
    %v3290 = vpop.f32.mrf.mxu0
    %v3291 = vadd.f32 %v564, %v3290
    %3292 = vmatmul.f32.gmra.mxu0 %v3257
    %v3293 = vpop.f32.mrf.mxu0
    %v3294 = vadd.f32 %v565, %v3293
    %3295 = vdwg.mxu0
    %v3296 = vsel %vm521, %v3285, -inf
    %3297 = vmax.xlane.f32.xlu0 %v3296
    %v3298 = vpop.xlane.xlu0 %3297
    %v3299 = vsel %vm521, %v3288, -inf
    %3300 = vmax.xlane.f32.xlu0 %v3299
    %v3301 = vpop.xlane.xlu0 %3300
    %v3302 = vsel %vm521, %v3291, -inf
    %3303 = vmax.xlane.f32.xlu0 %v3302
    %v3304 = vpop.xlane.xlu0 %3303
    %v3305 = vsel %vm521, %v3294, -inf
    %3306 = vmax.xlane.f32.xlu0 %v3305
    %v3307 = vpop.xlane.xlu0 %3306
    %v3308 = vsub.f32 %v3285, %v3298
    %v3309 = vsub.f32 %v3288, %v3301
    %v3310 = vsub.f32 %v3291, %v3304
    %v3311 = vsub.f32 %v3294, %v3307
    %v3312 = vmul.f32 %v3308, 1.442695
    %v3313 = vpow.pop %v3312
    %v3314 = vmul.f32 %v3309, 1.442695
    %v3315 = vpow.pop %v3314
    %v3316 = vmul.f32 %v3310, 1.442695
    %v3317 = vpow.pop %v3316
    %v3318 = vmul.f32 %v3311, 1.442695
    %v3319 = vpow.pop %v3318
    %v3320 = vsel %vm521, %v3313, 0.0
    %3321 = vadd.xlane.f32.xlu0 %v3320
    %v3322 = vpop.xlane.xlu0 %3321
    %v3323 = vsel %vm521, %v3315, 0.0
    %3324 = vadd.xlane.f32.xlu0 %v3323
    %v3325 = vpop.xlane.xlu0 %3324
    %v3326 = vsel %vm521, %v3317, 0.0
    %3327 = vadd.xlane.f32.xlu0 %v3326
    %v3328 = vpop.xlane.xlu0 %3327
    %v3329 = vsel %vm521, %v3319, 0.0
    %3330 = vadd.xlane.f32.xlu0 %v3329
    %v3331 = vpop.xlane.xlu0 %3330
    %v3332 = vrcp.pop %v3322
    %v3333 = vmul.f32 %v3322, %v3332
    %v3334 = vsub.f32 1.0, %v3333
    %v3335 = vmul.f32 %v3332, %v3334
    %v3336 = vadd.f32 %v3332, %v3335
    %vm3337 = vweird.f32 %v3322
    %vm3338 = vweird.f32 %v3332
    %vm3339 = vmor %vm3337, %vm3338
    %v3340 = vsel %vm3339, %v3332, %v3336
    %v3341 = vand.u32 2147483647, %v3322
    %vm3342 = vcmp.eq.f32.partialorder %v3341, 8.507059e+37
    %v3343 = vand.u32 %v3322, 2147483648
    %v3344 = vor.u32 1.1754944e-38, %v3343
    %v3345 = vsel %vm3342, %v3344, %v3340
    %v3346 = vmul.f32 %v3313, %v3345
    %v3347 = vrcp.pop %v3325
    %v3348 = vmul.f32 %v3325, %v3347
    %v3349 = vsub.f32 1.0, %v3348
    %v3350 = vmul.f32 %v3347, %v3349
    %v3351 = vadd.f32 %v3347, %v3350
    %vm3352 = vweird.f32 %v3325
    %vm3353 = vweird.f32 %v3347
    %vm3354 = vmor %vm3352, %vm3353
    %v3355 = vsel %vm3354, %v3347, %v3351
    %v3356 = vand.u32 2147483647, %v3325
    %vm3357 = vcmp.eq.f32.partialorder %v3356, 8.507059e+37
    %v3358 = vand.u32 %v3325, 2147483648
    %v3359 = vor.u32 1.1754944e-38, %v3358
    %v3360 = vsel %vm3357, %v3359, %v3355
    %v3361 = vmul.f32 %v3315, %v3360
    %v3362 = vrcp.pop %v3328
    %v3363 = vmul.f32 %v3328, %v3362
    %v3364 = vsub.f32 1.0, %v3363
    %v3365 = vmul.f32 %v3362, %v3364
    %v3366 = vadd.f32 %v3362, %v3365
    %vm3367 = vweird.f32 %v3328
    %vm3368 = vweird.f32 %v3362
    %vm3369 = vmor %vm3367, %vm3368
    %v3370 = vsel %vm3369, %v3362, %v3366
    %v3371 = vand.u32 2147483647, %v3328
    %vm3372 = vcmp.eq.f32.partialorder %v3371, 8.507059e+37
    %v3373 = vand.u32 %v3328, 2147483648
    %v3374 = vor.u32 1.1754944e-38, %v3373
    %v3375 = vsel %vm3372, %v3374, %v3370
    %v3376 = vmul.f32 %v3317, %v3375
    %v3377 = vrcp.pop %v3331
    %v3378 = vmul.f32 %v3331, %v3377
    %v3379 = vsub.f32 1.0, %v3378
    %v3380 = vmul.f32 %v3377, %v3379
    %v3381 = vadd.f32 %v3377, %v3380
    %vm3382 = vweird.f32 %v3331
    %vm3383 = vweird.f32 %v3377
    %vm3384 = vmor %vm3382, %vm3383
    %v3385 = vsel %vm3384, %v3377, %v3381
    %v3386 = vand.u32 2147483647, %v3331
    %vm3387 = vcmp.eq.f32.partialorder %v3386, 8.507059e+37
    %v3388 = vand.u32 %v3331, 2147483648
    %v3389 = vor.u32 1.1754944e-38, %v3388
    %v3390 = vsel %vm3387, %v3389, %v3385
    %v3391 = vmul.f32 %v3319, %v3390
    %3392 = vrot.lane.b32.xlu0 %v2598, 40
    %v3393 = vpop.permute.xlu0 %3392
    %3394 = vrot.lane.b32.xlu0 %v2601, 40
    %v3395 = vpop.permute.xlu0 %3394
    %3396 = vrot.lane.b32.xlu0 %v2604, 40
    %v3397 = vpop.permute.xlu0 %3396
    %3398 = vrot.lane.b32.xlu0 %v2607, 40
    %v3399 = vpop.permute.xlu0 %3398
    %v3405 = vsel %vm521, %v3346, 0
    %v3408 = vsel %vm521, %v3361, 0
    %v3411 = vsel %vm521, %v3376, 0
    %v3414 = vsel %vm521, %v3391, 0
    %3416 = vmatpush.msra.mxu0 0.0
    %3417 = vmatpush.msra.mxu0 0.0
    %3418 = vmatpush.msra.mxu0 0.0
    %3419 = vmatpush.msra.mxu0 0.0
    %3420 = vmatpush.msra.mxu0 0.0
    %3421 = vmatpush.msra.mxu0 0.0
    %3422 = vmatpush.msra.mxu0 0.0
    %3423 = vmatpush.msra.mxu0 0.0
    %3424 = vmatpush.msra.mxu0 0.0
    %3425 = vmatpush.msra.mxu0 0.0
    %3426 = vmatpush.msra.mxu0 0.0
    %3427 = vmatpush.msra.mxu0 0.0
    %3428 = vmatpush.msra.mxu0 %v3399
    %3429 = vmatpush.msra.mxu0 %v3397
    %3430 = vmatpush.msra.mxu0 %v3395
    %3431 = vmatpush.msra.mxu0 %v3393
    %3432 = vmatmul.f32.gmra.mxu0 %v3405
    %v3433 = vpop.f32.mrf.mxu0
    %v3434 = vadd.f32 0.0, %v3433
    %3435 = vmatmul.f32.gmra.mxu0 %v3408
    %v3436 = vpop.f32.mrf.mxu0
    %v3437 = vadd.f32 0.0, %v3436
    %3438 = vmatmul.f32.gmra.mxu0 %v3411
    %v3439 = vpop.f32.mrf.mxu0
    %v3440 = vadd.f32 0.0, %v3439
    %3441 = vmatmul.f32.gmra.mxu0 %v3414
    %v3442 = vpop.f32.mrf.mxu0
    %v3443 = vadd.f32 0.0, %v3442
    %3444 = vdwg.mxu0
    %3449 = vrot.lane.b32.xlu0 %v3014, 8
    %v3450 = vpop.permute.xlu0 %3449
    %3451 = vrot.lane.b32.xlu0 %v3017, 8
    %v3452 = vpop.permute.xlu0 %3451
    %3453 = vrot.lane.b32.xlu0 %v3020, 8
    %v3454 = vpop.permute.xlu0 %3453
    %3455 = vrot.lane.b32.xlu0 %v3023, 8
    %v3456 = vpop.permute.xlu0 %3455
    %3465 = vrot.lane.b32.xlu0 %v3224, 16
    %v3466 = vpop.permute.xlu0 %3465
    %3467 = vrot.lane.b32.xlu0 %v3227, 16
    %v3468 = vpop.permute.xlu0 %3467
    %3469 = vrot.lane.b32.xlu0 %v3230, 16
    %v3470 = vpop.permute.xlu0 %3469
    %3471 = vrot.lane.b32.xlu0 %v3233, 16
    %v3472 = vpop.permute.xlu0 %3471
    %3481 = vrot.lane.b32.xlu0 %v3434, 24
    %v3482 = vpop.permute.xlu0 %3481
    %3483 = vrot.lane.b32.xlu0 %v3437, 24
    %v3484 = vpop.permute.xlu0 %3483
    %3485 = vrot.lane.b32.xlu0 %v3440, 24
    %v3486 = vpop.permute.xlu0 %3485
    %3487 = vrot.lane.b32.xlu0 %v3443, 24
    %v3488 = vpop.permute.xlu0 %3487
    %v3493 = vsel %vm736, %v2804, %v3450
    %v3494 = vsel %vm736, %v2807, %v3452
    %v3495 = vsel %vm736, %v2810, %v3454
    %v3496 = vsel %vm736, %v2813, %v3456
    %v3497 = vsel %vm682, %v3493, %v3466
    %v3498 = vsel %vm682, %v3494, %v3468
    %v3499 = vsel %vm682, %v3495, %v3470
    %v3500 = vsel %vm682, %v3496, %v3472
    %v3501 = vsel %vm790, %v3497, %v3482
    %v3502 = vsel %vm790, %v3498, %v3484
    %v3503 = vsel %vm790, %v3499, %v3486
    %v3504 = vsel %vm790, %v3500, %v3488
    %s3505 = scalar_lea.vmem %s51, 32
    %v3506 = vld [vmem:[%s3505] sm:$0xff]
    %v3507 = vld [vmem:[%s3505 + $0x8] sm:$0xff]
    %v3508 = vld [vmem:[%s3505 + $0x10] sm:$0xff]
    %v3509 = vld [vmem:[%s3505 + $0x18] sm:$0xff]
    %s3510 = scalar_lea.vmem [#allocation20], 1
    %v3511 = vld [vmem:[%s3510] sm:$0x1]
    %v3513 = vperm.slane %v3511, 0
    %v3516 = vsel %vm521, %v3501, 0
    %v3519 = vsel %vm521, %v3502, 0
    %v3522 = vsel %vm521, %v3503, 0
    %v3525 = vsel %vm521, %v3504, 0
    %3527 = vmatpush.msra.mxu0 0.0
    %3528 = vmatpush.msra.mxu0 0.0
    %3529 = vmatpush.msra.mxu0 0.0
    %3530 = vmatpush.msra.mxu0 0.0
    %3531 = vmatpush.msra.mxu0 0.0
    %3532 = vmatpush.msra.mxu0 0.0
    %3533 = vmatpush.msra.mxu0 0.0
    %3534 = vmatpush.msra.mxu0 0.0
    %3535 = vmatpush.msra.mxu0 0.0
    %3536 = vmatpush.msra.mxu0 0.0
    %3537 = vmatpush.msra.mxu0 0.0
    %3538 = vmatpush.msra.mxu0 0.0
    %3539 = vmatpush.msra.mxu0 %v3509
    %3540 = vmatpush.msra.mxu0 %v3508
    %3541 = vmatpush.msra.mxu0 %v3507
    %3542 = vmatpush.msra.mxu0 %v3506
    %3543 = vmatmul.f32.gmra.mxu0 %v3516
    %v3544 = vpop.f32.mrf.mxu0
    %v3545 = vadd.f32 %v3513, %v3544
    %3546 = vmatmul.f32.gmra.mxu0 %v3519
    %v3547 = vpop.f32.mrf.mxu0
    %v3548 = vadd.f32 %v3513, %v3547
    %3549 = vmatmul.f32.gmra.mxu0 %v3522
    %v3550 = vpop.f32.mrf.mxu0
    %v3551 = vadd.f32 %v3513, %v3550
    %3552 = vmatmul.f32.gmra.mxu0 %v3525
    %v3553 = vpop.f32.mrf.mxu0
    %v3554 = vadd.f32 %v3513, %v3553
    %3555 = vdwg.mxu0
    %3556 = vmatpush.msra.mxu0 0.0
    %3557 = vmatpush.msra.mxu0 0.0
    %3558 = vmatpush.msra.mxu0 0.0
    %3559 = vmatpush.msra.mxu0 0.0
    %3560 = vmatpush.msra.mxu0 0.0
    %3561 = vmatpush.msra.mxu0 0.0
    %3562 = vmatpush.msra.mxu0 0.0
    %3563 = vmatpush.msra.mxu0 0.0
    %3564 = vmatpush.msra.mxu0 0.0
    %3565 = vmatpush.msra.mxu0 0.0
    %3566 = vmatpush.msra.mxu0 0.0
    %3567 = vmatpush.msra.mxu0 0.0
    %3568 = vmatpush.msra.mxu0 %v3554
    %3569 = vmatpush.msra.mxu0 %v3551
    %3570 = vmatpush.msra.mxu0 %v3548
    %3571 = vmatpush.msra.mxu0 %v3545
    %3572 = vmatmul.f32.gmra.mxu0 %v2064
    %v3573 = vpop.f32.mrf.mxu0
    %v3574 = vadd.f32 %v2311, %v3573
    %3575 = vmatmul.f32.gmra.mxu0 %v2067
    %v3576 = vpop.f32.mrf.mxu0
    %v3577 = vadd.f32 %v2312, %v3576
    %3578 = vmatmul.f32.gmra.mxu0 %v2070
    %v3579 = vpop.f32.mrf.mxu0
    %v3580 = vadd.f32 %v2313, %v3579
    %3581 = vdwg.mxu0
    %s3582 = scalar_lea.vmem [#allocation22], 1
    %v3583 = vld [vmem:[%s3582] sm:$0x1]
    %s3584 = scalar_lea.vmem [#allocation23], 1
    %v3585 = vld [vmem:[%s3584] sm:$0x1]
    %v3586 = vsel %vm521, %v3574, 0.0
    %v3587 = vsel %vm521, %v3577, 0.0
    %v3588 = vadd.f32 %v3586, %v3587
    %v3589 = vsel %vm521, %v3580, 0.0
    %v3590 = vadd.f32 %v3588, %v3589
    %v3591 = vrot.slane %v3590, 4
    %v3592 = vadd.f32 %v3590, %v3591
    %v3593 = vrot.slane %v3592, 2
    %v3594 = vadd.f32 %v3592, %v3593
    %v3595 = vrot.slane %v3594, 1
    %v3596 = vadd.f32 %v3594, %v3595
    %v3597 = vmul.f32 %v3596, %v589
    %v3598 = vsub.f32 %v3574, %v3597
    %v3599 = vsub.f32 %v3577, %v3597
    %v3600 = vsub.f32 %v3580, %v3597
    %v3601 = vmul.f32 %v3598, %v3598
    %v3602 = vmul.f32 %v3599, %v3599
    %v3603 = vmul.f32 %v3600, %v3600
    %v3604 = vsel %vm521, %v3601, 0.0
    %v3605 = vsel %vm521, %v3602, 0.0
    %v3606 = vadd.f32 %v3604, %v3605
    %v3607 = vsel %vm521, %v3603, 0.0
    %v3608 = vadd.f32 %v3606, %v3607
    %v3609 = vrot.slane %v3608, 4
    %v3610 = vadd.f32 %v3608, %v3609
    %v3611 = vrot.slane %v3610, 2
    %v3612 = vadd.f32 %v3610, %v3611
    %v3613 = vrot.slane %v3612, 1
    %v3614 = vadd.f32 %v3612, %v3613
    %v3615 = vmul.f32 %v3614, %v589
    %v3616 = vadd.f32 %v3615, 1e-05
    %v3617 = vrsqrt.pop %v3616
    %v3618 = vmul.f32 %v3617, %v3616
    %v3619 = vmul.f32 %v3618, %v3617
    %v3620 = vmul.f32 0.5, %v3619
    %v3621 = vsub.f32 1.5, %v3620
    %v3622 = vmul.f32 %v3617, %v3621
    %vm3623 = vweird.f32 %v3616
    %vm3624 = vweird.f32 %v3617
    %vm3625 = vmor %vm3623, %vm3624
    %v3626 = vsel %vm3625, %v3617, %v3622
    %v3627 = vmul.f32 %v3598, %v3626
    %v3628 = vmul.f32 %v3599, %v3626
    %v3629 = vmul.f32 %v3600, %v3626
    %v3631 = vperm.slane %v3583, 0
    %v3633 = vmul.f32 %v3627, %v3631
    %v3634 = vmul.f32 %v3628, %v3631
    %v3635 = vmul.f32 %v3629, %v3631
    %v3637 = vperm.slane %v3585, 0
    %v3639 = vadd.f32 %v3633, %v3637
    %v3640 = vadd.f32 %v3634, %v3637
    %v3641 = vadd.f32 %v3635, %v3637
    %v3642 = vadd.f32 %v2555, %v3639
    %v3643 = vadd.f32 %v2556, %v3640
    %v3644 = vadd.f32 %v2557, %v3641
    %s3645 = scalar_lea.vmem %s59, 32
    %v3646 = vld [vmem:[%s3645] sm:$0xff]
    %v3647 = vld [vmem:[%s3645 + $0x8] sm:$0xff]
    %v3648 = vld [vmem:[%s3645 + $0x10] sm:$0xff]
    %v3649 = vld [vmem:[%s3645 + $0x18] sm:$0xff]
    %s3650 = scalar_lea.vmem [#allocation25], 1
    %v3651 = vld [vmem:[%s3650] sm:$0x1]
    %v3653 = vperm.slane %v3651, 0
    %v3656 = vsel %vm521, %v3642, 0
    %v3659 = vsel %vm521, %v3643, 0
    %v3662 = vsel %vm521, %v3644, 0
    %3664 = vmatpush.msra.mxu0 0.0
    %3665 = vmatpush.msra.mxu0 0.0
    %3666 = vmatpush.msra.mxu0 0.0
    %3667 = vmatpush.msra.mxu0 0.0
    %3668 = vmatpush.msra.mxu0 0.0
    %3669 = vmatpush.msra.mxu0 0.0
    %3670 = vmatpush.msra.mxu0 0.0
    %3671 = vmatpush.msra.mxu0 0.0
    %3672 = vmatpush.msra.mxu0 0.0
    %3673 = vmatpush.msra.mxu0 0.0
    %3674 = vmatpush.msra.mxu0 0.0
    %3675 = vmatpush.msra.mxu0 0.0
    %3676 = vmatpush.msra.mxu0 %v3649
    %3677 = vmatpush.msra.mxu0 %v3648
    %3678 = vmatpush.msra.mxu0 %v3647
    %3679 = vmatpush.msra.mxu0 %v3646
    %3680 = vmatmul.f32.gmra.mxu0 %v3656
    %v3681 = vpop.f32.mrf.mxu0
    %v3682 = vadd.f32 %v3653, %v3681
    %3683 = vmatmul.f32.gmra.mxu0 %v3659
    %v3684 = vpop.f32.mrf.mxu0
    %v3685 = vadd.f32 %v3653, %v3684
    %3686 = vmatmul.f32.gmra.mxu0 %v3662
    %v3687 = vpop.f32.mrf.mxu0
    %v3688 = vadd.f32 %v3653, %v3687
    %3689 = vdwg.mxu0
    %v3690 = vmax.f32 %v3682, 0.0
    %v3691 = vmax.f32 %v3685, 0.0
    %v3692 = vmax.f32 %v3688, 0.0
    %s3693 = scalar_lea.vmem %s63, 64
    %v3694 = vld [vmem:[%s3693] sm:$0xff]
    %v3695 = vld [vmem:[%s3693 + $0x8] sm:$0xff]
    %v3696 = vld [vmem:[%s3693 + $0x10] sm:$0xff]
    %v3697 = vld [vmem:[%s3693 + $0x18] sm:$0xff]
    %v3698 = vld [vmem:[%s3693 + $0x20] sm:$0xff]
    %v3699 = vld [vmem:[%s3693 + $0x28] sm:$0xff]
    %v3700 = vld [vmem:[%s3693 + $0x30] sm:$0xff]
    %v3701 = vld [vmem:[%s3693 + $0x38] sm:$0xff]
    %s3702 = scalar_lea.vmem [#allocation26], 1
    %v3703 = vld [vmem:[%s3702] sm:$0x1]
    %v3705 = vperm.slane %v3703, 0
    %v3708 = vsel %vm2217, %v3690, 0
    %v3711 = vsel %vm2217, %v3691, 0
    %v3714 = vsel %vm2217, %v3692, 0
    %3716 = vmatpush.msra.mxu0 0.0
    %3717 = vmatpush.msra.mxu0 0.0
    %3718 = vmatpush.msra.mxu0 0.0
    %3719 = vmatpush.msra.mxu0 0.0
    %3720 = vmatpush.msra.mxu0 0.0
    %3721 = vmatpush.msra.mxu0 0.0
    %3722 = vmatpush.msra.mxu0 0.0
    %3723 = vmatpush.msra.mxu0 0.0
    %3724 = vmatpush.msra.mxu0 %v3701
    %3725 = vmatpush.msra.mxu0 %v3700
    %3726 = vmatpush.msra.mxu0 %v3699
    %3727 = vmatpush.msra.mxu0 %v3698
    %3728 = vmatpush.msra.mxu0 %v3697
    %3729 = vmatpush.msra.mxu0 %v3696
    %3730 = vmatpush.msra.mxu0 %v3695
    %3731 = vmatpush.msra.mxu0 %v3694
    %3732 = vmatmul.f32.gmra.mxu0 %v3708
    %v3733 = vpop.f32.mrf.mxu0
    %v3734 = vadd.f32 %v3705, %v3733
    %3735 = vmatmul.f32.gmra.mxu0 %v3711
    %v3736 = vpop.f32.mrf.mxu0
    %v3737 = vadd.f32 %v3705, %v3736
    %3738 = vmatmul.f32.gmra.mxu0 %v3714
    %v3739 = vpop.f32.mrf.mxu0
    %v3740 = vadd.f32 %v3705, %v3739
    %3741 = vdwg.mxu0
    %v3742 = vadd.f32 %v3642, %v3734
    %v3743 = vadd.f32 %v3643, %v3737
    %v3744 = vadd.f32 %v3644, %v3740
    %s3745 = scalar_lea.vmem [#allocation28], 1
    %v3746 = vld [vmem:[%s3745] sm:$0x1]
    %s3747 = scalar_lea.vmem [#allocation29], 1
    %v3748 = vld [vmem:[%s3747] sm:$0x1]
    %v3749 = vsel %vm521, %v3742, 0.0
    %v3750 = vsel %vm521, %v3743, 0.0
    %v3751 = vadd.f32 %v3749, %v3750
    %v3752 = vsel %vm521, %v3744, 0.0
    %v3753 = vadd.f32 %v3751, %v3752
    %v3754 = vrot.slane %v3753, 4
    %v3755 = vadd.f32 %v3753, %v3754
    %v3756 = vrot.slane %v3755, 2
    %v3757 = vadd.f32 %v3755, %v3756
    %v3758 = vrot.slane %v3757, 1
    %v3759 = vadd.f32 %v3757, %v3758
    %v3760 = vmul.f32 %v3759, %v589
    %v3761 = vsub.f32 %v3742, %v3760
    %v3762 = vsub.f32 %v3743, %v3760
    %v3763 = vsub.f32 %v3744, %v3760
    %v3764 = vmul.f32 %v3761, %v3761
    %v3765 = vmul.f32 %v3762, %v3762
    %v3766 = vmul.f32 %v3763, %v3763
    %v3767 = vsel %vm521, %v3764, 0.0
    %v3768 = vsel %vm521, %v3765, 0.0
    %v3769 = vadd.f32 %v3767, %v3768
    %v3770 = vsel %vm521, %v3766, 0.0
    %v3771 = vadd.f32 %v3769, %v3770
    %v3772 = vrot.slane %v3771, 4
    %v3773 = vadd.f32 %v3771, %v3772
    %v3774 = vrot.slane %v3773, 2
    %v3775 = vadd.f32 %v3773, %v3774
    %v3776 = vrot.slane %v3775, 1
    %v3777 = vadd.f32 %v3775, %v3776
    %v3778 = vmul.f32 %v3777, %v589
    %v3779 = vadd.f32 %v3778, 1e-05
    %v3780 = vrsqrt.pop %v3779
    %v3781 = vmul.f32 %v3780, %v3779
    %v3782 = vmul.f32 %v3781, %v3780
    %v3783 = vmul.f32 0.5, %v3782
    %v3784 = vsub.f32 1.5, %v3783
    %v3785 = vmul.f32 %v3780, %v3784
    %vm3786 = vweird.f32 %v3779
    %vm3787 = vweird.f32 %v3780
    %vm3788 = vmor %vm3786, %vm3787
    %v3789 = vsel %vm3788, %v3780, %v3785
    %v3790 = vmul.f32 %v3761, %v3789
    %v3791 = vmul.f32 %v3762, %v3789
    %v3792 = vmul.f32 %v3763, %v3789
    %v3794 = vperm.slane %v3746, 0
    %v3796 = vmul.f32 %v3790, %v3794
    %v3797 = vmul.f32 %v3791, %v3794
    %v3798 = vmul.f32 %v3792, %v3794
    %v3800 = vperm.slane %v3748, 0
    %v3802 = vadd.f32 %v3796, %v3800
    %v3803 = vadd.f32 %v3797, %v3800
    %v3804 = vadd.f32 %v3798, %v3800
    %3805 = vst.msk [vmem:[#allocation32] sm:$0xff] %vm521, %v3802
    %3806 = vst.msk [vmem:[#allocation32 + $0x8] sm:$0xff] %vm521, %v3803
    %3807 = vst.msk [vmem:[#allocation32 + $0x10] sm:$0xff] %vm521, %v3804
    %v3809 = vsel %vm790, %v520, 0
    %3811 = vmatpush.msra.mxu0 0.0
    %3812 = vmatpush.msra.mxu0 0.0
    %3813 = vmatpush.msra.mxu0 0.0
    %3814 = vmatpush.msra.mxu0 0.0
    %3815 = vmatpush.msra.mxu0 0.0
    %3816 = vmatpush.msra.mxu0 0.0
    %3817 = vmatpush.msra.mxu0 0.0
    %3818 = vmatpush.msra.mxu0 0.0
    %3819 = vmatpush.msra.mxu0 0.0
    %3820 = vmatpush.msra.mxu0 0.0
    %3821 = vmatpush.msra.mxu0 0.0
    %3822 = vmatpush.msra.mxu0 0.0
    %3823 = vmatpush.msra.mxu0 0.0
    %3824 = vmatpush.msra.mxu0 %v3804
    %3825 = vmatpush.msra.mxu0 %v3803
    %3826 = vmatpush.msra.mxu0 %v3802
    %3827 = vmatmul.f32.gmra.mxu0 %v3809
    %v3828 = vpop.f32.mrf.mxu0
    %v3829 = vadd.f32 0.0, %v3828
    %3830 = vdwg.mxu0
    %vm3831 = vcmask 256000
    %3832 = vst.msk [vmem:[#allocation31] sm:$0x7] %vm3831, %v3829
    // Predicated region
    $region214: #{gps_forward.1} parent=1 // pred_check
      _
    $region215: #{gps_forward.1} parent=1 // pred_check_branch
      %3834 = sbr.rel (0) target = $region217
    $region216: #{gps_forward.1} parent=1 // pred_region
      %3836 = vsyncadd [#allocation4], 0
      %s3838 = sshll.u32 [#allocation31], 4
      %s3839 = int_to_ptr.vmem [resolvable:$true] %s3838
      %s3840 = sshll.u32 %s71, 4
      %s3841 = int_to_ptr.hbm [resolvable:$true] %s3840
      %3843 = dma.vmem_to_hbm [thread:$0]  %s3839, 64, %s3841, [#allocation4]
    $region217: #{gps_forward.1} parent=1 // pred_fallthru
      _
    // Predicated region
    $region218: #{gps_forward.1} parent=1 // pred_check
      _
    $region219: #{gps_forward.1} parent=1 // pred_check_branch
      %3845 = sbr.rel (0) target = $region221
    $region220: #{gps_forward.1} parent=1 // pred_region
      %3847 = vsyncadd [#allocation33], 0
      %s3848 = sshll.u32 [#allocation32], 4
      %s3849 = int_to_ptr.vmem [resolvable:$true] %s3848
      %s3850 = sshll.u32 %s73, 4
      %s3851 = int_to_ptr.hbm [resolvable:$true] %s3850
      %3856 = dma.vmem_to_hbm [thread:$0]  %s3849, 384, %s3851, [#allocation33], 128, 128, 8
    $region221: #{gps_forward.1} parent=1 // pred_fallthru
      _
    // Predicated region
    $region222: #{gps_forward.1} parent=1 // pred_check
      _
    $region223: #{gps_forward.1} parent=1 // pred_check_branch
      %3858 = sbr.rel (0) target = $region225
    $region224: #{gps_forward.1} parent=1 // pred_region
      %3860 = dma.done [#allocation4], 64
    $region225: #{gps_forward.1} parent=1 // pred_fallthru
      _
    // Predicated region
    $region226: #{gps_forward.1} parent=1 // pred_check
      _
    $region227: #{gps_forward.1} parent=1 // pred_check_branch
      %3862 = sbr.rel (0) target = $region229
    $region228: #{gps_forward.1} parent=1 // pred_region
      %3864 = dma.done [#allocation33], 384
    $region229: #{gps_forward.1} parent=1 // pred_fallthru
      _
    %3865 = vsyncpa [#allocation3], 1
    %3866 = vsyncpa [#allocation6], 1
    %3867 = vsyncpa [#allocation9], 1
    %3868 = vsyncpa [#allocation12], 1
    %3869 = vsyncpa [#allocation15], 1
    %3870 = vsyncpa [#allocation18], 1
    %3871 = vsyncpa [#allocation21], 1
    %3872 = vsyncpa [#allocation24], 1
    %3873 = vsyncpa [#allocation27], 1
    %3874 = vsyncpa [#allocation30], 1
    %3875 = vsyncpa [#allocation4], 1
    %3876 = vsyncpa [#allocation33], 1

</llo_original>
